<compile_context>
chip_gen: v7x
topology: tpu7x:2x2x1
jax: 0.10.0
libtpu: 0.0.40
codegen_flags: <defaults>
</compile_context>

<pallas_src>
import functools

import jax
import jax.numpy as jnp
import numpy as np
from jax import lax
from jax.experimental import pallas as pl
from jax.experimental.pallas import tpu as pltpu


def _round_up(x, m):
    return ((x + m - 1) // m) * m


# ----------------------------- Pallas kernel --------------------------------

def _lstm_layer_kernel(x_ref, wih_hbm, whh_hbm, bias_ref,        # inputs
                       y_ref, h_ref, c_ref,                      # outputs
                       wih_vmem, whh_vmem, preact_ref, dma_sem,  # scratch
                       *, tt, bp, hp, tail_steps):
    """One LSTM layer, one time block per grid step (grid axis 0 = time, sequential).

    x_ref      : (tt*bp, Din)  flattened (time-major) input rows for this block
    wih_hbm    : (Din, 4Hp)    W_ih^T in HBM (ANY space), DMA'd once into wih_vmem
    whh_hbm    : (Hp, 4Hp)     W_hh^T in HBM (ANY space), DMA'd once into whh_vmem
    bias_ref   : (1, 4Hp)      b_ih + b_hh, gate-padded
    y_ref      : (tt*bp, Hp)   per-timestep hidden outputs for this block
    h_ref,c_ref: (bp, Hp)      recurrent state; resident output blocks
    preact_ref : (tt*bp, 4Hp)  VMEM scratch for the fused input projection
    """
    tb = pl.program_id(0)
    nb = pl.num_programs(0)

    @pl.when(tb == 0)
    def _():
        h_ref[...] = jnp.zeros_like(h_ref)
        c_ref[...] = jnp.zeros_like(c_ref)
        # Single-buffered weights: one DMA into persistent VMEM scratch.
        cp_ih = pltpu.make_async_copy(wih_hbm, wih_vmem, dma_sem.at[0])
        cp_hh = pltpu.make_async_copy(whh_hbm, whh_vmem, dma_sem.at[1])
        cp_ih.start()
        cp_hh.start()
        cp_ih.wait()
        cp_hh.wait()

    # Fused, time-parallel input projection for this block: one MXU matmul,
    # bias folded in (keeps the wide 4H pre-activations out of HBM entirely).
    preact_ref[...] = (
        jnp.dot(x_ref[...], wih_vmem[...], preferred_element_type=jnp.float32)
        + bias_ref[...])

    whh = whh_vmem[...]   # loop-invariant recurrent weights

    def step(j, carry):
        h_prev, c_prev = carry
        row = pl.multiple_of(j * bp, bp)
        gates = preact_ref[pl.ds(row, bp), :] + jnp.dot(
            h_prev, whh, preferred_element_type=jnp.float32)
        # PyTorch gate order: i, f, g, o — each slice is lane-dense (Hp % 128 == 0).
        i_g = jax.nn.sigmoid(gates[:, 0 * hp:1 * hp])
        f_g = jax.nn.sigmoid(gates[:, 1 * hp:2 * hp])
        g_g = jnp.tanh(gates[:, 2 * hp:3 * hp])
        o_g = jax.nn.sigmoid(gates[:, 3 * hp:4 * hp])
        c_new = f_g * c_prev + i_g * g_g
        h_new = o_g * jnp.tanh(c_new)
        y_ref[pl.ds(row, bp), :] = h_new
        return h_new, c_new

    def run(n_steps):
        h_f, c_f = lax.fori_loop(0, n_steps, step, (h_ref[...], c_ref[...]),
                                 unroll=True)
        h_ref[...] = h_f
        c_ref[...] = c_f

    if tail_steps == tt:
        run(tt)
    else:
        # Full blocks are mask-free; only the last block runs a (static) shorter loop.
        @pl.when(tb < nb - 1)
        def _():
            run(tt)

        @pl.when(tb == nb - 1)
        def _():
            run(tail_steps)
            # Deterministic zeros for the padded time rows of this y block
            # (sliced off in the wrapper; next layer never processes them).
            y_ref[pl.ds(tail_steps * bp, (tt - tail_steps) * bp), :] = jnp.zeros(
                ((tt - tail_steps) * bp, hp), dtype=y_ref.dtype)


# ------------------------------ layer wrapper --------------------------------

def lstm_layer_pallas(x_tm, w_ih, w_hh, b_ih, b_hh, *, tt, tail_steps, lane=128):
    """One LSTM layer over padded, time-major input x_tm: (t_pad, Bp, Din).

    Returns (y_pad, h_pad, c_pad) with shapes (t_pad, Bp, Hp), (Bp, Hp), (Bp, Hp).
    """
    t_pad, Bp, Din = x_tm.shape
    n_blocks = t_pad // tt
    H = w_hh.shape[1]
    Hp = _round_up(max(H, lane), lane)        # lane-dense gates / outputs
    H4p = 4 * Hp
    din_w = w_ih.shape[1]

    def pad_gates(w_t):   # (in_dim, 4H) -> (in_dim, 4Hp), per-gate zero padding
        cols = [jnp.pad(w_t[:, k * H:(k + 1) * H], ((0, 0), (0, Hp - H)))
                for k in range(4)]
        return jnp.concatenate(cols, axis=1)

    wih_t = pad_gates(jnp.transpose(w_ih).astype(jnp.float32))    # (din_w, 4Hp)
    if Din > din_w:                                               # padded input channels
        wih_t = jnp.pad(wih_t, ((0, Din - din_w), (0, 0)))
    whh_t = pad_gates(jnp.transpose(w_hh).astype(jnp.float32))    # (H, 4Hp)
    whh_t = jnp.pad(whh_t, ((0, Hp - H), (0, 0)))                 # (Hp, 4Hp)

    b = (b_ih + b_hh).astype(jnp.float32)
    bias = jnp.concatenate(
        [jnp.pad(b[k * H:(k + 1) * H], (0, Hp - H)) for k in range(4)]
    ).reshape(1, H4p)

    # Flatten (t, b) -> rows so every kernel tensor is 2-D and lane/sublane aligned.
    x_flat = x_tm.astype(jnp.float32).reshape(t_pad * Bp, Din)

    kernel = functools.partial(_lstm_layer_kernel, tt=tt, bp=Bp, hp=Hp,
                               tail_steps=tail_steps)

    y_flat, h_f, c_f = pl.pallas_call(
        kernel,
        out_shape=(
            jax.ShapeDtypeStruct((t_pad * Bp, Hp), jnp.float32),
            jax.ShapeDtypeStruct((Bp, Hp), jnp.float32),
            jax.ShapeDtypeStruct((Bp, Hp), jnp.float32),
        ),
        grid_spec=pltpu.PrefetchScalarGridSpec(
            num_scalar_prefetch=0,
            grid=(n_blocks,),
            in_specs=[
                pl.BlockSpec((tt * Bp, Din), lambda tb: (tb, 0)),   # x time block
                pl.BlockSpec(memory_space=pl.ANY),                  # W_ih^T (HBM, DMA once)
                pl.BlockSpec(memory_space=pl.ANY),                  # W_hh^T (HBM, DMA once)
                pl.BlockSpec((1, H4p), lambda tb: (0, 0)),          # bias (invariant)
            ],
            out_specs=[
                pl.BlockSpec((tt * Bp, Hp), lambda tb: (tb, 0)),    # y time block
                pl.BlockSpec((Bp, Hp), lambda tb: (0, 0)),          # h (resident state)
                pl.BlockSpec((Bp, Hp), lambda tb: (0, 0)),          # c (resident state)
            ],
            scratch_shapes=[
                pltpu.VMEM((Din, H4p), jnp.float32),     # W_ih^T, single-buffered
                pltpu.VMEM((Hp, H4p), jnp.float32),      # W_hh^T, single-buffered
                pltpu.VMEM((tt * Bp, H4p), jnp.float32), # per-block pre-activations
                pltpu.SemaphoreType.DMA((2,)),
            ],
        ),
        compiler_params=pltpu.CompilerParams(
            dimension_semantics=("arbitrary",),          # time is a true recurrence
            # 48 MiB: fits v7x's 64 MiB VMEM; can be raised toward ~100 MiB on v5e/v6e.
            vmem_limit_bytes=48 * 1024 * 1024,
        ),
    )(x_flat, wih_t, whh_t, bias)

    return y_flat.reshape(t_pad, Bp, Hp), h_f, c_f


# ------------------------- Module-level forward ------------------------------

def init_params(key, vocab_size, embedding_dim, hidden_dim, n_layers):
    """Deterministic parameter init mirroring PyTorch shapes/init style."""
    params = {}
    k_emb, key = jax.random.split(key)
    params["embedding"] = jax.random.normal(
        k_emb, (vocab_size, embedding_dim), dtype=jnp.float32)
    bound = 1.0 / np.sqrt(hidden_dim)
    for layer in range(n_layers):
        in_dim = embedding_dim if layer == 0 else hidden_dim
        k1, k2, k3, k4, key = jax.random.split(key, 5)
        params[f"w_ih_l{layer}"] = jax.random.uniform(
            k1, (4 * hidden_dim, in_dim), jnp.float32, -bound, bound)
        params[f"w_hh_l{layer}"] = jax.random.uniform(
            k2, (4 * hidden_dim, hidden_dim), jnp.float32, -bound, bound)
        params[f"b_ih_l{layer}"] = jax.random.uniform(
            k3, (4 * hidden_dim,), jnp.float32, -bound, bound)
        params[f"b_hh_l{layer}"] = jax.random.uniform(
            k4, (4 * hidden_dim,), jnp.float32, -bound, bound)
    return params


@functools.partial(jax.jit, static_argnames=("n_layers", "time_block"))
def seq2seq_encoder_forward(src, params, n_layers, time_block=32):
    """src: (B, T) int32 token ids. Returns (outputs, hidden, cell)
    with shapes (B, T, H), (n_layers, B, H), (n_layers, B, H)."""
    B, T = src.shape
    H = params["w_hh_l0"].shape[1]

    # Embedding gather + dropout (identity in eval mode) -- plain JAX glue.
    embedded = params["embedding"][src]                       # (B, T, E)
    x = jnp.transpose(embedded, (1, 0, 2)).astype(jnp.float32)  # time-major (T, B, E)

    # Static time/batch padding shared by all layers.
    tt = min(time_block, T)
    n_blocks = (T + tt - 1) // tt
    t_pad = n_blocks * tt
    tail_steps = T - (n_blocks - 1) * tt
    Bp = _round_up(max(B, 8), 8)
    x = jnp.pad(x, ((0, t_pad - T), (0, Bp - B), (0, 0)))     # (t_pad, Bp, E)

    h_list, c_list = [], []
    for layer in range(n_layers):
        y_pad, h_pad, c_pad = lstm_layer_pallas(
            x,
            params[f"w_ih_l{layer}"], params[f"w_hh_l{layer}"],
            params[f"b_ih_l{layer}"], params[f"b_hh_l{layer}"],
            tt=tt, tail_steps=tail_steps)
        x = y_pad                                             # stays padded on-device
        h_list.append(h_pad[:B, :H])
        c_list.append(c_pad[:B, :H])

    outputs = jnp.transpose(x[:T, :B, :H], (1, 0, 2))         # batch-first (B, T, H)
    hidden = jnp.stack(h_list, axis=0)                        # (n_layers, B, H)
    cell = jnp.stack(c_list, axis=0)                          # (n_layers, B, H)
    # bidirectional=False => no hidden re-cat needed.
    return outputs, hidden, cell


# ------------------------- Pure-JAX reference check --------------------------

def lstm_layer_ref(x_tm, w_ih, w_hh, b_ih, b_hh):
    T, B, _ = x_tm.shape
    H = w_hh.shape[1]

    def step(carry, x_t):
        h, c = carry
        gates = x_t @ w_ih.T + h @ w_hh.T + b_ih + b_hh
        i_g = jax.nn.sigmoid(gates[:, 0 * H:1 * H])
        f_g = jax.nn.sigmoid(gates[:, 1 * H:2 * H])
        g_g = jnp.tanh(gates[:, 2 * H:3 * H])
        o_g = jax.nn.sigmoid(gates[:, 3 * H:4 * H])
        c_n = f_g * c + i_g * g_g
        h_n = o_g * jnp.tanh(c_n)
        return (h_n, c_n), h_n

    h0 = jnp.zeros((B, H), jnp.float32)
    c0 = jnp.zeros((B, H), jnp.float32)
    (h_f, c_f), ys = lax.scan(step, (h0, c0), x_tm)
    return ys, h_f, c_f


def encoder_ref(src, params, n_layers):
    x = jnp.transpose(params["embedding"][src], (1, 0, 2))
    hs, cs = [], []
    for layer in range(n_layers):
        x, h_f, c_f = lstm_layer_ref(
            x, params[f"w_ih_l{layer}"], params[f"w_hh_l{layer}"],
            params[f"b_ih_l{layer}"], params[f"b_hh_l{layer}"])
        hs.append(h_f)
        cs.append(c_f)
    return jnp.transpose(x, (1, 0, 2)), jnp.stack(hs, 0), jnp.stack(cs, 0)


# ---------------------------------- main -------------------------------------

if __name__ == "__main__":
    vocab_size = 50
    embedding_dim = 16
    hidden_dim = 32
    n_layers = 2
    B, T = 2, 8

    key = jax.random.PRNGKey(0)
    k_param, k_src = jax.random.split(key)
    params = init_params(k_param, vocab_size, embedding_dim, hidden_dim, n_layers)
    src = jax.random.randint(k_src, (B, T), 0, vocab_size, dtype=jnp.int32)

    outputs, hidden, cell = seq2seq_encoder_forward(src, params, n_layers, time_block=32)
    jax.block_until_ready((outputs, hidden, cell))

    out_r, hid_r, cel_r = encoder_ref(src, params, n_layers)
    np.testing.assert_allclose(np.asarray(outputs), np.asarray(out_r), atol=1e-5, rtol=1e-5)
    np.testing.assert_allclose(np.asarray(hidden), np.asarray(hid_r), atol=1e-5, rtol=1e-5)
    np.testing.assert_allclose(np.asarray(cell), np.asarray(cel_r), atol=1e-5, rtol=1e-5)

    assert outputs.shape == (B, T, hidden_dim)
    assert hidden.shape == (n_layers, B, hidden_dim)
    assert cell.shape == (n_layers, B, hidden_dim)

    # Exercise the multi-block + static-tail path: T=5 with time_block=2
    # -> 3 time blocks, last block runs only 1 step.
    T2 = 5
    src2 = jax.random.randint(jax.random.PRNGKey(1), (B, T2), 0, vocab_size, dtype=jnp.int32)
    out2, hid2, cel2 = seq2seq_encoder_forward(src2, params, n_layers, time_block=2)
    jax.block_until_ready((out2, hid2, cel2))
    out2_r, hid2_r, cel2_r = encoder_ref(src2, params, n_layers)
    np.testing.assert_allclose(np.asarray(out2), np.asarray(out2_r), atol=1e-5, rtol=1e-5)
    np.testing.assert_allclose(np.asarray(hid2), np.asarray(hid2_r), atol=1e-5, rtol=1e-5)
    np.testing.assert_allclose(np.asarray(cel2), np.asarray(cel2_r), atol=1e-5, rtol=1e-5)

    print("KERNEL_OK")
</pallas_src>

<mosaic_0001>
module attributes {stable_mosaic.version = 11 : i64} {
  func.func @_lstm_layer_kernel(%arg0: i32, %arg1: memref<64x16xf32, #tpu.memory_space<vmem>>, %arg2: memref<16x512xf32, #tpu.memory_space<any>>, %arg3: memref<128x512xf32, #tpu.memory_space<any>>, %arg4: memref<1x512xf32, #tpu.memory_space<vmem>>, %arg5: memref<64x128xf32, #tpu.memory_space<vmem>>, %arg6: memref<8x128xf32, #tpu.memory_space<vmem>>, %arg7: memref<8x128xf32, #tpu.memory_space<vmem>>, %arg8: memref<16x512xf32, #tpu.memory_space<vmem>>, %arg9: memref<128x512xf32, #tpu.memory_space<vmem>>, %arg10: memref<64x512xf32, #tpu.memory_space<vmem>>, %arg11: memref<2x!tpu.dma_semaphore, #tpu.memory_space<semaphore_mem>>) attributes {dimension_semantics = [#tpu.dimension_semantics<arbitrary>], iteration_bounds = array<i64: 1>, scalar_prefetch = 0 : i64, scratch_operands = 4 : i64, tpu.core_type = #tpu.core_type<tc>, window_params = [{transform_indices = @transform_0, window_bounds = array<i64: 64, 16>}, {}, {}, {pipeline_mode = #tpu.pipeline_mode<synchronous>, transform_indices = @transform_3, window_bounds = array<i64: 1, 512>}, {transform_indices = @transform_4, window_bounds = array<i64: 64, 128>}, {pipeline_mode = #tpu.pipeline_mode<synchronous>, transform_indices = @transform_5, window_bounds = array<i64: 8, 128>}, {pipeline_mode = #tpu.pipeline_mode<synchronous>, transform_indices = @transform_6, window_bounds = array<i64: 8, 128>}]} {
    %c0_i32 = arith.constant 0 : i32
    %0 = arith.cmpi eq, %arg0, %c0_i32 : i32
    %1 = arith.extui %0 : i1 to i32
    %c0_i32_0 = arith.constant 0 : i32
    %2 = arith.cmpi ne, %1, %c0_i32_0 : i32
    scf.if %2 {
      %cst_75 = arith.constant 0.000000e+00 : f32
      %279 = vector.broadcast %cst_75 : f32 to vector<8x128xf32>
      %c0_76 = arith.constant 0 : index
      %c0_77 = arith.constant 0 : index
      %280 = vector.load %arg6[%c0_76, %c0_77] : memref<8x128xf32, #tpu.memory_space<vmem>>, vector<8x128xf32>
      tpu.vector_store %arg6[%c0_76, %c0_77], %279 {strides = array<i32>} : memref<8x128xf32, #tpu.memory_space<vmem>>, vector<8x128xf32>,
      %cst_78 = arith.constant 0.000000e+00 : f32
      %281 = vector.broadcast %cst_78 : f32 to vector<8x128xf32>
      %c0_79 = arith.constant 0 : index
      %c0_80 = arith.constant 0 : index
      %282 = vector.load %arg7[%c0_79, %c0_80] : memref<8x128xf32, #tpu.memory_space<vmem>>, vector<8x128xf32>
      tpu.vector_store %arg7[%c0_79, %c0_80], %281 {strides = array<i32>} : memref<8x128xf32, #tpu.memory_space<vmem>>, vector<8x128xf32>,
      %c0_i32_81 = arith.constant 0 : i32
      %283 = tpu.memref_slice %arg11[%c0_i32_81] : memref<2x!tpu.dma_semaphore, #tpu.memory_space<semaphore_mem>> -> memref<1x!tpu.dma_semaphore, #tpu.memory_space<semaphore_mem>>
      %284 = tpu.memref_squeeze %283 : memref<1x!tpu.dma_semaphore, #tpu.memory_space<semaphore_mem>> -> memref<!tpu.dma_semaphore, #tpu.memory_space<semaphore_mem>>
      tpu.enqueue_dma source(%arg2 : memref<16x512xf32, #tpu.memory_space<any>>) target(%arg8 : memref<16x512xf32, #tpu.memory_space<vmem>>) target_semaphore(%284 : memref<!tpu.dma_semaphore, #tpu.memory_space<semaphore_mem>>)
      %c1_i32_82 = arith.constant 1 : i32
      %285 = tpu.memref_slice %arg11[%c1_i32_82] : memref<2x!tpu.dma_semaphore, #tpu.memory_space<semaphore_mem>> -> memref<1x!tpu.dma_semaphore, #tpu.memory_space<semaphore_mem>>
      %286 = tpu.memref_squeeze %285 : memref<1x!tpu.dma_semaphore, #tpu.memory_space<semaphore_mem>> -> memref<!tpu.dma_semaphore, #tpu.memory_space<semaphore_mem>>
      tpu.enqueue_dma source(%arg3 : memref<128x512xf32, #tpu.memory_space<any>>) target(%arg9 : memref<128x512xf32, #tpu.memory_space<vmem>>) target_semaphore(%286 : memref<!tpu.dma_semaphore, #tpu.memory_space<semaphore_mem>>)
      %c0_i32_83 = arith.constant 0 : i32
      %287 = tpu.memref_slice %arg11[%c0_i32_83] : memref<2x!tpu.dma_semaphore, #tpu.memory_space<semaphore_mem>> -> memref<1x!tpu.dma_semaphore, #tpu.memory_space<semaphore_mem>>
      %288 = tpu.memref_squeeze %287 : memref<1x!tpu.dma_semaphore, #tpu.memory_space<semaphore_mem>> -> memref<!tpu.dma_semaphore, #tpu.memory_space<semaphore_mem>>
      tpu.wait_dma2 semaphore(%288 : memref<!tpu.dma_semaphore, #tpu.memory_space<semaphore_mem>>) src(%arg2 : memref<16x512xf32, #tpu.memory_space<any>>) dst(%arg8 : memref<16x512xf32, #tpu.memory_space<vmem>>)
      %c1_i32_84 = arith.constant 1 : i32
      %289 = tpu.memref_slice %arg11[%c1_i32_84] : memref<2x!tpu.dma_semaphore, #tpu.memory_space<semaphore_mem>> -> memref<1x!tpu.dma_semaphore, #tpu.memory_space<semaphore_mem>>
      %290 = tpu.memref_squeeze %289 : memref<1x!tpu.dma_semaphore, #tpu.memory_space<semaphore_mem>> -> memref<!tpu.dma_semaphore, #tpu.memory_space<semaphore_mem>>
      tpu.wait_dma2 semaphore(%290 : memref<!tpu.dma_semaphore, #tpu.memory_space<semaphore_mem>>) src(%arg3 : memref<128x512xf32, #tpu.memory_space<any>>) dst(%arg9 : memref<128x512xf32, #tpu.memory_space<vmem>>)
    } else {
    }
    %c0 = arith.constant 0 : index
    %c0_1 = arith.constant 0 : index
    %3 = vector.load %arg1[%c0, %c0_1] : memref<64x16xf32, #tpu.memory_space<vmem>>, vector<64x16xf32>
    %c0_2 = arith.constant 0 : index
    %c0_3 = arith.constant 0 : index
    %4 = vector.load %arg8[%c0_2, %c0_3] : memref<16x512xf32, #tpu.memory_space<vmem>>, vector<16x512xf32>
    %cst = arith.constant dense<0.000000e+00> : vector<64x512xf32>
    %5 = tpu.matmul %3, %4, %cst {dimension_numbers = #tpu.dot_dimension_numbers<[1], [0], [0], [1], [0, 0, 1, 1], [], []>} : vector<64x16xf32>, vector<16x512xf32>, vector<64x512xf32> -> vector<64x512xf32>
    %c0_4 = arith.constant 0 : index
    %c0_5 = arith.constant 0 : index
    %6 = vector.load %arg4[%c0_4, %c0_5] : memref<1x512xf32, #tpu.memory_space<vmem>>, vector<1x512xf32>
    %7 = vector.broadcast %6 : vector<1x512xf32> to vector<64x512xf32>
    %8 = arith.addf %5, %7 : vector<64x512xf32>
    %c0_6 = arith.constant 0 : index
    %c0_7 = arith.constant 0 : index
    %9 = vector.load %arg10[%c0_6, %c0_7] : memref<64x512xf32, #tpu.memory_space<vmem>>, vector<64x512xf32>
    tpu.vector_store %arg10[%c0_6, %c0_7], %8 {strides = array<i32>} : memref<64x512xf32, #tpu.memory_space<vmem>>, vector<64x512xf32>,
    %c0_8 = arith.constant 0 : index
    %c0_9 = arith.constant 0 : index
    %10 = vector.load %arg9[%c0_8, %c0_9] : memref<128x512xf32, #tpu.memory_space<vmem>>, vector<128x512xf32>
    %c0_10 = arith.constant 0 : index
    %c0_11 = arith.constant 0 : index
    %11 = vector.load %arg6[%c0_10, %c0_11] : memref<8x128xf32, #tpu.memory_space<vmem>>, vector<8x128xf32>
    %c0_12 = arith.constant 0 : index
    %c0_13 = arith.constant 0 : index
    %12 = vector.load %arg7[%c0_12, %c0_13] : memref<8x128xf32, #tpu.memory_space<vmem>>, vector<8x128xf32>
    %c0_i32_14 = arith.constant 0 : i32
    %c8_i32 = arith.constant 8 : i32
    %13 = arith.muli %c0_i32_14, %c8_i32 : i32
    %14 = tpu.assume_multiple %13, 8 : i32
    %15 = arith.index_cast %14 : i32 to index
    %c0_15 = arith.constant 0 : index
    %16 = vector.load %arg10[%15, %c0_15] : memref<64x512xf32, #tpu.memory_space<vmem>>, vector<8x512xf32>
    %cst_16 = arith.constant dense<0.000000e+00> : vector<8x512xf32>
    %17 = tpu.matmul %11, %10, %cst_16 {dimension_numbers = #tpu.dot_dimension_numbers<[1], [0], [0], [1], [0, 0, 1, 1], [], []>} : vector<8x128xf32>, vector<128x512xf32>, vector<8x512xf32> -> vector<8x512xf32>
    %18 = arith.addf %16, %17 : vector<8x512xf32>
    %19 = vector.extract_strided_slice %18 {offsets = [0, 0], sizes = [8, 128], strides = [1, 1]} : vector<8x512xf32> to vector<8x128xf32>
    %20 = arith.negf %19 : vector<8x128xf32>
    %21 = math.exp %20 : vector<8x128xf32>
    %cst_17 = arith.constant 1.000000e+00 : f32
    %22 = vector.broadcast %cst_17 : f32 to vector<8x128xf32>
    %23 = arith.addf %22, %21 : vector<8x128xf32>
    %24 = arith.divf %22, %23 : vector<8x128xf32>
    %25 = vector.extract_strided_slice %18 {offsets = [0, 128], sizes = [8, 128], strides = [1, 1]} : vector<8x512xf32> to vector<8x128xf32>
    %26 = arith.negf %25 : vector<8x128xf32>
    %27 = math.exp %26 : vector<8x128xf32>
    %cst_18 = arith.constant 1.000000e+00 : f32
    %28 = vector.broadcast %cst_18 : f32 to vector<8x128xf32>
    %29 = arith.addf %28, %27 : vector<8x128xf32>
    %30 = arith.divf %28, %29 : vector<8x128xf32>
    %31 = vector.extract_strided_slice %18 {offsets = [0, 256], sizes = [8, 128], strides = [1, 1]} : vector<8x512xf32> to vector<8x128xf32>
    %32 = math.tanh %31 : vector<8x128xf32>
    %33 = vector.extract_strided_slice %18 {offsets = [0, 384], sizes = [8, 128], strides = [1, 1]} : vector<8x512xf32> to vector<8x128xf32>
    %34 = arith.negf %33 : vector<8x128xf32>
    %35 = math.exp %34 : vector<8x128xf32>
    %cst_19 = arith.constant 1.000000e+00 : f32
    %36 = vector.broadcast %cst_19 : f32 to vector<8x128xf32>
    %37 = arith.addf %36, %35 : vector<8x128xf32>
    %38 = arith.divf %36, %37 : vector<8x128xf32>
    %39 = arith.mulf %30, %12 : vector<8x128xf32>
    %40 = arith.mulf %24, %32 : vector<8x128xf32>
    %41 = arith.addf %39, %40 : vector<8x128xf32>
    %42 = math.tanh %41 : vector<8x128xf32>
    %43 = arith.mulf %38, %42 : vector<8x128xf32>
    %44 = arith.index_cast %14 : i32 to index
    %c0_20 = arith.constant 0 : index
    %45 = vector.load %arg5[%44, %c0_20] : memref<64x128xf32, #tpu.memory_space<vmem>>, vector<8x128xf32>
    tpu.vector_store %arg5[%44, %c0_20], %43 {strides = array<i32>} : memref<64x128xf32, #tpu.memory_space<vmem>>, vector<8x128xf32>,
    %c1_i32 = arith.constant 1 : i32
    %c8_i32_21 = arith.constant 8 : i32
    %46 = arith.muli %c1_i32, %c8_i32_21 : i32
    %47 = tpu.assume_multiple %46, 8 : i32
    %48 = arith.index_cast %47 : i32 to index
    %c0_22 = arith.constant 0 : index
    %49 = vector.load %arg10[%48, %c0_22] : memref<64x512xf32, #tpu.memory_space<vmem>>, vector<8x512xf32>
    %cst_23 = arith.constant dense<0.000000e+00> : vector<8x512xf32>
    %50 = tpu.matmul %43, %10, %cst_23 {dimension_numbers = #tpu.dot_dimension_numbers<[1], [0], [0], [1], [0, 0, 1, 1], [], []>} : vector<8x128xf32>, vector<128x512xf32>, vector<8x512xf32> -> vector<8x512xf32>
    %51 = arith.addf %49, %50 : vector<8x512xf32>
    %52 = vector.extract_strided_slice %51 {offsets = [0, 0], sizes = [8, 128], strides = [1, 1]} : vector<8x512xf32> to vector<8x128xf32>
    %53 = arith.negf %52 : vector<8x128xf32>
    %54 = math.exp %53 : vector<8x128xf32>
    %cst_24 = arith.constant 1.000000e+00 : f32
    %55 = vector.broadcast %cst_24 : f32 to vector<8x128xf32>
    %56 = arith.addf %55, %54 : vector<8x128xf32>
    %57 = arith.divf %55, %56 : vector<8x128xf32>
    %58 = vector.extract_strided_slice %51 {offsets = [0, 128], sizes = [8, 128], strides = [1, 1]} : vector<8x512xf32> to vector<8x128xf32>
    %59 = arith.negf %58 : vector<8x128xf32>
    %60 = math.exp %59 : vector<8x128xf32>
    %cst_25 = arith.constant 1.000000e+00 : f32
    %61 = vector.broadcast %cst_25 : f32 to vector<8x128xf32>
    %62 = arith.addf %61, %60 : vector<8x128xf32>
    %63 = arith.divf %61, %62 : vector<8x128xf32>
    %64 = vector.extract_strided_slice %51 {offsets = [0, 256], sizes = [8, 128], strides = [1, 1]} : vector<8x512xf32> to vector<8x128xf32>
    %65 = math.tanh %64 : vector<8x128xf32>
    %66 = vector.extract_strided_slice %51 {offsets = [0, 384], sizes = [8, 128], strides = [1, 1]} : vector<8x512xf32> to vector<8x128xf32>
    %67 = arith.negf %66 : vector<8x128xf32>
    %68 = math.exp %67 : vector<8x128xf32>
    %cst_26 = arith.constant 1.000000e+00 : f32
    %69 = vector.broadcast %cst_26 : f32 to vector<8x128xf32>
    %70 = arith.addf %69, %68 : vector<8x128xf32>
    %71 = arith.divf %69, %70 : vector<8x128xf32>
    %72 = arith.mulf %63, %41 : vector<8x128xf32>
    %73 = arith.mulf %57, %65 : vector<8x128xf32>
    %74 = arith.addf %72, %73 : vector<8x128xf32>
    %75 = math.tanh %74 : vector<8x128xf32>
    %76 = arith.mulf %71, %75 : vector<8x128xf32>
    %77 = arith.index_cast %47 : i32 to index
    %c0_27 = arith.constant 0 : index
    %78 = vector.load %arg5[%77, %c0_27] : memref<64x128xf32, #tpu.memory_space<vmem>>, vector<8x128xf32>
    tpu.vector_store %arg5[%77, %c0_27], %76 {strides = array<i32>} : memref<64x128xf32, #tpu.memory_space<vmem>>, vector<8x128xf32>,
    %c2_i32 = arith.constant 2 : i32
    %c8_i32_28 = arith.constant 8 : i32
    %79 = arith.muli %c2_i32, %c8_i32_28 : i32
    %80 = tpu.assume_multiple %79, 8 : i32
    %81 = arith.index_cast %80 : i32 to index
    %c0_29 = arith.constant 0 : index
    %82 = vector.load %arg10[%81, %c0_29] : memref<64x512xf32, #tpu.memory_space<vmem>>, vector<8x512xf32>
    %cst_30 = arith.constant dense<0.000000e+00> : vector<8x512xf32>
    %83 = tpu.matmul %76, %10, %cst_30 {dimension_numbers = #tpu.dot_dimension_numbers<[1], [0], [0], [1], [0, 0, 1, 1], [], []>} : vector<8x128xf32>, vector<128x512xf32>, vector<8x512xf32> -> vector<8x512xf32>
    %84 = arith.addf %82, %83 : vector<8x512xf32>
    %85 = vector.extract_strided_slice %84 {offsets = [0, 0], sizes = [8, 128], strides = [1, 1]} : vector<8x512xf32> to vector<8x128xf32>
    %86 = arith.negf %85 : vector<8x128xf32>
    %87 = math.exp %86 : vector<8x128xf32>
    %cst_31 = arith.constant 1.000000e+00 : f32
    %88 = vector.broadcast %cst_31 : f32 to vector<8x128xf32>
    %89 = arith.addf %88, %87 : vector<8x128xf32>
    %90 = arith.divf %88, %89 : vector<8x128xf32>
    %91 = vector.extract_strided_slice %84 {offsets = [0, 128], sizes = [8, 128], strides = [1, 1]} : vector<8x512xf32> to vector<8x128xf32>
    %92 = arith.negf %91 : vector<8x128xf32>
    %93 = math.exp %92 : vector<8x128xf32>
    %cst_32 = arith.constant 1.000000e+00 : f32
    %94 = vector.broadcast %cst_32 : f32 to vector<8x128xf32>
    %95 = arith.addf %94, %93 : vector<8x128xf32>
    %96 = arith.divf %94, %95 : vector<8x128xf32>
    %97 = vector.extract_strided_slice %84 {offsets = [0, 256], sizes = [8, 128], strides = [1, 1]} : vector<8x512xf32> to vector<8x128xf32>
    %98 = math.tanh %97 : vector<8x128xf32>
    %99 = vector.extract_strided_slice %84 {offsets = [0, 384], sizes = [8, 128], strides = [1, 1]} : vector<8x512xf32> to vector<8x128xf32>
    %100 = arith.negf %99 : vector<8x128xf32>
    %101 = math.exp %100 : vector<8x128xf32>
    %cst_33 = arith.constant 1.000000e+00 : f32
    %102 = vector.broadcast %cst_33 : f32 to vector<8x128xf32>
    %103 = arith.addf %102, %101 : vector<8x128xf32>
    %104 = arith.divf %102, %103 : vector<8x128xf32>
    %105 = arith.mulf %96, %74 : vector<8x128xf32>
    %106 = arith.mulf %90, %98 : vector<8x128xf32>
    %107 = arith.addf %105, %106 : vector<8x128xf32>
    %108 = math.tanh %107 : vector<8x128xf32>
    %109 = arith.mulf %104, %108 : vector<8x128xf32>
    %110 = arith.index_cast %80 : i32 to index
    %c0_34 = arith.constant 0 : index
    %111 = vector.load %arg5[%110, %c0_34] : memref<64x128xf32, #tpu.memory_space<vmem>>, vector<8x128xf32>
    tpu.vector_store %arg5[%110, %c0_34], %109 {strides = array<i32>} : memref<64x128xf32, #tpu.memory_space<vmem>>, vector<8x128xf32>,
    %c3_i32 = arith.constant 3 : i32
    %c8_i32_35 = arith.constant 8 : i32
    %112 = arith.muli %c3_i32, %c8_i32_35 : i32
    %113 = tpu.assume_multiple %112, 8 : i32
    %114 = arith.index_cast %113 : i32 to index
    %c0_36 = arith.constant 0 : index
    %115 = vector.load %arg10[%114, %c0_36] : memref<64x512xf32, #tpu.memory_space<vmem>>, vector<8x512xf32>
    %cst_37 = arith.constant dense<0.000000e+00> : vector<8x512xf32>
    %116 = tpu.matmul %109, %10, %cst_37 {dimension_numbers = #tpu.dot_dimension_numbers<[1], [0], [0], [1], [0, 0, 1, 1], [], []>} : vector<8x128xf32>, vector<128x512xf32>, vector<8x512xf32> -> vector<8x512xf32>
    %117 = arith.addf %115, %116 : vector<8x512xf32>
    %118 = vector.extract_strided_slice %117 {offsets = [0, 0], sizes = [8, 128], strides = [1, 1]} : vector<8x512xf32> to vector<8x128xf32>
    %119 = arith.negf %118 : vector<8x128xf32>
    %120 = math.exp %119 : vector<8x128xf32>
    %cst_38 = arith.constant 1.000000e+00 : f32
    %121 = vector.broadcast %cst_38 : f32 to vector<8x128xf32>
    %122 = arith.addf %121, %120 : vector<8x128xf32>
    %123 = arith.divf %121, %122 : vector<8x128xf32>
    %124 = vector.extract_strided_slice %117 {offsets = [0, 128], sizes = [8, 128], strides = [1, 1]} : vector<8x512xf32> to vector<8x128xf32>
    %125 = arith.negf %124 : vector<8x128xf32>
    %126 = math.exp %125 : vector<8x128xf32>
    %cst_39 = arith.constant 1.000000e+00 : f32
    %127 = vector.broadcast %cst_39 : f32 to vector<8x128xf32>
    %128 = arith.addf %127, %126 : vector<8x128xf32>
    %129 = arith.divf %127, %128 : vector<8x128xf32>
    %130 = vector.extract_strided_slice %117 {offsets = [0, 256], sizes = [8, 128], strides = [1, 1]} : vector<8x512xf32> to vector<8x128xf32>
    %131 = math.tanh %130 : vector<8x128xf32>
    %132 = vector.extract_strided_slice %117 {offsets = [0, 384], sizes = [8, 128], strides = [1, 1]} : vector<8x512xf32> to vector<8x128xf32>
    %133 = arith.negf %132 : vector<8x128xf32>
    %134 = math.exp %133 : vector<8x128xf32>
    %cst_40 = arith.constant 1.000000e+00 : f32
    %135 = vector.broadcast %cst_40 : f32 to vector<8x128xf32>
    %136 = arith.addf %135, %134 : vector<8x128xf32>
    %137 = arith.divf %135, %136 : vector<8x128xf32>
    %138 = arith.mulf %129, %107 : vector<8x128xf32>
    %139 = arith.mulf %123, %131 : vector<8x128xf32>
    %140 = arith.addf %138, %139 : vector<8x128xf32>
    %141 = math.tanh %140 : vector<8x128xf32>
    %142 = arith.mulf %137, %141 : vector<8x128xf32>
    %143 = arith.index_cast %113 : i32 to index
    %c0_41 = arith.constant 0 : index
    %144 = vector.load %arg5[%143, %c0_41] : memref<64x128xf32, #tpu.memory_space<vmem>>, vector<8x128xf32>
    tpu.vector_store %arg5[%143, %c0_41], %142 {strides = array<i32>} : memref<64x128xf32, #tpu.memory_space<vmem>>, vector<8x128xf32>,
    %c4_i32 = arith.constant 4 : i32
    %c8_i32_42 = arith.constant 8 : i32
    %145 = arith.muli %c4_i32, %c8_i32_42 : i32
    %146 = tpu.assume_multiple %145, 8 : i32
    %147 = arith.index_cast %146 : i32 to index
    %c0_43 = arith.constant 0 : index
    %148 = vector.load %arg10[%147, %c0_43] : memref<64x512xf32, #tpu.memory_space<vmem>>, vector<8x512xf32>
    %cst_44 = arith.constant dense<0.000000e+00> : vector<8x512xf32>
    %149 = tpu.matmul %142, %10, %cst_44 {dimension_numbers = #tpu.dot_dimension_numbers<[1], [0], [0], [1], [0, 0, 1, 1], [], []>} : vector<8x128xf32>, vector<128x512xf32>, vector<8x512xf32> -> vector<8x512xf32>
    %150 = arith.addf %148, %149 : vector<8x512xf32>
    %151 = vector.extract_strided_slice %150 {offsets = [0, 0], sizes = [8, 128], strides = [1, 1]} : vector<8x512xf32> to vector<8x128xf32>
    %152 = arith.negf %151 : vector<8x128xf32>
    %153 = math.exp %152 : vector<8x128xf32>
    %cst_45 = arith.constant 1.000000e+00 : f32
    %154 = vector.broadcast %cst_45 : f32 to vector<8x128xf32>
    %155 = arith.addf %154, %153 : vector<8x128xf32>
    %156 = arith.divf %154, %155 : vector<8x128xf32>
    %157 = vector.extract_strided_slice %150 {offsets = [0, 128], sizes = [8, 128], strides = [1, 1]} : vector<8x512xf32> to vector<8x128xf32>
    %158 = arith.negf %157 : vector<8x128xf32>
    %159 = math.exp %158 : vector<8x128xf32>
    %cst_46 = arith.constant 1.000000e+00 : f32
    %160 = vector.broadcast %cst_46 : f32 to vector<8x128xf32>
    %161 = arith.addf %160, %159 : vector<8x128xf32>
    %162 = arith.divf %160, %161 : vector<8x128xf32>
    %163 = vector.extract_strided_slice %150 {offsets = [0, 256], sizes = [8, 128], strides = [1, 1]} : vector<8x512xf32> to vector<8x128xf32>
    %164 = math.tanh %163 : vector<8x128xf32>
    %165 = vector.extract_strided_slice %150 {offsets = [0, 384], sizes = [8, 128], strides = [1, 1]} : vector<8x512xf32> to vector<8x128xf32>
    %166 = arith.negf %165 : vector<8x128xf32>
    %167 = math.exp %166 : vector<8x128xf32>
    %cst_47 = arith.constant 1.000000e+00 : f32
    %168 = vector.broadcast %cst_47 : f32 to vector<8x128xf32>
    %169 = arith.addf %168, %167 : vector<8x128xf32>
    %170 = arith.divf %168, %169 : vector<8x128xf32>
    %171 = arith.mulf %162, %140 : vector<8x128xf32>
    %172 = arith.mulf %156, %164 : vector<8x128xf32>
    %173 = arith.addf %171, %172 : vector<8x128xf32>
    %174 = math.tanh %173 : vector<8x128xf32>
    %175 = arith.mulf %170, %174 : vector<8x128xf32>
    %176 = arith.index_cast %146 : i32 to index
    %c0_48 = arith.constant 0 : index
    %177 = vector.load %arg5[%176, %c0_48] : memref<64x128xf32, #tpu.memory_space<vmem>>, vector<8x128xf32>
    tpu.vector_store %arg5[%176, %c0_48], %175 {strides = array<i32>} : memref<64x128xf32, #tpu.memory_space<vmem>>, vector<8x128xf32>,
    %c5_i32 = arith.constant 5 : i32
    %c8_i32_49 = arith.constant 8 : i32
    %178 = arith.muli %c5_i32, %c8_i32_49 : i32
    %179 = tpu.assume_multiple %178, 8 : i32
    %180 = arith.index_cast %179 : i32 to index
    %c0_50 = arith.constant 0 : index
    %181 = vector.load %arg10[%180, %c0_50] : memref<64x512xf32, #tpu.memory_space<vmem>>, vector<8x512xf32>
    %cst_51 = arith.constant dense<0.000000e+00> : vector<8x512xf32>
    %182 = tpu.matmul %175, %10, %cst_51 {dimension_numbers = #tpu.dot_dimension_numbers<[1], [0], [0], [1], [0, 0, 1, 1], [], []>} : vector<8x128xf32>, vector<128x512xf32>, vector<8x512xf32> -> vector<8x512xf32>
    %183 = arith.addf %181, %182 : vector<8x512xf32>
    %184 = vector.extract_strided_slice %183 {offsets = [0, 0], sizes = [8, 128], strides = [1, 1]} : vector<8x512xf32> to vector<8x128xf32>
    %185 = arith.negf %184 : vector<8x128xf32>
    %186 = math.exp %185 : vector<8x128xf32>
    %cst_52 = arith.constant 1.000000e+00 : f32
    %187 = vector.broadcast %cst_52 : f32 to vector<8x128xf32>
    %188 = arith.addf %187, %186 : vector<8x128xf32>
    %189 = arith.divf %187, %188 : vector<8x128xf32>
    %190 = vector.extract_strided_slice %183 {offsets = [0, 128], sizes = [8, 128], strides = [1, 1]} : vector<8x512xf32> to vector<8x128xf32>
    %191 = arith.negf %190 : vector<8x128xf32>
    %192 = math.exp %191 : vector<8x128xf32>
    %cst_53 = arith.constant 1.000000e+00 : f32
    %193 = vector.broadcast %cst_53 : f32 to vector<8x128xf32>
    %194 = arith.addf %193, %192 : vector<8x128xf32>
    %195 = arith.divf %193, %194 : vector<8x128xf32>
    %196 = vector.extract_strided_slice %183 {offsets = [0, 256], sizes = [8, 128], strides = [1, 1]} : vector<8x512xf32> to vector<8x128xf32>
    %197 = math.tanh %196 : vector<8x128xf32>
    %198 = vector.extract_strided_slice %183 {offsets = [0, 384], sizes = [8, 128], strides = [1, 1]} : vector<8x512xf32> to vector<8x128xf32>
    %199 = arith.negf %198 : vector<8x128xf32>
    %200 = math.exp %199 : vector<8x128xf32>
    %cst_54 = arith.constant 1.000000e+00 : f32
    %201 = vector.broadcast %cst_54 : f32 to vector<8x128xf32>
    %202 = arith.addf %201, %200 : vector<8x128xf32>
    %203 = arith.divf %201, %202 : vector<8x128xf32>
    %204 = arith.mulf %195, %173 : vector<8x128xf32>
    %205 = arith.mulf %189, %197 : vector<8x128xf32>
    %206 = arith.addf %204, %205 : vector<8x128xf32>
    %207 = math.tanh %206 : vector<8x128xf32>
    %208 = arith.mulf %203, %207 : vector<8x128xf32>
    %209 = arith.index_cast %179 : i32 to index
    %c0_55 = arith.constant 0 : index
    %210 = vector.load %arg5[%209, %c0_55] : memref<64x128xf32, #tpu.memory_space<vmem>>, vector<8x128xf32>
    tpu.vector_store %arg5[%209, %c0_55], %208 {strides = array<i32>} : memref<64x128xf32, #tpu.memory_space<vmem>>, vector<8x128xf32>,
    %c6_i32 = arith.constant 6 : i32
    %c8_i32_56 = arith.constant 8 : i32
    %211 = arith.muli %c6_i32, %c8_i32_56 : i32
    %212 = tpu.assume_multiple %211, 8 : i32
    %213 = arith.index_cast %212 : i32 to index
    %c0_57 = arith.constant 0 : index
    %214 = vector.load %arg10[%213, %c0_57] : memref<64x512xf32, #tpu.memory_space<vmem>>, vector<8x512xf32>
    %cst_58 = arith.constant dense<0.000000e+00> : vector<8x512xf32>
    %215 = tpu.matmul %208, %10, %cst_58 {dimension_numbers = #tpu.dot_dimension_numbers<[1], [0], [0], [1], [0, 0, 1, 1], [], []>} : vector<8x128xf32>, vector<128x512xf32>, vector<8x512xf32> -> vector<8x512xf32>
    %216 = arith.addf %214, %215 : vector<8x512xf32>
    %217 = vector.extract_strided_slice %216 {offsets = [0, 0], sizes = [8, 128], strides = [1, 1]} : vector<8x512xf32> to vector<8x128xf32>
    %218 = arith.negf %217 : vector<8x128xf32>
    %219 = math.exp %218 : vector<8x128xf32>
    %cst_59 = arith.constant 1.000000e+00 : f32
    %220 = vector.broadcast %cst_59 : f32 to vector<8x128xf32>
    %221 = arith.addf %220, %219 : vector<8x128xf32>
    %222 = arith.divf %220, %221 : vector<8x128xf32>
    %223 = vector.extract_strided_slice %216 {offsets = [0, 128], sizes = [8, 128], strides = [1, 1]} : vector<8x512xf32> to vector<8x128xf32>
    %224 = arith.negf %223 : vector<8x128xf32>
    %225 = math.exp %224 : vector<8x128xf32>
    %cst_60 = arith.constant 1.000000e+00 : f32
    %226 = vector.broadcast %cst_60 : f32 to vector<8x128xf32>
    %227 = arith.addf %226, %225 : vector<8x128xf32>
    %228 = arith.divf %226, %227 : vector<8x128xf32>
    %229 = vector.extract_strided_slice %216 {offsets = [0, 256], sizes = [8, 128], strides = [1, 1]} : vector<8x512xf32> to vector<8x128xf32>
    %230 = math.tanh %229 : vector<8x128xf32>
    %231 = vector.extract_strided_slice %216 {offsets = [0, 384], sizes = [8, 128], strides = [1, 1]} : vector<8x512xf32> to vector<8x128xf32>
    %232 = arith.negf %231 : vector<8x128xf32>
    %233 = math.exp %232 : vector<8x128xf32>
    %cst_61 = arith.constant 1.000000e+00 : f32
    %234 = vector.broadcast %cst_61 : f32 to vector<8x128xf32>
    %235 = arith.addf %234, %233 : vector<8x128xf32>
    %236 = arith.divf %234, %235 : vector<8x128xf32>
    %237 = arith.mulf %228, %206 : vector<8x128xf32>
    %238 = arith.mulf %222, %230 : vector<8x128xf32>
    %239 = arith.addf %237, %238 : vector<8x128xf32>
    %240 = math.tanh %239 : vector<8x128xf32>
    %241 = arith.mulf %236, %240 : vector<8x128xf32>
    %242 = arith.index_cast %212 : i32 to index
    %c0_62 = arith.constant 0 : index
    %243 = vector.load %arg5[%242, %c0_62] : memref<64x128xf32, #tpu.memory_space<vmem>>, vector<8x128xf32>
    tpu.vector_store %arg5[%242, %c0_62], %241 {strides = array<i32>} : memref<64x128xf32, #tpu.memory_space<vmem>>, vector<8x128xf32>,
    %c7_i32 = arith.constant 7 : i32
    %c8_i32_63 = arith.constant 8 : i32
    %244 = arith.muli %c7_i32, %c8_i32_63 : i32
    %245 = tpu.assume_multiple %244, 8 : i32
    %246 = arith.index_cast %245 : i32 to index
    %c0_64 = arith.constant 0 : index
    %247 = vector.load %arg10[%246, %c0_64] : memref<64x512xf32, #tpu.memory_space<vmem>>, vector<8x512xf32>
    %cst_65 = arith.constant dense<0.000000e+00> : vector<8x512xf32>
    %248 = tpu.matmul %241, %10, %cst_65 {dimension_numbers = #tpu.dot_dimension_numbers<[1], [0], [0], [1], [0, 0, 1, 1], [], []>} : vector<8x128xf32>, vector<128x512xf32>, vector<8x512xf32> -> vector<8x512xf32>
    %249 = arith.addf %247, %248 : vector<8x512xf32>
    %250 = vector.extract_strided_slice %249 {offsets = [0, 0], sizes = [8, 128], strides = [1, 1]} : vector<8x512xf32> to vector<8x128xf32>
    %251 = arith.negf %250 : vector<8x128xf32>
    %252 = math.exp %251 : vector<8x128xf32>
    %cst_66 = arith.constant 1.000000e+00 : f32
    %253 = vector.broadcast %cst_66 : f32 to vector<8x128xf32>
    %254 = arith.addf %253, %252 : vector<8x128xf32>
    %255 = arith.divf %253, %254 : vector<8x128xf32>
    %256 = vector.extract_strided_slice %249 {offsets = [0, 128], sizes = [8, 128], strides = [1, 1]} : vector<8x512xf32> to vector<8x128xf32>
    %257 = arith.negf %256 : vector<8x128xf32>
    %258 = math.exp %257 : vector<8x128xf32>
    %cst_67 = arith.constant 1.000000e+00 : f32
    %259 = vector.broadcast %cst_67 : f32 to vector<8x128xf32>
    %260 = arith.addf %259, %258 : vector<8x128xf32>
    %261 = arith.divf %259, %260 : vector<8x128xf32>
    %262 = vector.extract_strided_slice %249 {offsets = [0, 256], sizes = [8, 128], strides = [1, 1]} : vector<8x512xf32> to vector<8x128xf32>
    %263 = math.tanh %262 : vector<8x128xf32>
    %264 = vector.extract_strided_slice %249 {offsets = [0, 384], sizes = [8, 128], strides = [1, 1]} : vector<8x512xf32> to vector<8x128xf32>
    %265 = arith.negf %264 : vector<8x128xf32>
    %266 = math.exp %265 : vector<8x128xf32>
    %cst_68 = arith.constant 1.000000e+00 : f32
    %267 = vector.broadcast %cst_68 : f32 to vector<8x128xf32>
    %268 = arith.addf %267, %266 : vector<8x128xf32>
    %269 = arith.divf %267, %268 : vector<8x128xf32>
    %270 = arith.mulf %261, %239 : vector<8x128xf32>
    %271 = arith.mulf %255, %263 : vector<8x128xf32>
    %272 = arith.addf %270, %271 : vector<8x128xf32>
    %273 = math.tanh %272 : vector<8x128xf32>
    %274 = arith.mulf %269, %273 : vector<8x128xf32>
    %275 = arith.index_cast %245 : i32 to index
    %c0_69 = arith.constant 0 : index
    %276 = vector.load %arg5[%275, %c0_69] : memref<64x128xf32, #tpu.memory_space<vmem>>, vector<8x128xf32>
    tpu.vector_store %arg5[%275, %c0_69], %274 {strides = array<i32>} : memref<64x128xf32, #tpu.memory_space<vmem>>, vector<8x128xf32>,
    %c8_i32_70 = arith.constant 8 : i32
    %c0_71 = arith.constant 0 : index
    %c0_72 = arith.constant 0 : index
    %277 = vector.load %arg6[%c0_71, %c0_72] : memref<8x128xf32, #tpu.memory_space<vmem>>, vector<8x128xf32>
    tpu.vector_store %arg6[%c0_71, %c0_72], %274 {strides = array<i32>} : memref<8x128xf32, #tpu.memory_space<vmem>>, vector<8x128xf32>,
    %c0_73 = arith.constant 0 : index
    %c0_74 = arith.constant 0 : index
    %278 = vector.load %arg7[%c0_73, %c0_74] : memref<8x128xf32, #tpu.memory_space<vmem>>, vector<8x128xf32>
    tpu.vector_store %arg7[%c0_73, %c0_74], %272 {strides = array<i32>} : memref<8x128xf32, #tpu.memory_space<vmem>>, vector<8x128xf32>,
    return
  }
  func.func @transform_0(%arg0: i32) -> (i32, i32) {
    %c0_i32 = arith.constant 0 : i32
    %c0_i32_0 = arith.constant 0 : i32
    return %arg0, %c0_i32 : i32, i32
  }
  func.func @transform_3(%arg0: i32) -> (i32, i32) {
    %c0_i32 = arith.constant 0 : i32
    %c0_i32_0 = arith.constant 0 : i32
    %c0_i32_1 = arith.constant 0 : i32
    return %c0_i32, %c0_i32_0 : i32, i32
  }
  func.func @transform_4(%arg0: i32) -> (i32, i32) {
    %c0_i32 = arith.constant 0 : i32
    %c0_i32_0 = arith.constant 0 : i32
    return %arg0, %c0_i32 : i32, i32
  }
  func.func @transform_5(%arg0: i32) -> (i32, i32) {
    %c0_i32 = arith.constant 0 : i32
    %c0_i32_0 = arith.constant 0 : i32
    %c0_i32_1 = arith.constant 0 : i32
    return %c0_i32, %c0_i32_0 : i32, i32
  }
  func.func @transform_6(%arg0: i32) -> (i32, i32) {
    %c0_i32 = arith.constant 0 : i32
    %c0_i32_0 = arith.constant 0 : i32
    %c0_i32_1 = arith.constant 0 : i32
    return %c0_i32, %c0_i32_0 : i32, i32
  }
}

module attributes {stable_mosaic.version = 11 : i64} {
  func.func @_lstm_layer_kernel(%arg0: i32, %arg1: memref<64x128xf32, #tpu.memory_space<vmem>>, %arg2: memref<128x512xf32, #tpu.memory_space<any>>, %arg3: memref<128x512xf32, #tpu.memory_space<any>>, %arg4: memref<1x512xf32, #tpu.memory_space<vmem>>, %arg5: memref<64x128xf32, #tpu.memory_space<vmem>>, %arg6: memref<8x128xf32, #tpu.memory_space<vmem>>, %arg7: memref<8x128xf32, #tpu.memory_space<vmem>>, %arg8: memref<128x512xf32, #tpu.memory_space<vmem>>, %arg9: memref<128x512xf32, #tpu.memory_space<vmem>>, %arg10: memref<64x512xf32, #tpu.memory_space<vmem>>, %arg11: memref<2x!tpu.dma_semaphore, #tpu.memory_space<semaphore_mem>>) attributes {dimension_semantics = [#tpu.dimension_semantics<arbitrary>], iteration_bounds = array<i64: 1>, scalar_prefetch = 0 : i64, scratch_operands = 4 : i64, tpu.core_type = #tpu.core_type<tc>, window_params = [{transform_indices = @transform_0, window_bounds = array<i64: 64, 128>}, {}, {}, {pipeline_mode = #tpu.pipeline_mode<synchronous>, transform_indices = @transform_3, window_bounds = array<i64: 1, 512>}, {transform_indices = @transform_4, window_bounds = array<i64: 64, 128>}, {pipeline_mode = #tpu.pipeline_mode<synchronous>, transform_indices = @transform_5, window_bounds = array<i64: 8, 128>}, {pipeline_mode = #tpu.pipeline_mode<synchronous>, transform_indices = @transform_6, window_bounds = array<i64: 8, 128>}]} {
    %c0_i32 = arith.constant 0 : i32
    %0 = arith.cmpi eq, %arg0, %c0_i32 : i32
    %1 = arith.extui %0 : i1 to i32
    %c0_i32_0 = arith.constant 0 : i32
    %2 = arith.cmpi ne, %1, %c0_i32_0 : i32
    scf.if %2 {
      %cst_75 = arith.constant 0.000000e+00 : f32
      %279 = vector.broadcast %cst_75 : f32 to vector<8x128xf32>
      %c0_76 = arith.constant 0 : index
      %c0_77 = arith.constant 0 : index
      %280 = vector.load %arg6[%c0_76, %c0_77] : memref<8x128xf32, #tpu.memory_space<vmem>>, vector<8x128xf32>
      tpu.vector_store %arg6[%c0_76, %c0_77], %279 {strides = array<i32>} : memref<8x128xf32, #tpu.memory_space<vmem>>, vector<8x128xf32>,
      %cst_78 = arith.constant 0.000000e+00 : f32
      %281 = vector.broadcast %cst_78 : f32 to vector<8x128xf32>
      %c0_79 = arith.constant 0 : index
      %c0_80 = arith.constant 0 : index
      %282 = vector.load %arg7[%c0_79, %c0_80] : memref<8x128xf32, #tpu.memory_space<vmem>>, vector<8x128xf32>
      tpu.vector_store %arg7[%c0_79, %c0_80], %281 {strides = array<i32>} : memref<8x128xf32, #tpu.memory_space<vmem>>, vector<8x128xf32>,
      %c0_i32_81 = arith.constant 0 : i32
      %283 = tpu.memref_slice %arg11[%c0_i32_81] : memref<2x!tpu.dma_semaphore, #tpu.memory_space<semaphore_mem>> -> memref<1x!tpu.dma_semaphore, #tpu.memory_space<semaphore_mem>>
      %284 = tpu.memref_squeeze %283 : memref<1x!tpu.dma_semaphore, #tpu.memory_space<semaphore_mem>> -> memref<!tpu.dma_semaphore, #tpu.memory_space<semaphore_mem>>
      tpu.enqueue_dma source(%arg2 : memref<128x512xf32, #tpu.memory_space<any>>) target(%arg8 : memref<128x512xf32, #tpu.memory_space<vmem>>) target_semaphore(%284 : memref<!tpu.dma_semaphore, #tpu.memory_space<semaphore_mem>>)
      %c1_i32_82 = arith.constant 1 : i32
      %285 = tpu.memref_slice %arg11[%c1_i32_82] : memref<2x!tpu.dma_semaphore, #tpu.memory_space<semaphore_mem>> -> memref<1x!tpu.dma_semaphore, #tpu.memory_space<semaphore_mem>>
      %286 = tpu.memref_squeeze %285 : memref<1x!tpu.dma_semaphore, #tpu.memory_space<semaphore_mem>> -> memref<!tpu.dma_semaphore, #tpu.memory_space<semaphore_mem>>
      tpu.enqueue_dma source(%arg3 : memref<128x512xf32, #tpu.memory_space<any>>) target(%arg9 : memref<128x512xf32, #tpu.memory_space<vmem>>) target_semaphore(%286 : memref<!tpu.dma_semaphore, #tpu.memory_space<semaphore_mem>>)
      %c0_i32_83 = arith.constant 0 : i32
      %287 = tpu.memref_slice %arg11[%c0_i32_83] : memref<2x!tpu.dma_semaphore, #tpu.memory_space<semaphore_mem>> -> memref<1x!tpu.dma_semaphore, #tpu.memory_space<semaphore_mem>>
      %288 = tpu.memref_squeeze %287 : memref<1x!tpu.dma_semaphore, #tpu.memory_space<semaphore_mem>> -> memref<!tpu.dma_semaphore, #tpu.memory_space<semaphore_mem>>
      tpu.wait_dma2 semaphore(%288 : memref<!tpu.dma_semaphore, #tpu.memory_space<semaphore_mem>>) src(%arg2 : memref<128x512xf32, #tpu.memory_space<any>>) dst(%arg8 : memref<128x512xf32, #tpu.memory_space<vmem>>)
      %c1_i32_84 = arith.constant 1 : i32
      %289 = tpu.memref_slice %arg11[%c1_i32_84] : memref<2x!tpu.dma_semaphore, #tpu.memory_space<semaphore_mem>> -> memref<1x!tpu.dma_semaphore, #tpu.memory_space<semaphore_mem>>
      %290 = tpu.memref_squeeze %289 : memref<1x!tpu.dma_semaphore, #tpu.memory_space<semaphore_mem>> -> memref<!tpu.dma_semaphore, #tpu.memory_space<semaphore_mem>>
      tpu.wait_dma2 semaphore(%290 : memref<!tpu.dma_semaphore, #tpu.memory_space<semaphore_mem>>) src(%arg3 : memref<128x512xf32, #tpu.memory_space<any>>) dst(%arg9 : memref<128x512xf32, #tpu.memory_space<vmem>>)
    } else {
    }
    %c0 = arith.constant 0 : index
    %c0_1 = arith.constant 0 : index
    %3 = vector.load %arg1[%c0, %c0_1] : memref<64x128xf32, #tpu.memory_space<vmem>>, vector<64x128xf32>
    %c0_2 = arith.constant 0 : index
    %c0_3 = arith.constant 0 : index
    %4 = vector.load %arg8[%c0_2, %c0_3] : memref<128x512xf32, #tpu.memory_space<vmem>>, vector<128x512xf32>
    %cst = arith.constant dense<0.000000e+00> : vector<64x512xf32>
    %5 = tpu.matmul %3, %4, %cst {dimension_numbers = #tpu.dot_dimension_numbers<[1], [0], [0], [1], [0, 0, 1, 1], [], []>} : vector<64x128xf32>, vector<128x512xf32>, vector<64x512xf32> -> vector<64x512xf32>
    %c0_4 = arith.constant 0 : index
    %c0_5 = arith.constant 0 : index
    %6 = vector.load %arg4[%c0_4, %c0_5] : memref<1x512xf32, #tpu.memory_space<vmem>>, vector<1x512xf32>
    %7 = vector.broadcast %6 : vector<1x512xf32> to vector<64x512xf32>
    %8 = arith.addf %5, %7 : vector<64x512xf32>
    %c0_6 = arith.constant 0 : index
    %c0_7 = arith.constant 0 : index
    %9 = vector.load %arg10[%c0_6, %c0_7] : memref<64x512xf32, #tpu.memory_space<vmem>>, vector<64x512xf32>
    tpu.vector_store %arg10[%c0_6, %c0_7], %8 {strides = array<i32>} : memref<64x512xf32, #tpu.memory_space<vmem>>, vector<64x512xf32>,
    %c0_8 = arith.constant 0 : index
    %c0_9 = arith.constant 0 : index
    %10 = vector.load %arg9[%c0_8, %c0_9] : memref<128x512xf32, #tpu.memory_space<vmem>>, vector<128x512xf32>
    %c0_10 = arith.constant 0 : index
    %c0_11 = arith.constant 0 : index
    %11 = vector.load %arg6[%c0_10, %c0_11] : memref<8x128xf32, #tpu.memory_space<vmem>>, vector<8x128xf32>
    %c0_12 = arith.constant 0 : index
    %c0_13 = arith.constant 0 : index
    %12 = vector.load %arg7[%c0_12, %c0_13] : memref<8x128xf32, #tpu.memory_space<vmem>>, vector<8x128xf32>
    %c0_i32_14 = arith.constant 0 : i32
    %c8_i32 = arith.constant 8 : i32
    %13 = arith.muli %c0_i32_14, %c8_i32 : i32
    %14 = tpu.assume_multiple %13, 8 : i32
    %15 = arith.index_cast %14 : i32 to index
    %c0_15 = arith.constant 0 : index
    %16 = vector.load %arg10[%15, %c0_15] : memref<64x512xf32, #tpu.memory_space<vmem>>, vector<8x512xf32>
    %cst_16 = arith.constant dense<0.000000e+00> : vector<8x512xf32>
    %17 = tpu.matmul %11, %10, %cst_16 {dimension_numbers = #tpu.dot_dimension_numbers<[1], [0], [0], [1], [0, 0, 1, 1], [], []>} : vector<8x128xf32>, vector<128x512xf32>, vector<8x512xf32> -> vector<8x512xf32>
    %18 = arith.addf %16, %17 : vector<8x512xf32>
    %19 = vector.extract_strided_slice %18 {offsets = [0, 0], sizes = [8, 128], strides = [1, 1]} : vector<8x512xf32> to vector<8x128xf32>
    %20 = arith.negf %19 : vector<8x128xf32>
    %21 = math.exp %20 : vector<8x128xf32>
    %cst_17 = arith.constant 1.000000e+00 : f32
    %22 = vector.broadcast %cst_17 : f32 to vector<8x128xf32>
    %23 = arith.addf %22, %21 : vector<8x128xf32>
    %24 = arith.divf %22, %23 : vector<8x128xf32>
    %25 = vector.extract_strided_slice %18 {offsets = [0, 128], sizes = [8, 128], strides = [1, 1]} : vector<8x512xf32> to vector<8x128xf32>
    %26 = arith.negf %25 : vector<8x128xf32>
    %27 = math.exp %26 : vector<8x128xf32>
    %cst_18 = arith.constant 1.000000e+00 : f32
    %28 = vector.broadcast %cst_18 : f32 to vector<8x128xf32>
    %29 = arith.addf %28, %27 : vector<8x128xf32>
    %30 = arith.divf %28, %29 : vector<8x128xf32>
    %31 = vector.extract_strided_slice %18 {offsets = [0, 256], sizes = [8, 128], strides = [1, 1]} : vector<8x512xf32> to vector<8x128xf32>
    %32 = math.tanh %31 : vector<8x128xf32>
    %33 = vector.extract_strided_slice %18 {offsets = [0, 384], sizes = [8, 128], strides = [1, 1]} : vector<8x512xf32> to vector<8x128xf32>
    %34 = arith.negf %33 : vector<8x128xf32>
    %35 = math.exp %34 : vector<8x128xf32>
    %cst_19 = arith.constant 1.000000e+00 : f32
    %36 = vector.broadcast %cst_19 : f32 to vector<8x128xf32>
    %37 = arith.addf %36, %35 : vector<8x128xf32>
    %38 = arith.divf %36, %37 : vector<8x128xf32>
    %39 = arith.mulf %30, %12 : vector<8x128xf32>
    %40 = arith.mulf %24, %32 : vector<8x128xf32>
    %41 = arith.addf %39, %40 : vector<8x128xf32>
    %42 = math.tanh %41 : vector<8x128xf32>
    %43 = arith.mulf %38, %42 : vector<8x128xf32>
    %44 = arith.index_cast %14 : i32 to index
    %c0_20 = arith.constant 0 : index
    %45 = vector.load %arg5[%44, %c0_20] : memref<64x128xf32, #tpu.memory_space<vmem>>, vector<8x128xf32>
    tpu.vector_store %arg5[%44, %c0_20], %43 {strides = array<i32>} : memref<64x128xf32, #tpu.memory_space<vmem>>, vector<8x128xf32>,
    %c1_i32 = arith.constant 1 : i32
    %c8_i32_21 = arith.constant 8 : i32
    %46 = arith.muli %c1_i32, %c8_i32_21 : i32
    %47 = tpu.assume_multiple %46, 8 : i32
    %48 = arith.index_cast %47 : i32 to index
    %c0_22 = arith.constant 0 : index
    %49 = vector.load %arg10[%48, %c0_22] : memref<64x512xf32, #tpu.memory_space<vmem>>, vector<8x512xf32>
    %cst_23 = arith.constant dense<0.000000e+00> : vector<8x512xf32>
    %50 = tpu.matmul %43, %10, %cst_23 {dimension_numbers = #tpu.dot_dimension_numbers<[1], [0], [0], [1], [0, 0, 1, 1], [], []>} : vector<8x128xf32>, vector<128x512xf32>, vector<8x512xf32> -> vector<8x512xf32>
    %51 = arith.addf %49, %50 : vector<8x512xf32>
    %52 = vector.extract_strided_slice %51 {offsets = [0, 0], sizes = [8, 128], strides = [1, 1]} : vector<8x512xf32> to vector<8x128xf32>
    %53 = arith.negf %52 : vector<8x128xf32>
    %54 = math.exp %53 : vector<8x128xf32>
    %cst_24 = arith.constant 1.000000e+00 : f32
    %55 = vector.broadcast %cst_24 : f32 to vector<8x128xf32>
    %56 = arith.addf %55, %54 : vector<8x128xf32>
    %57 = arith.divf %55, %56 : vector<8x128xf32>
    %58 = vector.extract_strided_slice %51 {offsets = [0, 128], sizes = [8, 128], strides = [1, 1]} : vector<8x512xf32> to vector<8x128xf32>
    %59 = arith.negf %58 : vector<8x128xf32>
    %60 = math.exp %59 : vector<8x128xf32>
    %cst_25 = arith.constant 1.000000e+00 : f32
    %61 = vector.broadcast %cst_25 : f32 to vector<8x128xf32>
    %62 = arith.addf %61, %60 : vector<8x128xf32>
    %63 = arith.divf %61, %62 : vector<8x128xf32>
    %64 = vector.extract_strided_slice %51 {offsets = [0, 256], sizes = [8, 128], strides = [1, 1]} : vector<8x512xf32> to vector<8x128xf32>
    %65 = math.tanh %64 : vector<8x128xf32>
    %66 = vector.extract_strided_slice %51 {offsets = [0, 384], sizes = [8, 128], strides = [1, 1]} : vector<8x512xf32> to vector<8x128xf32>
    %67 = arith.negf %66 : vector<8x128xf32>
    %68 = math.exp %67 : vector<8x128xf32>
    %cst_26 = arith.constant 1.000000e+00 : f32
    %69 = vector.broadcast %cst_26 : f32 to vector<8x128xf32>
    %70 = arith.addf %69, %68 : vector<8x128xf32>
    %71 = arith.divf %69, %70 : vector<8x128xf32>
    %72 = arith.mulf %63, %41 : vector<8x128xf32>
    %73 = arith.mulf %57, %65 : vector<8x128xf32>
    %74 = arith.addf %72, %73 : vector<8x128xf32>
    %75 = math.tanh %74 : vector<8x128xf32>
    %76 = arith.mulf %71, %75 : vector<8x128xf32>
    %77 = arith.index_cast %47 : i32 to index
    %c0_27 = arith.constant 0 : index
    %78 = vector.load %arg5[%77, %c0_27] : memref<64x128xf32, #tpu.memory_space<vmem>>, vector<8x128xf32>
    tpu.vector_store %arg5[%77, %c0_27], %76 {strides = array<i32>} : memref<64x128xf32, #tpu.memory_space<vmem>>, vector<8x128xf32>,
    %c2_i32 = arith.constant 2 : i32
    %c8_i32_28 = arith.constant 8 : i32
    %79 = arith.muli %c2_i32, %c8_i32_28 : i32
    %80 = tpu.assume_multiple %79, 8 : i32
    %81 = arith.index_cast %80 : i32 to index
    %c0_29 = arith.constant 0 : index
    %82 = vector.load %arg10[%81, %c0_29] : memref<64x512xf32, #tpu.memory_space<vmem>>, vector<8x512xf32>
    %cst_30 = arith.constant dense<0.000000e+00> : vector<8x512xf32>
    %83 = tpu.matmul %76, %10, %cst_30 {dimension_numbers = #tpu.dot_dimension_numbers<[1], [0], [0], [1], [0, 0, 1, 1], [], []>} : vector<8x128xf32>, vector<128x512xf32>, vector<8x512xf32> -> vector<8x512xf32>
    %84 = arith.addf %82, %83 : vector<8x512xf32>
    %85 = vector.extract_strided_slice %84 {offsets = [0, 0], sizes = [8, 128], strides = [1, 1]} : vector<8x512xf32> to vector<8x128xf32>
    %86 = arith.negf %85 : vector<8x128xf32>
    %87 = math.exp %86 : vector<8x128xf32>
    %cst_31 = arith.constant 1.000000e+00 : f32
    %88 = vector.broadcast %cst_31 : f32 to vector<8x128xf32>
    %89 = arith.addf %88, %87 : vector<8x128xf32>
    %90 = arith.divf %88, %89 : vector<8x128xf32>
    %91 = vector.extract_strided_slice %84 {offsets = [0, 128], sizes = [8, 128], strides = [1, 1]} : vector<8x512xf32> to vector<8x128xf32>
    %92 = arith.negf %91 : vector<8x128xf32>
    %93 = math.exp %92 : vector<8x128xf32>
    %cst_32 = arith.constant 1.000000e+00 : f32
    %94 = vector.broadcast %cst_32 : f32 to vector<8x128xf32>
    %95 = arith.addf %94, %93 : vector<8x128xf32>
    %96 = arith.divf %94, %95 : vector<8x128xf32>
    %97 = vector.extract_strided_slice %84 {offsets = [0, 256], sizes = [8, 128], strides = [1, 1]} : vector<8x512xf32> to vector<8x128xf32>
    %98 = math.tanh %97 : vector<8x128xf32>
    %99 = vector.extract_strided_slice %84 {offsets = [0, 384], sizes = [8, 128], strides = [1, 1]} : vector<8x512xf32> to vector<8x128xf32>
    %100 = arith.negf %99 : vector<8x128xf32>
    %101 = math.exp %100 : vector<8x128xf32>
    %cst_33 = arith.constant 1.000000e+00 : f32
    %102 = vector.broadcast %cst_33 : f32 to vector<8x128xf32>
    %103 = arith.addf %102, %101 : vector<8x128xf32>
    %104 = arith.divf %102, %103 : vector<8x128xf32>
    %105 = arith.mulf %96, %74 : vector<8x128xf32>
    %106 = arith.mulf %90, %98 : vector<8x128xf32>
    %107 = arith.addf %105, %106 : vector<8x128xf32>
    %108 = math.tanh %107 : vector<8x128xf32>
    %109 = arith.mulf %104, %108 : vector<8x128xf32>
    %110 = arith.index_cast %80 : i32 to index
    %c0_34 = arith.constant 0 : index
    %111 = vector.load %arg5[%110, %c0_34] : memref<64x128xf32, #tpu.memory_space<vmem>>, vector<8x128xf32>
    tpu.vector_store %arg5[%110, %c0_34], %109 {strides = array<i32>} : memref<64x128xf32, #tpu.memory_space<vmem>>, vector<8x128xf32>,
    %c3_i32 = arith.constant 3 : i32
    %c8_i32_35 = arith.constant 8 : i32
    %112 = arith.muli %c3_i32, %c8_i32_35 : i32
    %113 = tpu.assume_multiple %112, 8 : i32
    %114 = arith.index_cast %113 : i32 to index
    %c0_36 = arith.constant 0 : index
    %115 = vector.load %arg10[%114, %c0_36] : memref<64x512xf32, #tpu.memory_space<vmem>>, vector<8x512xf32>
    %cst_37 = arith.constant dense<0.000000e+00> : vector<8x512xf32>
    %116 = tpu.matmul %109, %10, %cst_37 {dimension_numbers = #tpu.dot_dimension_numbers<[1], [0], [0], [1], [0, 0, 1, 1], [], []>} : vector<8x128xf32>, vector<128x512xf32>, vector<8x512xf32> -> vector<8x512xf32>
    %117 = arith.addf %115, %116 : vector<8x512xf32>
    %118 = vector.extract_strided_slice %117 {offsets = [0, 0], sizes = [8, 128], strides = [1, 1]} : vector<8x512xf32> to vector<8x128xf32>
    %119 = arith.negf %118 : vector<8x128xf32>
    %120 = math.exp %119 : vector<8x128xf32>
    %cst_38 = arith.constant 1.000000e+00 : f32
    %121 = vector.broadcast %cst_38 : f32 to vector<8x128xf32>
    %122 = arith.addf %121, %120 : vector<8x128xf32>
    %123 = arith.divf %121, %122 : vector<8x128xf32>
    %124 = vector.extract_strided_slice %117 {offsets = [0, 128], sizes = [8, 128], strides = [1, 1]} : vector<8x512xf32> to vector<8x128xf32>
    %125 = arith.negf %124 : vector<8x128xf32>
    %126 = math.exp %125 : vector<8x128xf32>
    %cst_39 = arith.constant 1.000000e+00 : f32
    %127 = vector.broadcast %cst_39 : f32 to vector<8x128xf32>
    %128 = arith.addf %127, %126 : vector<8x128xf32>
    %129 = arith.divf %127, %128 : vector<8x128xf32>
    %130 = vector.extract_strided_slice %117 {offsets = [0, 256], sizes = [8, 128], strides = [1, 1]} : vector<8x512xf32> to vector<8x128xf32>
    %131 = math.tanh %130 : vector<8x128xf32>
    %132 = vector.extract_strided_slice %117 {offsets = [0, 384], sizes = [8, 128], strides = [1, 1]} : vector<8x512xf32> to vector<8x128xf32>
    %133 = arith.negf %132 : vector<8x128xf32>
    %134 = math.exp %133 : vector<8x128xf32>
    %cst_40 = arith.constant 1.000000e+00 : f32
    %135 = vector.broadcast %cst_40 : f32 to vector<8x128xf32>
    %136 = arith.addf %135, %134 : vector<8x128xf32>
    %137 = arith.divf %135, %136 : vector<8x128xf32>
    %138 = arith.mulf %129, %107 : vector<8x128xf32>
    %139 = arith.mulf %123, %131 : vector<8x128xf32>
    %140 = arith.addf %138, %139 : vector<8x128xf32>
    %141 = math.tanh %140 : vector<8x128xf32>
    %142 = arith.mulf %137, %141 : vector<8x128xf32>
    %143 = arith.index_cast %113 : i32 to index
    %c0_41 = arith.constant 0 : index
    %144 = vector.load %arg5[%143, %c0_41] : memref<64x128xf32, #tpu.memory_space<vmem>>, vector<8x128xf32>
    tpu.vector_store %arg5[%143, %c0_41], %142 {strides = array<i32>} : memref<64x128xf32, #tpu.memory_space<vmem>>, vector<8x128xf32>,
    %c4_i32 = arith.constant 4 : i32
    %c8_i32_42 = arith.constant 8 : i32
    %145 = arith.muli %c4_i32, %c8_i32_42 : i32
    %146 = tpu.assume_multiple %145, 8 : i32
    %147 = arith.index_cast %146 : i32 to index
    %c0_43 = arith.constant 0 : index
    %148 = vector.load %arg10[%147, %c0_43] : memref<64x512xf32, #tpu.memory_space<vmem>>, vector<8x512xf32>
    %cst_44 = arith.constant dense<0.000000e+00> : vector<8x512xf32>
    %149 = tpu.matmul %142, %10, %cst_44 {dimension_numbers = #tpu.dot_dimension_numbers<[1], [0], [0], [1], [0, 0, 1, 1], [], []>} : vector<8x128xf32>, vector<128x512xf32>, vector<8x512xf32> -> vector<8x512xf32>
    %150 = arith.addf %148, %149 : vector<8x512xf32>
    %151 = vector.extract_strided_slice %150 {offsets = [0, 0], sizes = [8, 128], strides = [1, 1]} : vector<8x512xf32> to vector<8x128xf32>
    %152 = arith.negf %151 : vector<8x128xf32>
    %153 = math.exp %152 : vector<8x128xf32>
    %cst_45 = arith.constant 1.000000e+00 : f32
    %154 = vector.broadcast %cst_45 : f32 to vector<8x128xf32>
    %155 = arith.addf %154, %153 : vector<8x128xf32>
    %156 = arith.divf %154, %155 : vector<8x128xf32>
    %157 = vector.extract_strided_slice %150 {offsets = [0, 128], sizes = [8, 128], strides = [1, 1]} : vector<8x512xf32> to vector<8x128xf32>
    %158 = arith.negf %157 : vector<8x128xf32>
    %159 = math.exp %158 : vector<8x128xf32>
    %cst_46 = arith.constant 1.000000e+00 : f32
    %160 = vector.broadcast %cst_46 : f32 to vector<8x128xf32>
    %161 = arith.addf %160, %159 : vector<8x128xf32>
    %162 = arith.divf %160, %161 : vector<8x128xf32>
    %163 = vector.extract_strided_slice %150 {offsets = [0, 256], sizes = [8, 128], strides = [1, 1]} : vector<8x512xf32> to vector<8x128xf32>
    %164 = math.tanh %163 : vector<8x128xf32>
    %165 = vector.extract_strided_slice %150 {offsets = [0, 384], sizes = [8, 128], strides = [1, 1]} : vector<8x512xf32> to vector<8x128xf32>
    %166 = arith.negf %165 : vector<8x128xf32>
    %167 = math.exp %166 : vector<8x128xf32>
    %cst_47 = arith.constant 1.000000e+00 : f32
    %168 = vector.broadcast %cst_47 : f32 to vector<8x128xf32>
    %169 = arith.addf %168, %167 : vector<8x128xf32>
    %170 = arith.divf %168, %169 : vector<8x128xf32>
    %171 = arith.mulf %162, %140 : vector<8x128xf32>
    %172 = arith.mulf %156, %164 : vector<8x128xf32>
    %173 = arith.addf %171, %172 : vector<8x128xf32>
    %174 = math.tanh %173 : vector<8x128xf32>
    %175 = arith.mulf %170, %174 : vector<8x128xf32>
    %176 = arith.index_cast %146 : i32 to index
    %c0_48 = arith.constant 0 : index
    %177 = vector.load %arg5[%176, %c0_48] : memref<64x128xf32, #tpu.memory_space<vmem>>, vector<8x128xf32>
    tpu.vector_store %arg5[%176, %c0_48], %175 {strides = array<i32>} : memref<64x128xf32, #tpu.memory_space<vmem>>, vector<8x128xf32>,
    %c5_i32 = arith.constant 5 : i32
    %c8_i32_49 = arith.constant 8 : i32
    %178 = arith.muli %c5_i32, %c8_i32_49 : i32
    %179 = tpu.assume_multiple %178, 8 : i32
    %180 = arith.index_cast %179 : i32 to index
    %c0_50 = arith.constant 0 : index
    %181 = vector.load %arg10[%180, %c0_50] : memref<64x512xf32, #tpu.memory_space<vmem>>, vector<8x512xf32>
    %cst_51 = arith.constant dense<0.000000e+00> : vector<8x512xf32>
    %182 = tpu.matmul %175, %10, %cst_51 {dimension_numbers = #tpu.dot_dimension_numbers<[1], [0], [0], [1], [0, 0, 1, 1], [], []>} : vector<8x128xf32>, vector<128x512xf32>, vector<8x512xf32> -> vector<8x512xf32>
    %183 = arith.addf %181, %182 : vector<8x512xf32>
    %184 = vector.extract_strided_slice %183 {offsets = [0, 0], sizes = [8, 128], strides = [1, 1]} : vector<8x512xf32> to vector<8x128xf32>
    %185 = arith.negf %184 : vector<8x128xf32>
    %186 = math.exp %185 : vector<8x128xf32>
    %cst_52 = arith.constant 1.000000e+00 : f32
    %187 = vector.broadcast %cst_52 : f32 to vector<8x128xf32>
    %188 = arith.addf %187, %186 : vector<8x128xf32>
    %189 = arith.divf %187, %188 : vector<8x128xf32>
    %190 = vector.extract_strided_slice %183 {offsets = [0, 128], sizes = [8, 128], strides = [1, 1]} : vector<8x512xf32> to vector<8x128xf32>
    %191 = arith.negf %190 : vector<8x128xf32>
    %192 = math.exp %191 : vector<8x128xf32>
    %cst_53 = arith.constant 1.000000e+00 : f32
    %193 = vector.broadcast %cst_53 : f32 to vector<8x128xf32>
    %194 = arith.addf %193, %192 : vector<8x128xf32>
    %195 = arith.divf %193, %194 : vector<8x128xf32>
    %196 = vector.extract_strided_slice %183 {offsets = [0, 256], sizes = [8, 128], strides = [1, 1]} : vector<8x512xf32> to vector<8x128xf32>
    %197 = math.tanh %196 : vector<8x128xf32>
    %198 = vector.extract_strided_slice %183 {offsets = [0, 384], sizes = [8, 128], strides = [1, 1]} : vector<8x512xf32> to vector<8x128xf32>
    %199 = arith.negf %198 : vector<8x128xf32>
    %200 = math.exp %199 : vector<8x128xf32>
    %cst_54 = arith.constant 1.000000e+00 : f32
    %201 = vector.broadcast %cst_54 : f32 to vector<8x128xf32>
    %202 = arith.addf %201, %200 : vector<8x128xf32>
    %203 = arith.divf %201, %202 : vector<8x128xf32>
    %204 = arith.mulf %195, %173 : vector<8x128xf32>
    %205 = arith.mulf %189, %197 : vector<8x128xf32>
    %206 = arith.addf %204, %205 : vector<8x128xf32>
    %207 = math.tanh %206 : vector<8x128xf32>
    %208 = arith.mulf %203, %207 : vector<8x128xf32>
    %209 = arith.index_cast %179 : i32 to index
    %c0_55 = arith.constant 0 : index
    %210 = vector.load %arg5[%209, %c0_55] : memref<64x128xf32, #tpu.memory_space<vmem>>, vector<8x128xf32>
    tpu.vector_store %arg5[%209, %c0_55], %208 {strides = array<i32>} : memref<64x128xf32, #tpu.memory_space<vmem>>, vector<8x128xf32>,
    %c6_i32 = arith.constant 6 : i32
    %c8_i32_56 = arith.constant 8 : i32
    %211 = arith.muli %c6_i32, %c8_i32_56 : i32
    %212 = tpu.assume_multiple %211, 8 : i32
    %213 = arith.index_cast %212 : i32 to index
    %c0_57 = arith.constant 0 : index
    %214 = vector.load %arg10[%213, %c0_57] : memref<64x512xf32, #tpu.memory_space<vmem>>, vector<8x512xf32>
    %cst_58 = arith.constant dense<0.000000e+00> : vector<8x512xf32>
    %215 = tpu.matmul %208, %10, %cst_58 {dimension_numbers = #tpu.dot_dimension_numbers<[1], [0], [0], [1], [0, 0, 1, 1], [], []>} : vector<8x128xf32>, vector<128x512xf32>, vector<8x512xf32> -> vector<8x512xf32>
    %216 = arith.addf %214, %215 : vector<8x512xf32>
    %217 = vector.extract_strided_slice %216 {offsets = [0, 0], sizes = [8, 128], strides = [1, 1]} : vector<8x512xf32> to vector<8x128xf32>
    %218 = arith.negf %217 : vector<8x128xf32>
    %219 = math.exp %218 : vector<8x128xf32>
    %cst_59 = arith.constant 1.000000e+00 : f32
    %220 = vector.broadcast %cst_59 : f32 to vector<8x128xf32>
    %221 = arith.addf %220, %219 : vector<8x128xf32>
    %222 = arith.divf %220, %221 : vector<8x128xf32>
    %223 = vector.extract_strided_slice %216 {offsets = [0, 128], sizes = [8, 128], strides = [1, 1]} : vector<8x512xf32> to vector<8x128xf32>
    %224 = arith.negf %223 : vector<8x128xf32>
    %225 = math.exp %224 : vector<8x128xf32>
    %cst_60 = arith.constant 1.000000e+00 : f32
    %226 = vector.broadcast %cst_60 : f32 to vector<8x128xf32>
    %227 = arith.addf %226, %225 : vector<8x128xf32>
    %228 = arith.divf %226, %227 : vector<8x128xf32>
    %229 = vector.extract_strided_slice %216 {offsets = [0, 256], sizes = [8, 128], strides = [1, 1]} : vector<8x512xf32> to vector<8x128xf32>
    %230 = math.tanh %229 : vector<8x128xf32>
    %231 = vector.extract_strided_slice %216 {offsets = [0, 384], sizes = [8, 128], strides = [1, 1]} : vector<8x512xf32> to vector<8x128xf32>
    %232 = arith.negf %231 : vector<8x128xf32>
    %233 = math.exp %232 : vector<8x128xf32>
    %cst_61 = arith.constant 1.000000e+00 : f32
    %234 = vector.broadcast %cst_61 : f32 to vector<8x128xf32>
    %235 = arith.addf %234, %233 : vector<8x128xf32>
    %236 = arith.divf %234, %235 : vector<8x128xf32>
    %237 = arith.mulf %228, %206 : vector<8x128xf32>
    %238 = arith.mulf %222, %230 : vector<8x128xf32>
    %239 = arith.addf %237, %238 : vector<8x128xf32>
    %240 = math.tanh %239 : vector<8x128xf32>
    %241 = arith.mulf %236, %240 : vector<8x128xf32>
    %242 = arith.index_cast %212 : i32 to index
    %c0_62 = arith.constant 0 : index
    %243 = vector.load %arg5[%242, %c0_62] : memref<64x128xf32, #tpu.memory_space<vmem>>, vector<8x128xf32>
    tpu.vector_store %arg5[%242, %c0_62], %241 {strides = array<i32>} : memref<64x128xf32, #tpu.memory_space<vmem>>, vector<8x128xf32>,
    %c7_i32 = arith.constant 7 : i32
    %c8_i32_63 = arith.constant 8 : i32
    %244 = arith.muli %c7_i32, %c8_i32_63 : i32
    %245 = tpu.assume_multiple %244, 8 : i32
    %246 = arith.index_cast %245 : i32 to index
    %c0_64 = arith.constant 0 : index
    %247 = vector.load %arg10[%246, %c0_64] : memref<64x512xf32, #tpu.memory_space<vmem>>, vector<8x512xf32>
    %cst_65 = arith.constant dense<0.000000e+00> : vector<8x512xf32>
    %248 = tpu.matmul %241, %10, %cst_65 {dimension_numbers = #tpu.dot_dimension_numbers<[1], [0], [0], [1], [0, 0, 1, 1], [], []>} : vector<8x128xf32>, vector<128x512xf32>, vector<8x512xf32> -> vector<8x512xf32>
    %249 = arith.addf %247, %248 : vector<8x512xf32>
    %250 = vector.extract_strided_slice %249 {offsets = [0, 0], sizes = [8, 128], strides = [1, 1]} : vector<8x512xf32> to vector<8x128xf32>
    %251 = arith.negf %250 : vector<8x128xf32>
    %252 = math.exp %251 : vector<8x128xf32>
    %cst_66 = arith.constant 1.000000e+00 : f32
    %253 = vector.broadcast %cst_66 : f32 to vector<8x128xf32>
    %254 = arith.addf %253, %252 : vector<8x128xf32>
    %255 = arith.divf %253, %254 : vector<8x128xf32>
    %256 = vector.extract_strided_slice %249 {offsets = [0, 128], sizes = [8, 128], strides = [1, 1]} : vector<8x512xf32> to vector<8x128xf32>
    %257 = arith.negf %256 : vector<8x128xf32>
    %258 = math.exp %257 : vector<8x128xf32>
    %cst_67 = arith.constant 1.000000e+00 : f32
    %259 = vector.broadcast %cst_67 : f32 to vector<8x128xf32>
    %260 = arith.addf %259, %258 : vector<8x128xf32>
    %261 = arith.divf %259, %260 : vector<8x128xf32>
    %262 = vector.extract_strided_slice %249 {offsets = [0, 256], sizes = [8, 128], strides = [1, 1]} : vector<8x512xf32> to vector<8x128xf32>
    %263 = math.tanh %262 : vector<8x128xf32>
    %264 = vector.extract_strided_slice %249 {offsets = [0, 384], sizes = [8, 128], strides = [1, 1]} : vector<8x512xf32> to vector<8x128xf32>
    %265 = arith.negf %264 : vector<8x128xf32>
    %266 = math.exp %265 : vector<8x128xf32>
    %cst_68 = arith.constant 1.000000e+00 : f32
    %267 = vector.broadcast %cst_68 : f32 to vector<8x128xf32>
    %268 = arith.addf %267, %266 : vector<8x128xf32>
    %269 = arith.divf %267, %268 : vector<8x128xf32>
    %270 = arith.mulf %261, %239 : vector<8x128xf32>
    %271 = arith.mulf %255, %263 : vector<8x128xf32>
    %272 = arith.addf %270, %271 : vector<8x128xf32>
    %273 = math.tanh %272 : vector<8x128xf32>
    %274 = arith.mulf %269, %273 : vector<8x128xf32>
    %275 = arith.index_cast %245 : i32 to index
    %c0_69 = arith.constant 0 : index
    %276 = vector.load %arg5[%275, %c0_69] : memref<64x128xf32, #tpu.memory_space<vmem>>, vector<8x128xf32>
    tpu.vector_store %arg5[%275, %c0_69], %274 {strides = array<i32>} : memref<64x128xf32, #tpu.memory_space<vmem>>, vector<8x128xf32>,
    %c8_i32_70 = arith.constant 8 : i32
    %c0_71 = arith.constant 0 : index
    %c0_72 = arith.constant 0 : index
    %277 = vector.load %arg6[%c0_71, %c0_72] : memref<8x128xf32, #tpu.memory_space<vmem>>, vector<8x128xf32>
    tpu.vector_store %arg6[%c0_71, %c0_72], %274 {strides = array<i32>} : memref<8x128xf32, #tpu.memory_space<vmem>>, vector<8x128xf32>,
    %c0_73 = arith.constant 0 : index
    %c0_74 = arith.constant 0 : index
    %278 = vector.load %arg7[%c0_73, %c0_74] : memref<8x128xf32, #tpu.memory_space<vmem>>, vector<8x128xf32>
    tpu.vector_store %arg7[%c0_73, %c0_74], %272 {strides = array<i32>} : memref<8x128xf32, #tpu.memory_space<vmem>>, vector<8x128xf32>,
    return
  }
  func.func @transform_0(%arg0: i32) -> (i32, i32) {
    %c0_i32 = arith.constant 0 : i32
    %c0_i32_0 = arith.constant 0 : i32
    return %arg0, %c0_i32 : i32, i32
  }
  func.func @transform_3(%arg0: i32) -> (i32, i32) {
    %c0_i32 = arith.constant 0 : i32
    %c0_i32_0 = arith.constant 0 : i32
    %c0_i32_1 = arith.constant 0 : i32
    return %c0_i32, %c0_i32_0 : i32, i32
  }
  func.func @transform_4(%arg0: i32) -> (i32, i32) {
    %c0_i32 = arith.constant 0 : i32
    %c0_i32_0 = arith.constant 0 : i32
    return %arg0, %c0_i32 : i32, i32
  }
  func.func @transform_5(%arg0: i32) -> (i32, i32) {
    %c0_i32 = arith.constant 0 : i32
    %c0_i32_0 = arith.constant 0 : i32
    %c0_i32_1 = arith.constant 0 : i32
    return %c0_i32, %c0_i32_0 : i32, i32
  }
  func.func @transform_6(%arg0: i32) -> (i32, i32) {
    %c0_i32 = arith.constant 0 : i32
    %c0_i32_0 = arith.constant 0 : i32
    %c0_i32_1 = arith.constant 0 : i32
    return %c0_i32, %c0_i32_0 : i32, i32
  }
}

</mosaic_0001>

<llo_original>
// kernel: seq2seq_encoder_forward.2
$region0: #{seq2seq_encoder_forward.2}
  #allocation0 [shape = 'u32[]', space=smem, size = 0x4, offset = 0x4, fixed_abs, tag = 'smem constant byte address 0x4 - core index']
  #allocation1 [shape = 'u32[144,128]{1,0:T(1,128)}', space=vmem, size = 0x12000, scoped, tag = 'internal scratch']
  #allocation2 [shape = 'f32[16,512]{1,0:T(8,128)}', space=vmem, size = 0x8000, scoped, tag = 'scratch operand']
  #allocation3 [shape = 'f32[128,512]{1,0:T(8,128)}', space=vmem, size = 0x40000, scoped, tag = 'scratch operand']
  #allocation4 [shape = 'f32[64,512]{1,0:T(8,128)}', space=vmem, size = 0x20000, scoped, tag = 'scratch operand']
  #allocation5 [shape = 's32[2]{0}', space=sflag, size = 0x8, scoped, tag = 'scratch operand']
  #allocation6 [shape = 's32[]', space=sflag, size = 0x4, offset = 0, fixed_abs, tag = 'sflag constant byte address 0x0 - dummy sync flag']
  #allocation7 [shape = 's32[]', space=sflag, size = 0x4, offset = 0, fixed_abs, tag = 'sflag constant byte address 0x0 - dummy sync flag']
  %s0 = inlined_call_operand.vmem [shape: f32[64,16], index: 0, kind: input, shape index: {}]
  %s1 = inlined_call_operand.vmem [shape: f32[16,512], index: 1, kind: input, shape index: {}]
  %s2 = inlined_call_operand.vmem [shape: f32[128,512], index: 2, kind: input, shape index: {}]
  %s3 = inlined_call_operand.vmem [shape: f32[1,512], index: 3, kind: input, shape index: {}]
  %s4 = inlined_call_operand.vmem [shape: f32[64,128], index: 4, kind: output, shape index: {0}]
  %s5 = inlined_call_operand.vmem [shape: f32[8,128], index: 5, kind: output, shape index: {1}]
  %s6 = inlined_call_operand.vmem [shape: f32[8,128], index: 6, kind: output, shape index: {2}]
  %7 = xla_tuple %s4, %s5, %s6
  %s8 = sld [smem:[#allocation0]]
  $region106: #{seq2seq_encoder_forward.2} parent=0
    _
  %s10 = ssub.s32 1, %s8
  %s11 = scalar_select 0, %s10, %s8
  // Predicated region
  $region2: #{seq2seq_encoder_forward.2} parent=0 // pred_check
    _
  $region3: #{seq2seq_encoder_forward.2} parent=0 // pred_check_branch
    %13 = sbr.rel (0) target = $region5
  $region4: #{seq2seq_encoder_forward.2} parent=0 // pred_region
    _
  $region5: #{seq2seq_encoder_forward.2} parent=0 // pred_fallthru
    _
  // Predicated region
  $region6: #{seq2seq_encoder_forward.2} parent=0 // pred_check
    _
  $region7: #{seq2seq_encoder_forward.2} parent=0 // pred_check_branch
    %15 = sbr.rel (0) target = $region9
  $region8: #{seq2seq_encoder_forward.2} parent=0 // pred_region
    _
  $region9: #{seq2seq_encoder_forward.2} parent=0 // pred_fallthru
    _
  %p16 = scmp.eq.s32.totalorder 0, 0
  // Predicated region
  $region10: #{seq2seq_encoder_forward.2} parent=0 // pred_check
    %p17 = pneg %p16
  $region11: #{seq2seq_encoder_forward.2} parent=0 // pred_check_branch
    %19 = sbr.rel (%p17) target = $region13
  $region12: #{seq2seq_encoder_forward.2} parent=0 // pred_region
    %20 = vst [vmem:[%s5] sm:$0xff] 0.0
    %21 = vst [vmem:[%s6] sm:$0xff] 0.0
    %p23 = scmp.lt.u32.totalorder 64, 8
    %p24 = pneg %p23
    // Predicated region
    $region14: #{seq2seq_encoder_forward.2} parent=12 // pred_check
      _
    $region15: #{seq2seq_encoder_forward.2} parent=12 // pred_check_branch
      %26 = sbr.rel (%p23) target = $region17
    $region16: #{seq2seq_encoder_forward.2} parent=12 // pred_region
      %s41 = sand.u32 64, 7
      %p42 = scmp.eq.s32.totalorder %s41, 0
      // Predicated region
      $region29: #{seq2seq_encoder_forward.2} parent=16 // pred_check
        %p43 = pneg %p42
      $region30: #{seq2seq_encoder_forward.2} parent=16 // pred_check_branch
        %45 = sbr.rel (%p43) target = $region32
      $region31: #{seq2seq_encoder_forward.2} parent=16 // pred_region
        loop: start=0, step=1, limit=1
        $region33: #{seq2seq_encoder_forward.2} parent=31 // loop_pre_header
          _
        $region34: #{seq2seq_encoder_forward.2} parent=31 // loop_header
          %s47 = sphi 0, %s51
          %p48 = scmp.ge.s32.totalorder %s47, 1
          %s52 = sphi %s1, %s1
          %s53 = sphi [#allocation2], [#allocation2]
        $region35: #{seq2seq_encoder_forward.2} parent=31 // loop_header_branch
          %50 = sbr.rel (%p48) target = $region39
        $region36: #{seq2seq_encoder_forward.2} parent=31 // loop_body
          %v54 = vld [vmem:[%s52] sm:$0xff]
          %55 = vst [vmem:[%s53] sm:$0xff] %v54
          %v56 = vld [vmem:[%s52 + $0x8] sm:$0xff]
          %57 = vst [vmem:[%s53 + $0x8] sm:$0xff] %v56
          %v58 = vld [vmem:[%s52 + $0x10] sm:$0xff]
          %59 = vst [vmem:[%s53 + $0x10] sm:$0xff] %v58
          %v60 = vld [vmem:[%s52 + $0x18] sm:$0xff]
          %61 = vst [vmem:[%s53 + $0x18] sm:$0xff] %v60
          %v62 = vld [vmem:[%s52 + $0x20] sm:$0xff]
          %63 = vst [vmem:[%s53 + $0x20] sm:$0xff] %v62
          %v64 = vld [vmem:[%s52 + $0x28] sm:$0xff]
          %65 = vst [vmem:[%s53 + $0x28] sm:$0xff] %v64
          %v66 = vld [vmem:[%s52 + $0x30] sm:$0xff]
          %67 = vst [vmem:[%s53 + $0x30] sm:$0xff] %v66
          %v68 = vld [vmem:[%s52 + $0x38] sm:$0xff]
          %69 = vst [vmem:[%s53 + $0x38] sm:$0xff] %v68
        $region37: #{seq2seq_encoder_forward.2} parent=31 // loop_footer
          %s51 = sadd.s32 1, %s47
        $region38: #{seq2seq_encoder_forward.2} parent=31 // loop_footer_branch
          %46 = sbr.rel target = $region34
        $region39: #{seq2seq_encoder_forward.2} parent=31 // loop_exit
          _
      $region32: #{seq2seq_encoder_forward.2} parent=16 // pred_fallthru
        _
      %p70 = pneg %p42
      // Predicated region
      $region40: #{seq2seq_encoder_forward.2} parent=16 // pred_check
        _
      $region41: #{seq2seq_encoder_forward.2} parent=16 // pred_check_branch
        %72 = sbr.rel (%p42) target = $region43
      $region42: #{seq2seq_encoder_forward.2} parent=16 // pred_region
        %s73 = sand.u32 64, 7
      $region43: #{seq2seq_encoder_forward.2} parent=16 // pred_fallthru
        _
    $region17: #{seq2seq_encoder_forward.2} parent=12 // pred_fallthru
      _
    // Predicated region
    $region18: #{seq2seq_encoder_forward.2} parent=12 // pred_check
      %p27 = pneg %p23
    $region19: #{seq2seq_encoder_forward.2} parent=12 // pred_check_branch
      %29 = sbr.rel (%p27) target = $region21
    $region20: #{seq2seq_encoder_forward.2} parent=12 // pred_region
      %s30 = sshllo.u32 0, 64
      loop: start=0, step=1, limit=1
      $region22: #{seq2seq_encoder_forward.2} parent=20 // loop_pre_header
        _
      $region23: #{seq2seq_encoder_forward.2} parent=20 // loop_header
        %s32 = sphi 0, %s36
        %p33 = scmp.ge.s32.totalorder %s32, 1
        %s37 = sphi %s1, %s1
        %s38 = sphi [#allocation2], [#allocation2]
      $region24: #{seq2seq_encoder_forward.2} parent=20 // loop_header_branch
        %35 = sbr.rel (%p33) target = $region28
      $region25: #{seq2seq_encoder_forward.2} parent=20 // loop_body
        %v39 = vld [vmem:[%s37] sm:%s30]
        %40 = vst [vmem:[%s38] sm:%s30] %v39
      $region26: #{seq2seq_encoder_forward.2} parent=20 // loop_footer
        %s36 = sadd.s32 1, %s32
      $region27: #{seq2seq_encoder_forward.2} parent=20 // loop_footer_branch
        %31 = sbr.rel target = $region23
      $region28: #{seq2seq_encoder_forward.2} parent=20 // loop_exit
        _
    $region21: #{seq2seq_encoder_forward.2} parent=12 // pred_fallthru
      _
    // Predicated region
    $region44: #{seq2seq_encoder_forward.2} parent=12 // pred_check
      _
    $region45: #{seq2seq_encoder_forward.2} parent=12 // pred_check_branch
      %76 = sbr.rel (0) target = $region47
    $region46: #{seq2seq_encoder_forward.2} parent=12 // pred_region
      %77 = vsyncadd [#allocation5], 1024
    $region47: #{seq2seq_encoder_forward.2} parent=12 // pred_fallthru
      _
    %s78 = scalar_lea.sflag [#allocation5], 1
    %p80 = scmp.lt.u32.totalorder 512, 8
    %p81 = pneg %p80
    // Predicated region
    $region48: #{seq2seq_encoder_forward.2} parent=12 // pred_check
      _
    $region49: #{seq2seq_encoder_forward.2} parent=12 // pred_check_branch
      %83 = sbr.rel (%p80) target = $region51
    $region50: #{seq2seq_encoder_forward.2} parent=12 // pred_region
      %s98 = sand.u32 512, 7
      %p99 = scmp.eq.s32.totalorder %s98, 0
      // Predicated region
      $region63: #{seq2seq_encoder_forward.2} parent=50 // pred_check
        %p100 = pneg %p99
      $region64: #{seq2seq_encoder_forward.2} parent=50 // pred_check_branch
        %102 = sbr.rel (%p100) target = $region66
      $region65: #{seq2seq_encoder_forward.2} parent=50 // pred_region
        loop: start=0, step=1, limit=1
        $region67: #{seq2seq_encoder_forward.2} parent=65 // loop_pre_header
          _
        $region68: #{seq2seq_encoder_forward.2} parent=65 // loop_header
          %s104 = sphi 0, %s108
          %p105 = scmp.ge.s32.totalorder %s104, 1
          %s109 = sphi %s2, %s2
          %s110 = sphi [#allocation3], [#allocation3]
        $region69: #{seq2seq_encoder_forward.2} parent=65 // loop_header_branch
          %107 = sbr.rel (%p105) target = $region73
        $region70: #{seq2seq_encoder_forward.2} parent=65 // loop_body
          %v111 = vld [vmem:[%s109] sm:$0xff]
          %112 = vst [vmem:[%s110] sm:$0xff] %v111
          %v113 = vld [vmem:[%s109 + $0x8] sm:$0xff]
          %114 = vst [vmem:[%s110 + $0x8] sm:$0xff] %v113
          %v115 = vld [vmem:[%s109 + $0x10] sm:$0xff]
          %116 = vst [vmem:[%s110 + $0x10] sm:$0xff] %v115
          %v117 = vld [vmem:[%s109 + $0x18] sm:$0xff]
          %118 = vst [vmem:[%s110 + $0x18] sm:$0xff] %v117
          %v119 = vld [vmem:[%s109 + $0x20] sm:$0xff]
          %120 = vst [vmem:[%s110 + $0x20] sm:$0xff] %v119
          %v121 = vld [vmem:[%s109 + $0x28] sm:$0xff]
          %122 = vst [vmem:[%s110 + $0x28] sm:$0xff] %v121
          %v123 = vld [vmem:[%s109 + $0x30] sm:$0xff]
          %124 = vst [vmem:[%s110 + $0x30] sm:$0xff] %v123
          %v125 = vld [vmem:[%s109 + $0x38] sm:$0xff]
          %126 = vst [vmem:[%s110 + $0x38] sm:$0xff] %v125
          %v127 = vld [vmem:[%s109 + $0x40] sm:$0xff]
          %128 = vst [vmem:[%s110 + $0x40] sm:$0xff] %v127
          %v129 = vld [vmem:[%s109 + $0x48] sm:$0xff]
          %130 = vst [vmem:[%s110 + $0x48] sm:$0xff] %v129
          %v131 = vld [vmem:[%s109 + $0x50] sm:$0xff]
          %132 = vst [vmem:[%s110 + $0x50] sm:$0xff] %v131
          %v133 = vld [vmem:[%s109 + $0x58] sm:$0xff]
          %134 = vst [vmem:[%s110 + $0x58] sm:$0xff] %v133
          %v135 = vld [vmem:[%s109 + $0x60] sm:$0xff]
          %136 = vst [vmem:[%s110 + $0x60] sm:$0xff] %v135
          %v137 = vld [vmem:[%s109 + $0x68] sm:$0xff]
          %138 = vst [vmem:[%s110 + $0x68] sm:$0xff] %v137
          %v139 = vld [vmem:[%s109 + $0x70] sm:$0xff]
          %140 = vst [vmem:[%s110 + $0x70] sm:$0xff] %v139
          %v141 = vld [vmem:[%s109 + $0x78] sm:$0xff]
          %142 = vst [vmem:[%s110 + $0x78] sm:$0xff] %v141
          %v143 = vld [vmem:[%s109 + $0x80] sm:$0xff]
          %144 = vst [vmem:[%s110 + $0x80] sm:$0xff] %v143
          %v145 = vld [vmem:[%s109 + $0x88] sm:$0xff]
          %146 = vst [vmem:[%s110 + $0x88] sm:$0xff] %v145
          %v147 = vld [vmem:[%s109 + $0x90] sm:$0xff]
          %148 = vst [vmem:[%s110 + $0x90] sm:$0xff] %v147
          %v149 = vld [vmem:[%s109 + $0x98] sm:$0xff]
          %150 = vst [vmem:[%s110 + $0x98] sm:$0xff] %v149
          %v151 = vld [vmem:[%s109 + $0xa0] sm:$0xff]
          %152 = vst [vmem:[%s110 + $0xa0] sm:$0xff] %v151
          %v153 = vld [vmem:[%s109 + $0xa8] sm:$0xff]
          %154 = vst [vmem:[%s110 + $0xa8] sm:$0xff] %v153
          %v155 = vld [vmem:[%s109 + $0xb0] sm:$0xff]
          %156 = vst [vmem:[%s110 + $0xb0] sm:$0xff] %v155
          %v157 = vld [vmem:[%s109 + $0xb8] sm:$0xff]
          %158 = vst [vmem:[%s110 + $0xb8] sm:$0xff] %v157
          %v159 = vld [vmem:[%s109 + $0xc0] sm:$0xff]
          %160 = vst [vmem:[%s110 + $0xc0] sm:$0xff] %v159
          %v161 = vld [vmem:[%s109 + $0xc8] sm:$0xff]
          %162 = vst [vmem:[%s110 + $0xc8] sm:$0xff] %v161
          %v163 = vld [vmem:[%s109 + $0xd0] sm:$0xff]
          %164 = vst [vmem:[%s110 + $0xd0] sm:$0xff] %v163
          %v165 = vld [vmem:[%s109 + $0xd8] sm:$0xff]
          %166 = vst [vmem:[%s110 + $0xd8] sm:$0xff] %v165
          %v167 = vld [vmem:[%s109 + $0xe0] sm:$0xff]
          %168 = vst [vmem:[%s110 + $0xe0] sm:$0xff] %v167
          %v169 = vld [vmem:[%s109 + $0xe8] sm:$0xff]
          %170 = vst [vmem:[%s110 + $0xe8] sm:$0xff] %v169
          %v171 = vld [vmem:[%s109 + $0xf0] sm:$0xff]
          %172 = vst [vmem:[%s110 + $0xf0] sm:$0xff] %v171
          %v173 = vld [vmem:[%s109 + $0xf8] sm:$0xff]
          %174 = vst [vmem:[%s110 + $0xf8] sm:$0xff] %v173
          %v175 = vld [vmem:[%s109 + $0x100] sm:$0xff]
          %176 = vst [vmem:[%s110 + $0x100] sm:$0xff] %v175
          %v177 = vld [vmem:[%s109 + $0x108] sm:$0xff]
          %178 = vst [vmem:[%s110 + $0x108] sm:$0xff] %v177
          %v179 = vld [vmem:[%s109 + $0x110] sm:$0xff]
          %180 = vst [vmem:[%s110 + $0x110] sm:$0xff] %v179
          %v181 = vld [vmem:[%s109 + $0x118] sm:$0xff]
          %182 = vst [vmem:[%s110 + $0x118] sm:$0xff] %v181
          %v183 = vld [vmem:[%s109 + $0x120] sm:$0xff]
          %184 = vst [vmem:[%s110 + $0x120] sm:$0xff] %v183
          %v185 = vld [vmem:[%s109 + $0x128] sm:$0xff]
          %186 = vst [vmem:[%s110 + $0x128] sm:$0xff] %v185
          %v187 = vld [vmem:[%s109 + $0x130] sm:$0xff]
          %188 = vst [vmem:[%s110 + $0x130] sm:$0xff] %v187
          %v189 = vld [vmem:[%s109 + $0x138] sm:$0xff]
          %190 = vst [vmem:[%s110 + $0x138] sm:$0xff] %v189
          %v191 = vld [vmem:[%s109 + $0x140] sm:$0xff]
          %192 = vst [vmem:[%s110 + $0x140] sm:$0xff] %v191
          %v193 = vld [vmem:[%s109 + $0x148] sm:$0xff]
          %194 = vst [vmem:[%s110 + $0x148] sm:$0xff] %v193
          %v195 = vld [vmem:[%s109 + $0x150] sm:$0xff]
          %196 = vst [vmem:[%s110 + $0x150] sm:$0xff] %v195
          %v197 = vld [vmem:[%s109 + $0x158] sm:$0xff]
          %198 = vst [vmem:[%s110 + $0x158] sm:$0xff] %v197
          %v199 = vld [vmem:[%s109 + $0x160] sm:$0xff]
          %200 = vst [vmem:[%s110 + $0x160] sm:$0xff] %v199
          %v201 = vld [vmem:[%s109 + $0x168] sm:$0xff]
          %202 = vst [vmem:[%s110 + $0x168] sm:$0xff] %v201
          %v203 = vld [vmem:[%s109 + $0x170] sm:$0xff]
          %204 = vst [vmem:[%s110 + $0x170] sm:$0xff] %v203
          %v205 = vld [vmem:[%s109 + $0x178] sm:$0xff]
          %206 = vst [vmem:[%s110 + $0x178] sm:$0xff] %v205
          %v207 = vld [vmem:[%s109 + $0x180] sm:$0xff]
          %208 = vst [vmem:[%s110 + $0x180] sm:$0xff] %v207
          %v209 = vld [vmem:[%s109 + $0x188] sm:$0xff]
          %210 = vst [vmem:[%s110 + $0x188] sm:$0xff] %v209
          %v211 = vld [vmem:[%s109 + $0x190] sm:$0xff]
          %212 = vst [vmem:[%s110 + $0x190] sm:$0xff] %v211
          %v213 = vld [vmem:[%s109 + $0x198] sm:$0xff]
          %214 = vst [vmem:[%s110 + $0x198] sm:$0xff] %v213
          %v215 = vld [vmem:[%s109 + $0x1a0] sm:$0xff]
          %216 = vst [vmem:[%s110 + $0x1a0] sm:$0xff] %v215
          %v217 = vld [vmem:[%s109 + $0x1a8] sm:$0xff]
          %218 = vst [vmem:[%s110 + $0x1a8] sm:$0xff] %v217
          %v219 = vld [vmem:[%s109 + $0x1b0] sm:$0xff]
          %220 = vst [vmem:[%s110 + $0x1b0] sm:$0xff] %v219
          %v221 = vld [vmem:[%s109 + $0x1b8] sm:$0xff]
          %222 = vst [vmem:[%s110 + $0x1b8] sm:$0xff] %v221
          %v223 = vld [vmem:[%s109 + $0x1c0] sm:$0xff]
          %224 = vst [vmem:[%s110 + $0x1c0] sm:$0xff] %v223
          %v225 = vld [vmem:[%s109 + $0x1c8] sm:$0xff]
          %226 = vst [vmem:[%s110 + $0x1c8] sm:$0xff] %v225
          %v227 = vld [vmem:[%s109 + $0x1d0] sm:$0xff]
          %228 = vst [vmem:[%s110 + $0x1d0] sm:$0xff] %v227
          %v229 = vld [vmem:[%s109 + $0x1d8] sm:$0xff]
          %230 = vst [vmem:[%s110 + $0x1d8] sm:$0xff] %v229
          %v231 = vld [vmem:[%s109 + $0x1e0] sm:$0xff]
          %232 = vst [vmem:[%s110 + $0x1e0] sm:$0xff] %v231
          %v233 = vld [vmem:[%s109 + $0x1e8] sm:$0xff]
          %234 = vst [vmem:[%s110 + $0x1e8] sm:$0xff] %v233
          %v235 = vld [vmem:[%s109 + $0x1f0] sm:$0xff]
          %236 = vst [vmem:[%s110 + $0x1f0] sm:$0xff] %v235
          %v237 = vld [vmem:[%s109 + $0x1f8] sm:$0xff]
          %238 = vst [vmem:[%s110 + $0x1f8] sm:$0xff] %v237
        $region71: #{seq2seq_encoder_forward.2} parent=65 // loop_footer
          %s108 = sadd.s32 1, %s104
        $region72: #{seq2seq_encoder_forward.2} parent=65 // loop_footer_branch
          %103 = sbr.rel target = $region68
        $region73: #{seq2seq_encoder_forward.2} parent=65 // loop_exit
          _
      $region66: #{seq2seq_encoder_forward.2} parent=50 // pred_fallthru
        _
      %p239 = pneg %p99
      // Predicated region
      $region74: #{seq2seq_encoder_forward.2} parent=50 // pred_check
        _
      $region75: #{seq2seq_encoder_forward.2} parent=50 // pred_check_branch
        %241 = sbr.rel (%p99) target = $region77
      $region76: #{seq2seq_encoder_forward.2} parent=50 // pred_region
        %s242 = sand.u32 512, 7
      $region77: #{seq2seq_encoder_forward.2} parent=50 // pred_fallthru
        _
    $region51: #{seq2seq_encoder_forward.2} parent=12 // pred_fallthru
      _
    // Predicated region
    $region52: #{seq2seq_encoder_forward.2} parent=12 // pred_check
      %p84 = pneg %p80
    $region53: #{seq2seq_encoder_forward.2} parent=12 // pred_check_branch
      %86 = sbr.rel (%p84) target = $region55
    $region54: #{seq2seq_encoder_forward.2} parent=12 // pred_region
      %s87 = sshllo.u32 0, 512
      loop: start=0, step=1, limit=1
      $region56: #{seq2seq_encoder_forward.2} parent=54 // loop_pre_header
        _
      $region57: #{seq2seq_encoder_forward.2} parent=54 // loop_header
        %s89 = sphi 0, %s93
        %p90 = scmp.ge.s32.totalorder %s89, 1
        %s94 = sphi %s2, %s2
        %s95 = sphi [#allocation3], [#allocation3]
      $region58: #{seq2seq_encoder_forward.2} parent=54 // loop_header_branch
        %92 = sbr.rel (%p90) target = $region62
      $region59: #{seq2seq_encoder_forward.2} parent=54 // loop_body
        %v96 = vld [vmem:[%s94] sm:%s87]
        %97 = vst [vmem:[%s95] sm:%s87] %v96
      $region60: #{seq2seq_encoder_forward.2} parent=54 // loop_footer
        %s93 = sadd.s32 1, %s89
      $region61: #{seq2seq_encoder_forward.2} parent=54 // loop_footer_branch
        %88 = sbr.rel target = $region57
      $region62: #{seq2seq_encoder_forward.2} parent=54 // loop_exit
        _
    $region55: #{seq2seq_encoder_forward.2} parent=12 // pred_fallthru
      _
    // Predicated region
    $region78: #{seq2seq_encoder_forward.2} parent=12 // pred_check
      _
    $region79: #{seq2seq_encoder_forward.2} parent=12 // pred_check_branch
      %245 = sbr.rel (0) target = $region81
    $region80: #{seq2seq_encoder_forward.2} parent=12 // pred_region
      %246 = vsyncadd %s78, 8192
    $region81: #{seq2seq_encoder_forward.2} parent=12 // pred_fallthru
      _
    %s247 = smul.u32 8, 2
    %s248 = smul.u32 %s247, 4
    %s249 = sshll.u32 %s248, 4
    %250 = dma.done [#allocation5], %s249
    %s251 = smul.u32 8, 16
    %s252 = smul.u32 %s251, 4
    %s253 = sshll.u32 %s252, 4
    %254 = dma.done %s78, %s253
  $region13: #{seq2seq_encoder_forward.2} parent=0 // pred_fallthru
    _
  %v255 = vld [vmem:[%s0] sm:$0xff]
  %v256 = vld [vmem:[%s0 + $0x8] sm:$0xff]
  %v257 = vld [vmem:[%s0 + $0x10] sm:$0xff]
  %v258 = vld [vmem:[%s0 + $0x18] sm:$0xff]
  %v259 = vld [vmem:[%s0 + $0x20] sm:$0xff]
  %v260 = vld [vmem:[%s0 + $0x28] sm:$0xff]
  %v261 = vld [vmem:[%s0 + $0x30] sm:$0xff]
  %v262 = vld [vmem:[%s0 + $0x38] sm:$0xff]
  %v263 = vld [vmem:[#allocation2] sm:$0xff]
  %v264 = vld [vmem:[#allocation2 + $0x8] sm:$0xff]
  %v265 = vld [vmem:[#allocation2 + $0x10] sm:$0xff]
  %v266 = vld [vmem:[#allocation2 + $0x18] sm:$0xff]
  %v267 = vld [vmem:[#allocation2 + $0x20] sm:$0xff]
  %v268 = vld [vmem:[#allocation2 + $0x28] sm:$0xff]
  %v269 = vld [vmem:[#allocation2 + $0x30] sm:$0xff]
  %v270 = vld [vmem:[#allocation2 + $0x38] sm:$0xff]
  %v271 = vld [vmem:[%s3] sm:$0xf]
  %v273 = vlaneseq
  %v274 = vshrl.u32 %v273, 7
  %v275 = vsub.s32 0, %v274
  %v276 = vrot.slane %v271, %v275
  %v277 = vlaneseq
  %v278 = vshrl.u32 %v277, 7
  %v279 = vsub.s32 1, %v278
  %v280 = vrot.slane %v271, %v279
  %v281 = vlaneseq
  %v282 = vshrl.u32 %v281, 7
  %v283 = vsub.s32 2, %v282
  %v284 = vrot.slane %v271, %v283
  %v285 = vlaneseq
  %v286 = vshrl.u32 %v285, 7
  %v287 = vsub.s32 3, %v286
  %v288 = vrot.slane %v271, %v287
  %vm293 = vcmask 130048
  %v295 = vsel %vm293, %v255, 0
  %v298 = vsel %vm293, %v256, 0
  %v301 = vsel %vm293, %v257, 0
  %v304 = vsel %vm293, %v258, 0
  %v307 = vsel %vm293, %v259, 0
  %v310 = vsel %vm293, %v260, 0
  %v313 = vsel %vm293, %v261, 0
  %v316 = vsel %vm293, %v262, 0
  %318 = vmatprep.subr.mxu0 %v264
  %319 = vmatpush1.msra.mxu0 %v263
  %320 = vmatprep.subr.mxu0 %v268
  %321 = vmatpush1.msra.mxu0 %v267
  %322 = vmatprep.subr.mxu0 0.0
  %323 = vmatpush1.msra.mxu0 0.0
  %324 = vmatprep.subr.mxu0 0.0
  %325 = vmatpush1.msra.mxu0 0.0
  %326 = vmatprep.subr.mxu0 0.0
  %327 = vmatpush1.msra.mxu0 0.0
  %328 = vmatprep.subr.mxu0 0.0
  %329 = vmatpush1.msra.mxu0 0.0
  %330 = vmatprep.subr.mxu0 0.0
  %331 = vmatpush1.msra.mxu0 0.0
  %332 = vmatprep.subr.mxu0 0.0
  %333 = vmatpush1.msra.mxu0 0.0
  %334 = vmatprep.subr.mxu0 0.0
  %335 = vmatpush1.msra.mxu0 0.0
  %336 = vmatprep.subr.mxu0 0.0
  %337 = vmatpush1.msra.mxu0 0.0
  %338 = vmatprep.subr.mxu0 0.0
  %339 = vmatpush1.msra.mxu0 0.0
  %340 = vmatprep.subr.mxu0 0.0
  %341 = vmatpush1.msra.mxu0 0.0
  %342 = vmatprep.subr.mxu0 0.0
  %343 = vmatpush1.msra.mxu0 0.0
  %344 = vmatprep.subr.mxu0 0.0
  %345 = vmatpush1.msra.mxu0 0.0
  %346 = vmatprep.subr.mxu0 0.0
  %347 = vmatpush1.msra.mxu0 0.0
  %348 = vmatprep.subr.mxu0 0.0
  %349 = vmatpush1.msra.mxu0 0.0
  %350 = vmatprep.subr.mxu0 0.0
  %351 = vmatpush1.msra.mxu0 0.0
  %352 = vmatprep.subr.mxu0 0.0
  %353 = vmatpush1.msra.mxu0 0.0
  %354 = vmatprep.subr.mxu0 0.0
  %355 = vmatpush1.msra.mxu0 0.0
  %356 = vmatprep.subr.mxu0 0.0
  %357 = vmatpush1.msra.mxu0 0.0
  %358 = vmatprep.subr.mxu0 0.0
  %359 = vmatpush1.msra.mxu0 0.0
  %360 = vmatprep.subr.mxu0 0.0
  %361 = vmatpush1.msra.mxu0 0.0
  %362 = vmatprep.subr.mxu0 0.0
  %363 = vmatpush1.msra.mxu0 0.0
  %364 = vmatprep.subr.mxu0 0.0
  %365 = vmatpush1.msra.mxu0 0.0
  %366 = vmatprep.subr.mxu0 0.0
  %367 = vmatpush1.msra.mxu0 0.0
  %368 = vmatprep.subr.mxu0 0.0
  %369 = vmatpush1.msra.mxu0 0.0
  %370 = vmatprep.subr.mxu0 0.0
  %371 = vmatpush1.msra.mxu0 0.0
  %372 = vmatprep.subr.mxu0 0.0
  %373 = vmatpush1.msra.mxu0 0.0
  %374 = vmatprep.subr.mxu0 0.0
  %375 = vmatpush1.msra.mxu0 0.0
  %376 = vmatprep.subr.mxu0 0.0
  %377 = vmatpush1.msra.mxu0 0.0
  %378 = vmatprep.subr.mxu0 0.0
  %379 = vmatpush1.msra.mxu0 0.0
  %380 = vmatprep.subr.mxu0 0.0
  %381 = vmatpush1.msra.mxu0 0.0
  %382 = vmatprep.mubr.f32.mxu0 0.0
  %383 = vmatmul.mubr.f32.gmra.mrb[0].mxu0 %v295
  %v384 = vpop.f32.mrb[0].mxu0
  %v385 = vadd.f32 %v276, %v384
  %v386 = vpop.f32.mrb[0].mxu0
  %v387 = vadd.f32 %v280, %v386
  %388 = vmatprep.mubr.f32.mxu0 0.0
  %389 = vmatmul.mubr.f32.gmra.mrb[0].mxu0 %v298
  %v390 = vpop.f32.mrb[0].mxu0
  %v391 = vadd.f32 %v276, %v390
  %v392 = vpop.f32.mrb[0].mxu0
  %v393 = vadd.f32 %v280, %v392
  %394 = vmatprep.mubr.f32.mxu0 0.0
  %395 = vmatmul.mubr.f32.gmra.mrb[0].mxu0 %v301
  %v396 = vpop.f32.mrb[0].mxu0
  %v397 = vadd.f32 %v276, %v396
  %v398 = vpop.f32.mrb[0].mxu0
  %v399 = vadd.f32 %v280, %v398
  %400 = vmatprep.mubr.f32.mxu0 0.0
  %401 = vmatmul.mubr.f32.gmra.mrb[0].mxu0 %v304
  %v402 = vpop.f32.mrb[0].mxu0
  %v403 = vadd.f32 %v276, %v402
  %v404 = vpop.f32.mrb[0].mxu0
  %v405 = vadd.f32 %v280, %v404
  %406 = vmatprep.mubr.f32.mxu0 0.0
  %407 = vmatmul.mubr.f32.gmra.mrb[0].mxu0 %v307
  %v408 = vpop.f32.mrb[0].mxu0
  %v409 = vadd.f32 %v276, %v408
  %v410 = vpop.f32.mrb[0].mxu0
  %v411 = vadd.f32 %v280, %v410
  %412 = vmatprep.mubr.f32.mxu0 0.0
  %413 = vmatmul.mubr.f32.gmra.mrb[0].mxu0 %v310
  %v414 = vpop.f32.mrb[0].mxu0
  %v415 = vadd.f32 %v276, %v414
  %v416 = vpop.f32.mrb[0].mxu0
  %v417 = vadd.f32 %v280, %v416
  %418 = vmatprep.mubr.f32.mxu0 0.0
  %419 = vmatmul.mubr.f32.gmra.mrb[0].mxu0 %v313
  %v420 = vpop.f32.mrb[0].mxu0
  %v421 = vadd.f32 %v276, %v420
  %v422 = vpop.f32.mrb[0].mxu0
  %v423 = vadd.f32 %v280, %v422
  %424 = vmatprep.mubr.f32.mxu0 0.0
  %425 = vmatmul.mubr.f32.gmra.mrb[0].mxu0 %v316
  %v426 = vpop.f32.mrb[0].mxu0
  %v427 = vadd.f32 %v276, %v426
  %v428 = vpop.f32.mrb[0].mxu0
  %v429 = vadd.f32 %v280, %v428
  %430 = vdwg.mxu0
  %431 = vmatprep.subr.mxu0 %v266
  %432 = vmatpush1.msra.mxu0 %v265
  %433 = vmatprep.subr.mxu0 %v270
  %434 = vmatpush1.msra.mxu0 %v269
  %435 = vmatprep.subr.mxu0 0.0
  %436 = vmatpush1.msra.mxu0 0.0
  %437 = vmatprep.subr.mxu0 0.0
  %438 = vmatpush1.msra.mxu0 0.0
  %439 = vmatprep.subr.mxu0 0.0
  %440 = vmatpush1.msra.mxu0 0.0
  %441 = vmatprep.subr.mxu0 0.0
  %442 = vmatpush1.msra.mxu0 0.0
  %443 = vmatprep.subr.mxu0 0.0
  %444 = vmatpush1.msra.mxu0 0.0
  %445 = vmatprep.subr.mxu0 0.0
  %446 = vmatpush1.msra.mxu0 0.0
  %447 = vmatprep.subr.mxu0 0.0
  %448 = vmatpush1.msra.mxu0 0.0
  %449 = vmatprep.subr.mxu0 0.0
  %450 = vmatpush1.msra.mxu0 0.0
  %451 = vmatprep.subr.mxu0 0.0
  %452 = vmatpush1.msra.mxu0 0.0
  %453 = vmatprep.subr.mxu0 0.0
  %454 = vmatpush1.msra.mxu0 0.0
  %455 = vmatprep.subr.mxu0 0.0
  %456 = vmatpush1.msra.mxu0 0.0
  %457 = vmatprep.subr.mxu0 0.0
  %458 = vmatpush1.msra.mxu0 0.0
  %459 = vmatprep.subr.mxu0 0.0
  %460 = vmatpush1.msra.mxu0 0.0
  %461 = vmatprep.subr.mxu0 0.0
  %462 = vmatpush1.msra.mxu0 0.0
  %463 = vmatprep.subr.mxu0 0.0
  %464 = vmatpush1.msra.mxu0 0.0
  %465 = vmatprep.subr.mxu0 0.0
  %466 = vmatpush1.msra.mxu0 0.0
  %467 = vmatprep.subr.mxu0 0.0
  %468 = vmatpush1.msra.mxu0 0.0
  %469 = vmatprep.subr.mxu0 0.0
  %470 = vmatpush1.msra.mxu0 0.0
  %471 = vmatprep.subr.mxu0 0.0
  %472 = vmatpush1.msra.mxu0 0.0
  %473 = vmatprep.subr.mxu0 0.0
  %474 = vmatpush1.msra.mxu0 0.0
  %475 = vmatprep.subr.mxu0 0.0
  %476 = vmatpush1.msra.mxu0 0.0
  %477 = vmatprep.subr.mxu0 0.0
  %478 = vmatpush1.msra.mxu0 0.0
  %479 = vmatprep.subr.mxu0 0.0
  %480 = vmatpush1.msra.mxu0 0.0
  %481 = vmatprep.subr.mxu0 0.0
  %482 = vmatpush1.msra.mxu0 0.0
  %483 = vmatprep.subr.mxu0 0.0
  %484 = vmatpush1.msra.mxu0 0.0
  %485 = vmatprep.subr.mxu0 0.0
  %486 = vmatpush1.msra.mxu0 0.0
  %487 = vmatprep.subr.mxu0 0.0
  %488 = vmatpush1.msra.mxu0 0.0
  %489 = vmatprep.subr.mxu0 0.0
  %490 = vmatpush1.msra.mxu0 0.0
  %491 = vmatprep.subr.mxu0 0.0
  %492 = vmatpush1.msra.mxu0 0.0
  %493 = vmatprep.subr.mxu0 0.0
  %494 = vmatpush1.msra.mxu0 0.0
  %495 = vmatprep.mubr.f32.mxu0 0.0
  %496 = vmatmul.mubr.f32.gmra.mrb[0].mxu0 %v295
  %v497 = vpop.f32.mrb[0].mxu0
  %v498 = vadd.f32 %v284, %v497
  %v499 = vpop.f32.mrb[0].mxu0
  %v500 = vadd.f32 %v288, %v499
  %501 = vmatprep.mubr.f32.mxu0 0.0
  %502 = vmatmul.mubr.f32.gmra.mrb[0].mxu0 %v298
  %v503 = vpop.f32.mrb[0].mxu0
  %v504 = vadd.f32 %v284, %v503
  %v505 = vpop.f32.mrb[0].mxu0
  %v506 = vadd.f32 %v288, %v505
  %507 = vmatprep.mubr.f32.mxu0 0.0
  %508 = vmatmul.mubr.f32.gmra.mrb[0].mxu0 %v301
  %v509 = vpop.f32.mrb[0].mxu0
  %v510 = vadd.f32 %v284, %v509
  %v511 = vpop.f32.mrb[0].mxu0
  %v512 = vadd.f32 %v288, %v511
  %513 = vmatprep.mubr.f32.mxu0 0.0
  %514 = vmatmul.mubr.f32.gmra.mrb[0].mxu0 %v304
  %v515 = vpop.f32.mrb[0].mxu0
  %v516 = vadd.f32 %v284, %v515
  %v517 = vpop.f32.mrb[0].mxu0
  %v518 = vadd.f32 %v288, %v517
  %519 = vmatprep.mubr.f32.mxu0 0.0
  %520 = vmatmul.mubr.f32.gmra.mrb[0].mxu0 %v307
  %v521 = vpop.f32.mrb[0].mxu0
  %v522 = vadd.f32 %v284, %v521
  %v523 = vpop.f32.mrb[0].mxu0
  %v524 = vadd.f32 %v288, %v523
  %525 = vmatprep.mubr.f32.mxu0 0.0
  %526 = vmatmul.mubr.f32.gmra.mrb[0].mxu0 %v310
  %v527 = vpop.f32.mrb[0].mxu0
  %v528 = vadd.f32 %v284, %v527
  %v529 = vpop.f32.mrb[0].mxu0
  %v530 = vadd.f32 %v288, %v529
  %531 = vmatprep.mubr.f32.mxu0 0.0
  %532 = vmatmul.mubr.f32.gmra.mrb[0].mxu0 %v313
  %v533 = vpop.f32.mrb[0].mxu0
  %v534 = vadd.f32 %v284, %v533
  %v535 = vpop.f32.mrb[0].mxu0
  %v536 = vadd.f32 %v288, %v535
  %537 = vmatprep.mubr.f32.mxu0 0.0
  %538 = vmatmul.mubr.f32.gmra.mrb[0].mxu0 %v316
  %v539 = vpop.f32.mrb[0].mxu0
  %v540 = vadd.f32 %v284, %v539
  %v541 = vpop.f32.mrb[0].mxu0
  %v542 = vadd.f32 %v288, %v541
  %543 = vdwg.mxu0
  %544 = vst [vmem:[#allocation4] sm:$0xff] %v385
  %545 = vst [vmem:[#allocation4 + $0x8] sm:$0xff] %v387
  %546 = vst [vmem:[#allocation4 + $0x10] sm:$0xff] %v498
  %547 = vst [vmem:[#allocation4 + $0x18] sm:$0xff] %v500
  %548 = vst [vmem:[#allocation4 + $0x20] sm:$0xff] %v391
  %549 = vst [vmem:[#allocation4 + $0x28] sm:$0xff] %v393
  %550 = vst [vmem:[#allocation4 + $0x30] sm:$0xff] %v504
  %551 = vst [vmem:[#allocation4 + $0x38] sm:$0xff] %v506
  %552 = vst [vmem:[#allocation4 + $0x40] sm:$0xff] %v397
  %553 = vst [vmem:[#allocation4 + $0x48] sm:$0xff] %v399
  %554 = vst [vmem:[#allocation4 + $0x50] sm:$0xff] %v510
  %555 = vst [vmem:[#allocation4 + $0x58] sm:$0xff] %v512
  %556 = vst [vmem:[#allocation4 + $0x60] sm:$0xff] %v403
  %557 = vst [vmem:[#allocation4 + $0x68] sm:$0xff] %v405
  %558 = vst [vmem:[#allocation4 + $0x70] sm:$0xff] %v516
  %559 = vst [vmem:[#allocation4 + $0x78] sm:$0xff] %v518
  %560 = vst [vmem:[#allocation4 + $0x80] sm:$0xff] %v409
  %561 = vst [vmem:[#allocation4 + $0x88] sm:$0xff] %v411
  %562 = vst [vmem:[#allocation4 + $0x90] sm:$0xff] %v522
  %563 = vst [vmem:[#allocation4 + $0x98] sm:$0xff] %v524
  %564 = vst [vmem:[#allocation4 + $0xa0] sm:$0xff] %v415
  %565 = vst [vmem:[#allocation4 + $0xa8] sm:$0xff] %v417
  %566 = vst [vmem:[#allocation4 + $0xb0] sm:$0xff] %v528
  %567 = vst [vmem:[#allocation4 + $0xb8] sm:$0xff] %v530
  %568 = vst [vmem:[#allocation4 + $0xc0] sm:$0xff] %v421
  %569 = vst [vmem:[#allocation4 + $0xc8] sm:$0xff] %v423
  %570 = vst [vmem:[#allocation4 + $0xd0] sm:$0xff] %v534
  %571 = vst [vmem:[#allocation4 + $0xd8] sm:$0xff] %v536
  %572 = vst [vmem:[#allocation4 + $0xe0] sm:$0xff] %v427
  %573 = vst [vmem:[#allocation4 + $0xe8] sm:$0xff] %v429
  %574 = vst [vmem:[#allocation4 + $0xf0] sm:$0xff] %v540
  %575 = vst [vmem:[#allocation4 + $0xf8] sm:$0xff] %v542
  %v576 = vld [vmem:[#allocation3] sm:$0xff]
  %v577 = vld [vmem:[#allocation3 + $0x8] sm:$0xff]
  %v578 = vld [vmem:[#allocation3 + $0x10] sm:$0xff]
  %v579 = vld [vmem:[#allocation3 + $0x18] sm:$0xff]
  %v580 = vld [vmem:[#allocation3 + $0x20] sm:$0xff]
  %v581 = vld [vmem:[#allocation3 + $0x28] sm:$0xff]
  %v582 = vld [vmem:[#allocation3 + $0x30] sm:$0xff]
  %v583 = vld [vmem:[#allocation3 + $0x38] sm:$0xff]
  %v584 = vld [vmem:[#allocation3 + $0x40] sm:$0xff]
  %v585 = vld [vmem:[#allocation3 + $0x48] sm:$0xff]
  %v586 = vld [vmem:[#allocation3 + $0x50] sm:$0xff]
  %v587 = vld [vmem:[#allocation3 + $0x58] sm:$0xff]
  %v588 = vld [vmem:[#allocation3 + $0x60] sm:$0xff]
  %v589 = vld [vmem:[#allocation3 + $0x68] sm:$0xff]
  %v590 = vld [vmem:[#allocation3 + $0x70] sm:$0xff]
  %v591 = vld [vmem:[#allocation3 + $0x78] sm:$0xff]
  %v592 = vld [vmem:[#allocation3 + $0x80] sm:$0xff]
  %v593 = vld [vmem:[#allocation3 + $0x88] sm:$0xff]
  %v594 = vld [vmem:[#allocation3 + $0x90] sm:$0xff]
  %v595 = vld [vmem:[#allocation3 + $0x98] sm:$0xff]
  %v596 = vld [vmem:[#allocation3 + $0xa0] sm:$0xff]
  %v597 = vld [vmem:[#allocation3 + $0xa8] sm:$0xff]
  %v598 = vld [vmem:[#allocation3 + $0xb0] sm:$0xff]
  %v599 = vld [vmem:[#allocation3 + $0xb8] sm:$0xff]
  %v600 = vld [vmem:[#allocation3 + $0xc0] sm:$0xff]
  %v601 = vld [vmem:[#allocation3 + $0xc8] sm:$0xff]
  %v602 = vld [vmem:[#allocation3 + $0xd0] sm:$0xff]
  %v603 = vld [vmem:[#allocation3 + $0xd8] sm:$0xff]
  %v604 = vld [vmem:[#allocation3 + $0xe0] sm:$0xff]
  %v605 = vld [vmem:[#allocation3 + $0xe8] sm:$0xff]
  %v606 = vld [vmem:[#allocation3 + $0xf0] sm:$0xff]
  %v607 = vld [vmem:[#allocation3 + $0xf8] sm:$0xff]
  %v608 = vld [vmem:[#allocation3 + $0x100] sm:$0xff]
  %v609 = vld [vmem:[#allocation3 + $0x108] sm:$0xff]
  %v610 = vld [vmem:[#allocation3 + $0x110] sm:$0xff]
  %v611 = vld [vmem:[#allocation3 + $0x118] sm:$0xff]
  %v612 = vld [vmem:[#allocation3 + $0x120] sm:$0xff]
  %v613 = vld [vmem:[#allocation3 + $0x128] sm:$0xff]
  %v614 = vld [vmem:[#allocation3 + $0x130] sm:$0xff]
  %v615 = vld [vmem:[#allocation3 + $0x138] sm:$0xff]
  %v616 = vld [vmem:[#allocation3 + $0x140] sm:$0xff]
  %v617 = vld [vmem:[#allocation3 + $0x148] sm:$0xff]
  %v618 = vld [vmem:[#allocation3 + $0x150] sm:$0xff]
  %v619 = vld [vmem:[#allocation3 + $0x158] sm:$0xff]
  %v620 = vld [vmem:[#allocation3 + $0x160] sm:$0xff]
  %v621 = vld [vmem:[#allocation3 + $0x168] sm:$0xff]
  %v622 = vld [vmem:[#allocation3 + $0x170] sm:$0xff]
  %v623 = vld [vmem:[#allocation3 + $0x178] sm:$0xff]
  %v624 = vld [vmem:[#allocation3 + $0x180] sm:$0xff]
  %v625 = vld [vmem:[#allocation3 + $0x188] sm:$0xff]
  %v626 = vld [vmem:[#allocation3 + $0x190] sm:$0xff]
  %v627 = vld [vmem:[#allocation3 + $0x198] sm:$0xff]
  %v628 = vld [vmem:[#allocation3 + $0x1a0] sm:$0xff]
  %v629 = vld [vmem:[#allocation3 + $0x1a8] sm:$0xff]
  %v630 = vld [vmem:[#allocation3 + $0x1b0] sm:$0xff]
  %v631 = vld [vmem:[#allocation3 + $0x1b8] sm:$0xff]
  %v632 = vld [vmem:[#allocation3 + $0x1c0] sm:$0xff]
  %v633 = vld [vmem:[#allocation3 + $0x1c8] sm:$0xff]
  %v634 = vld [vmem:[#allocation3 + $0x1d0] sm:$0xff]
  %v635 = vld [vmem:[#allocation3 + $0x1d8] sm:$0xff]
  %v636 = vld [vmem:[#allocation3 + $0x1e0] sm:$0xff]
  %v637 = vld [vmem:[#allocation3 + $0x1e8] sm:$0xff]
  %v638 = vld [vmem:[#allocation3 + $0x1f0] sm:$0xff]
  %v639 = vld [vmem:[#allocation3 + $0x1f8] sm:$0xff]
  %v640 = vld [vmem:[%s5] sm:$0xff]
  %v641 = vld [vmem:[%s6] sm:$0xff]
  %s642 = smul.u32 0, 4
  %s643 = smul.addr %s642, 8
  %s644 = scalar_lea.vmem [#allocation4], %s643
  %v645 = vld [vmem:[%s644] sm:$0xff]
  %v646 = vld [vmem:[%s644 + $0x8] sm:$0xff]
  %v647 = vld [vmem:[%s644 + $0x10] sm:$0xff]
  %v648 = vld [vmem:[%s644 + $0x18] sm:$0xff]
  %649 = vmatprep.subr.mxu0 %v577
  %650 = vmatpush1.msra.mxu0 %v576
  %651 = vmatprep.subr.mxu0 %v581
  %652 = vmatpush1.msra.mxu0 %v580
  %653 = vmatprep.subr.mxu0 %v585
  %654 = vmatpush1.msra.mxu0 %v584
  %655 = vmatprep.subr.mxu0 %v589
  %656 = vmatpush1.msra.mxu0 %v588
  %657 = vmatprep.subr.mxu0 %v593
  %658 = vmatpush1.msra.mxu0 %v592
  %659 = vmatprep.subr.mxu0 %v597
  %660 = vmatpush1.msra.mxu0 %v596
  %661 = vmatprep.subr.mxu0 %v601
  %662 = vmatpush1.msra.mxu0 %v600
  %663 = vmatprep.subr.mxu0 %v605
  %664 = vmatpush1.msra.mxu0 %v604
  %665 = vmatprep.subr.mxu0 %v609
  %666 = vmatpush1.msra.mxu0 %v608
  %667 = vmatprep.subr.mxu0 %v613
  %668 = vmatpush1.msra.mxu0 %v612
  %669 = vmatprep.subr.mxu0 %v617
  %670 = vmatpush1.msra.mxu0 %v616
  %671 = vmatprep.subr.mxu0 %v621
  %672 = vmatpush1.msra.mxu0 %v620
  %673 = vmatprep.subr.mxu0 %v625
  %674 = vmatpush1.msra.mxu0 %v624
  %675 = vmatprep.subr.mxu0 %v629
  %676 = vmatpush1.msra.mxu0 %v628
  %677 = vmatprep.subr.mxu0 %v633
  %678 = vmatpush1.msra.mxu0 %v632
  %679 = vmatprep.subr.mxu0 %v637
  %680 = vmatpush1.msra.mxu0 %v636
  %681 = vmatprep.subr.mxu0 0.0
  %682 = vmatpush1.msra.mxu0 0.0
  %683 = vmatprep.subr.mxu0 0.0
  %684 = vmatpush1.msra.mxu0 0.0
  %685 = vmatprep.subr.mxu0 0.0
  %686 = vmatpush1.msra.mxu0 0.0
  %687 = vmatprep.subr.mxu0 0.0
  %688 = vmatpush1.msra.mxu0 0.0
  %689 = vmatprep.subr.mxu0 0.0
  %690 = vmatpush1.msra.mxu0 0.0
  %691 = vmatprep.subr.mxu0 0.0
  %692 = vmatpush1.msra.mxu0 0.0
  %693 = vmatprep.subr.mxu0 0.0
  %694 = vmatpush1.msra.mxu0 0.0
  %695 = vmatprep.subr.mxu0 0.0
  %696 = vmatpush1.msra.mxu0 0.0
  %697 = vmatprep.subr.mxu0 0.0
  %698 = vmatpush1.msra.mxu0 0.0
  %699 = vmatprep.subr.mxu0 0.0
  %700 = vmatpush1.msra.mxu0 0.0
  %701 = vmatprep.subr.mxu0 0.0
  %702 = vmatpush1.msra.mxu0 0.0
  %703 = vmatprep.subr.mxu0 0.0
  %704 = vmatpush1.msra.mxu0 0.0
  %705 = vmatprep.subr.mxu0 0.0
  %706 = vmatpush1.msra.mxu0 0.0
  %707 = vmatprep.subr.mxu0 0.0
  %708 = vmatpush1.msra.mxu0 0.0
  %709 = vmatprep.subr.mxu0 0.0
  %710 = vmatpush1.msra.mxu0 0.0
  %711 = vmatprep.subr.mxu0 0.0
  %712 = vmatpush1.msra.mxu0 0.0
  %713 = vmatprep.mubr.f32.mxu0 0.0
  %714 = vmatmul.mubr.f32.gmra.mrb[0].mxu0 %v640
  %v715 = vpop.f32.mrb[0].mxu0
  %v716 = vadd.f32 0.0, %v715
  %v717 = vpop.f32.mrb[0].mxu0
  %v718 = vadd.f32 0.0, %v717
  %719 = vdwg.mxu0
  %720 = vmatprep.subr.mxu0 %v579
  %721 = vmatpush1.msra.mxu0 %v578
  %722 = vmatprep.subr.mxu0 %v583
  %723 = vmatpush1.msra.mxu0 %v582
  %724 = vmatprep.subr.mxu0 %v587
  %725 = vmatpush1.msra.mxu0 %v586
  %726 = vmatprep.subr.mxu0 %v591
  %727 = vmatpush1.msra.mxu0 %v590
  %728 = vmatprep.subr.mxu0 %v595
  %729 = vmatpush1.msra.mxu0 %v594
  %730 = vmatprep.subr.mxu0 %v599
  %731 = vmatpush1.msra.mxu0 %v598
  %732 = vmatprep.subr.mxu0 %v603
  %733 = vmatpush1.msra.mxu0 %v602
  %734 = vmatprep.subr.mxu0 %v607
  %735 = vmatpush1.msra.mxu0 %v606
  %736 = vmatprep.subr.mxu0 %v611
  %737 = vmatpush1.msra.mxu0 %v610
  %738 = vmatprep.subr.mxu0 %v615
  %739 = vmatpush1.msra.mxu0 %v614
  %740 = vmatprep.subr.mxu0 %v619
  %741 = vmatpush1.msra.mxu0 %v618
  %742 = vmatprep.subr.mxu0 %v623
  %743 = vmatpush1.msra.mxu0 %v622
  %744 = vmatprep.subr.mxu0 %v627
  %745 = vmatpush1.msra.mxu0 %v626
  %746 = vmatprep.subr.mxu0 %v631
  %747 = vmatpush1.msra.mxu0 %v630
  %748 = vmatprep.subr.mxu0 %v635
  %749 = vmatpush1.msra.mxu0 %v634
  %750 = vmatprep.subr.mxu0 %v639
  %751 = vmatpush1.msra.mxu0 %v638
  %752 = vmatprep.subr.mxu0 0.0
  %753 = vmatpush1.msra.mxu0 0.0
  %754 = vmatprep.subr.mxu0 0.0
  %755 = vmatpush1.msra.mxu0 0.0
  %756 = vmatprep.subr.mxu0 0.0
  %757 = vmatpush1.msra.mxu0 0.0
  %758 = vmatprep.subr.mxu0 0.0
  %759 = vmatpush1.msra.mxu0 0.0
  %760 = vmatprep.subr.mxu0 0.0
  %761 = vmatpush1.msra.mxu0 0.0
  %762 = vmatprep.subr.mxu0 0.0
  %763 = vmatpush1.msra.mxu0 0.0
  %764 = vmatprep.subr.mxu0 0.0
  %765 = vmatpush1.msra.mxu0 0.0
  %766 = vmatprep.subr.mxu0 0.0
  %767 = vmatpush1.msra.mxu0 0.0
  %768 = vmatprep.subr.mxu0 0.0
  %769 = vmatpush1.msra.mxu0 0.0
  %770 = vmatprep.subr.mxu0 0.0
  %771 = vmatpush1.msra.mxu0 0.0
  %772 = vmatprep.subr.mxu0 0.0
  %773 = vmatpush1.msra.mxu0 0.0
  %774 = vmatprep.subr.mxu0 0.0
  %775 = vmatpush1.msra.mxu0 0.0
  %776 = vmatprep.subr.mxu0 0.0
  %777 = vmatpush1.msra.mxu0 0.0
  %778 = vmatprep.subr.mxu0 0.0
  %779 = vmatpush1.msra.mxu0 0.0
  %780 = vmatprep.subr.mxu0 0.0
  %781 = vmatpush1.msra.mxu0 0.0
  %782 = vmatprep.subr.mxu0 0.0
  %783 = vmatpush1.msra.mxu0 0.0
  %784 = vmatprep.mubr.f32.mxu0 0.0
  %785 = vmatmul.mubr.f32.gmra.mrb[0].mxu0 %v640
  %v786 = vpop.f32.mrb[0].mxu0
  %v787 = vadd.f32 0.0, %v786
  %v788 = vpop.f32.mrb[0].mxu0
  %v789 = vadd.f32 0.0, %v788
  %790 = vdwg.mxu0
  %v791 = vadd.f32 %v645, %v716
  %v792 = vadd.f32 %v646, %v718
  %v793 = vadd.f32 %v647, %v787
  %v794 = vadd.f32 %v648, %v789
  %v795 = vxor.u32 %v791, 2147483648
  %v796 = vmul.f32 %v795, 1.442695
  %v797 = vpow.pop %v796
  %v798 = vadd.f32 %v797, 1.0
  %v799 = vrcp.pop %v798
  %v800 = vmul.f32 1.0, %v799
  %v801 = vxor.u32 %v792, 2147483648
  %v802 = vmul.f32 %v801, 1.442695
  %v803 = vpow.pop %v802
  %v804 = vadd.f32 %v803, 1.0
  %v805 = vrcp.pop %v804
  %v806 = vmul.f32 1.0, %v805
  %v807 = vtanh.pop %v793
  %v808 = vxor.u32 %v794, 2147483648
  %v809 = vmul.f32 %v808, 1.442695
  %v810 = vpow.pop %v809
  %v811 = vadd.f32 %v810, 1.0
  %v812 = vrcp.pop %v811
  %v813 = vmul.f32 1.0, %v812
  %v814 = vmul.f32 %v806, %v641
  %v815 = vmul.f32 %v800, %v807
  %v816 = vadd.f32 %v814, %v815
  %v817 = vtanh.pop %v816
  %v818 = vmul.f32 %v813, %v817
  %819 = vst [vmem:[%s4] sm:$0xff] %v818
  %s820 = smul.u32 1, 4
  %s821 = smul.addr %s820, 8
  %s822 = scalar_lea.vmem [#allocation4], %s821
  %v823 = vld [vmem:[%s822] sm:$0xff]
  %v824 = vld [vmem:[%s822 + $0x8] sm:$0xff]
  %v825 = vld [vmem:[%s822 + $0x10] sm:$0xff]
  %v826 = vld [vmem:[%s822 + $0x18] sm:$0xff]
  %827 = vmatprep.subr.mxu0 %v577
  %828 = vmatpush1.msra.mxu0 %v576
  %829 = vmatprep.subr.mxu0 %v581
  %830 = vmatpush1.msra.mxu0 %v580
  %831 = vmatprep.subr.mxu0 %v585
  %832 = vmatpush1.msra.mxu0 %v584
  %833 = vmatprep.subr.mxu0 %v589
  %834 = vmatpush1.msra.mxu0 %v588
  %835 = vmatprep.subr.mxu0 %v593
  %836 = vmatpush1.msra.mxu0 %v592
  %837 = vmatprep.subr.mxu0 %v597
  %838 = vmatpush1.msra.mxu0 %v596
  %839 = vmatprep.subr.mxu0 %v601
  %840 = vmatpush1.msra.mxu0 %v600
  %841 = vmatprep.subr.mxu0 %v605
  %842 = vmatpush1.msra.mxu0 %v604
  %843 = vmatprep.subr.mxu0 %v609
  %844 = vmatpush1.msra.mxu0 %v608
  %845 = vmatprep.subr.mxu0 %v613
  %846 = vmatpush1.msra.mxu0 %v612
  %847 = vmatprep.subr.mxu0 %v617
  %848 = vmatpush1.msra.mxu0 %v616
  %849 = vmatprep.subr.mxu0 %v621
  %850 = vmatpush1.msra.mxu0 %v620
  %851 = vmatprep.subr.mxu0 %v625
  %852 = vmatpush1.msra.mxu0 %v624
  %853 = vmatprep.subr.mxu0 %v629
  %854 = vmatpush1.msra.mxu0 %v628
  %855 = vmatprep.subr.mxu0 %v633
  %856 = vmatpush1.msra.mxu0 %v632
  %857 = vmatprep.subr.mxu0 %v637
  %858 = vmatpush1.msra.mxu0 %v636
  %859 = vmatprep.subr.mxu0 0.0
  %860 = vmatpush1.msra.mxu0 0.0
  %861 = vmatprep.subr.mxu0 0.0
  %862 = vmatpush1.msra.mxu0 0.0
  %863 = vmatprep.subr.mxu0 0.0
  %864 = vmatpush1.msra.mxu0 0.0
  %865 = vmatprep.subr.mxu0 0.0
  %866 = vmatpush1.msra.mxu0 0.0
  %867 = vmatprep.subr.mxu0 0.0
  %868 = vmatpush1.msra.mxu0 0.0
  %869 = vmatprep.subr.mxu0 0.0
  %870 = vmatpush1.msra.mxu0 0.0
  %871 = vmatprep.subr.mxu0 0.0
  %872 = vmatpush1.msra.mxu0 0.0
  %873 = vmatprep.subr.mxu0 0.0
  %874 = vmatpush1.msra.mxu0 0.0
  %875 = vmatprep.subr.mxu0 0.0
  %876 = vmatpush1.msra.mxu0 0.0
  %877 = vmatprep.subr.mxu0 0.0
  %878 = vmatpush1.msra.mxu0 0.0
  %879 = vmatprep.subr.mxu0 0.0
  %880 = vmatpush1.msra.mxu0 0.0
  %881 = vmatprep.subr.mxu0 0.0
  %882 = vmatpush1.msra.mxu0 0.0
  %883 = vmatprep.subr.mxu0 0.0
  %884 = vmatpush1.msra.mxu0 0.0
  %885 = vmatprep.subr.mxu0 0.0
  %886 = vmatpush1.msra.mxu0 0.0
  %887 = vmatprep.subr.mxu0 0.0
  %888 = vmatpush1.msra.mxu0 0.0
  %889 = vmatprep.subr.mxu0 0.0
  %890 = vmatpush1.msra.mxu0 0.0
  %891 = vmatprep.mubr.f32.mxu0 0.0
  %892 = vmatmul.mubr.f32.gmra.mrb[0].mxu0 %v818
  %v893 = vpop.f32.mrb[0].mxu0
  %v894 = vadd.f32 0.0, %v893
  %v895 = vpop.f32.mrb[0].mxu0
  %v896 = vadd.f32 0.0, %v895
  %897 = vdwg.mxu0
  %898 = vmatprep.subr.mxu0 %v579
  %899 = vmatpush1.msra.mxu0 %v578
  %900 = vmatprep.subr.mxu0 %v583
  %901 = vmatpush1.msra.mxu0 %v582
  %902 = vmatprep.subr.mxu0 %v587
  %903 = vmatpush1.msra.mxu0 %v586
  %904 = vmatprep.subr.mxu0 %v591
  %905 = vmatpush1.msra.mxu0 %v590
  %906 = vmatprep.subr.mxu0 %v595
  %907 = vmatpush1.msra.mxu0 %v594
  %908 = vmatprep.subr.mxu0 %v599
  %909 = vmatpush1.msra.mxu0 %v598
  %910 = vmatprep.subr.mxu0 %v603
  %911 = vmatpush1.msra.mxu0 %v602
  %912 = vmatprep.subr.mxu0 %v607
  %913 = vmatpush1.msra.mxu0 %v606
  %914 = vmatprep.subr.mxu0 %v611
  %915 = vmatpush1.msra.mxu0 %v610
  %916 = vmatprep.subr.mxu0 %v615
  %917 = vmatpush1.msra.mxu0 %v614
  %918 = vmatprep.subr.mxu0 %v619
  %919 = vmatpush1.msra.mxu0 %v618
  %920 = vmatprep.subr.mxu0 %v623
  %921 = vmatpush1.msra.mxu0 %v622
  %922 = vmatprep.subr.mxu0 %v627
  %923 = vmatpush1.msra.mxu0 %v626
  %924 = vmatprep.subr.mxu0 %v631
  %925 = vmatpush1.msra.mxu0 %v630
  %926 = vmatprep.subr.mxu0 %v635
  %927 = vmatpush1.msra.mxu0 %v634
  %928 = vmatprep.subr.mxu0 %v639
  %929 = vmatpush1.msra.mxu0 %v638
  %930 = vmatprep.subr.mxu0 0.0
  %931 = vmatpush1.msra.mxu0 0.0
  %932 = vmatprep.subr.mxu0 0.0
  %933 = vmatpush1.msra.mxu0 0.0
  %934 = vmatprep.subr.mxu0 0.0
  %935 = vmatpush1.msra.mxu0 0.0
  %936 = vmatprep.subr.mxu0 0.0
  %937 = vmatpush1.msra.mxu0 0.0
  %938 = vmatprep.subr.mxu0 0.0
  %939 = vmatpush1.msra.mxu0 0.0
  %940 = vmatprep.subr.mxu0 0.0
  %941 = vmatpush1.msra.mxu0 0.0
  %942 = vmatprep.subr.mxu0 0.0
  %943 = vmatpush1.msra.mxu0 0.0
  %944 = vmatprep.subr.mxu0 0.0
  %945 = vmatpush1.msra.mxu0 0.0
  %946 = vmatprep.subr.mxu0 0.0
  %947 = vmatpush1.msra.mxu0 0.0
  %948 = vmatprep.subr.mxu0 0.0
  %949 = vmatpush1.msra.mxu0 0.0
  %950 = vmatprep.subr.mxu0 0.0
  %951 = vmatpush1.msra.mxu0 0.0
  %952 = vmatprep.subr.mxu0 0.0
  %953 = vmatpush1.msra.mxu0 0.0
  %954 = vmatprep.subr.mxu0 0.0
  %955 = vmatpush1.msra.mxu0 0.0
  %956 = vmatprep.subr.mxu0 0.0
  %957 = vmatpush1.msra.mxu0 0.0
  %958 = vmatprep.subr.mxu0 0.0
  %959 = vmatpush1.msra.mxu0 0.0
  %960 = vmatprep.subr.mxu0 0.0
  %961 = vmatpush1.msra.mxu0 0.0
  %962 = vmatprep.mubr.f32.mxu0 0.0
  %963 = vmatmul.mubr.f32.gmra.mrb[0].mxu0 %v818
  %v964 = vpop.f32.mrb[0].mxu0
  %v965 = vadd.f32 0.0, %v964
  %v966 = vpop.f32.mrb[0].mxu0
  %v967 = vadd.f32 0.0, %v966
  %968 = vdwg.mxu0
  %v969 = vadd.f32 %v823, %v894
  %v970 = vadd.f32 %v824, %v896
  %v971 = vadd.f32 %v825, %v965
  %v972 = vadd.f32 %v826, %v967
  %v973 = vxor.u32 %v969, 2147483648
  %v974 = vmul.f32 %v973, 1.442695
  %v975 = vpow.pop %v974
  %v976 = vadd.f32 %v975, 1.0
  %v977 = vrcp.pop %v976
  %v978 = vmul.f32 1.0, %v977
  %v979 = vxor.u32 %v970, 2147483648
  %v980 = vmul.f32 %v979, 1.442695
  %v981 = vpow.pop %v980
  %v982 = vadd.f32 %v981, 1.0
  %v983 = vrcp.pop %v982
  %v984 = vmul.f32 1.0, %v983
  %v985 = vtanh.pop %v971
  %v986 = vxor.u32 %v972, 2147483648
  %v987 = vmul.f32 %v986, 1.442695
  %v988 = vpow.pop %v987
  %v989 = vadd.f32 %v988, 1.0
  %v990 = vrcp.pop %v989
  %v991 = vmul.f32 1.0, %v990
  %v992 = vmul.f32 %v984, %v816
  %v993 = vmul.f32 %v978, %v985
  %v994 = vadd.f32 %v992, %v993
  %v995 = vtanh.pop %v994
  %v996 = vmul.f32 %v991, %v995
  %s997 = scalar_lea.vmem %s4, 8
  %998 = vst [vmem:[%s997] sm:$0xff] %v996
  %s999 = smul.u32 2, 4
  %s1000 = smul.addr %s999, 8
  %s1001 = scalar_lea.vmem [#allocation4], %s1000
  %v1002 = vld [vmem:[%s1001] sm:$0xff]
  %v1003 = vld [vmem:[%s1001 + $0x8] sm:$0xff]
  %v1004 = vld [vmem:[%s1001 + $0x10] sm:$0xff]
  %v1005 = vld [vmem:[%s1001 + $0x18] sm:$0xff]
  %1006 = vmatprep.subr.mxu0 %v577
  %1007 = vmatpush1.msra.mxu0 %v576
  %1008 = vmatprep.subr.mxu0 %v581
  %1009 = vmatpush1.msra.mxu0 %v580
  %1010 = vmatprep.subr.mxu0 %v585
  %1011 = vmatpush1.msra.mxu0 %v584
  %1012 = vmatprep.subr.mxu0 %v589
  %1013 = vmatpush1.msra.mxu0 %v588
  %1014 = vmatprep.subr.mxu0 %v593
  %1015 = vmatpush1.msra.mxu0 %v592
  %1016 = vmatprep.subr.mxu0 %v597
  %1017 = vmatpush1.msra.mxu0 %v596
  %1018 = vmatprep.subr.mxu0 %v601
  %1019 = vmatpush1.msra.mxu0 %v600
  %1020 = vmatprep.subr.mxu0 %v605
  %1021 = vmatpush1.msra.mxu0 %v604
  %1022 = vmatprep.subr.mxu0 %v609
  %1023 = vmatpush1.msra.mxu0 %v608
  %1024 = vmatprep.subr.mxu0 %v613
  %1025 = vmatpush1.msra.mxu0 %v612
  %1026 = vmatprep.subr.mxu0 %v617
  %1027 = vmatpush1.msra.mxu0 %v616
  %1028 = vmatprep.subr.mxu0 %v621
  %1029 = vmatpush1.msra.mxu0 %v620
  %1030 = vmatprep.subr.mxu0 %v625
  %1031 = vmatpush1.msra.mxu0 %v624
  %1032 = vmatprep.subr.mxu0 %v629
  %1033 = vmatpush1.msra.mxu0 %v628
  %1034 = vmatprep.subr.mxu0 %v633
  %1035 = vmatpush1.msra.mxu0 %v632
  %1036 = vmatprep.subr.mxu0 %v637
  %1037 = vmatpush1.msra.mxu0 %v636
  %1038 = vmatprep.subr.mxu0 0.0
  %1039 = vmatpush1.msra.mxu0 0.0
  %1040 = vmatprep.subr.mxu0 0.0
  %1041 = vmatpush1.msra.mxu0 0.0
  %1042 = vmatprep.subr.mxu0 0.0
  %1043 = vmatpush1.msra.mxu0 0.0
  %1044 = vmatprep.subr.mxu0 0.0
  %1045 = vmatpush1.msra.mxu0 0.0
  %1046 = vmatprep.subr.mxu0 0.0
  %1047 = vmatpush1.msra.mxu0 0.0
  %1048 = vmatprep.subr.mxu0 0.0
  %1049 = vmatpush1.msra.mxu0 0.0
  %1050 = vmatprep.subr.mxu0 0.0
  %1051 = vmatpush1.msra.mxu0 0.0
  %1052 = vmatprep.subr.mxu0 0.0
  %1053 = vmatpush1.msra.mxu0 0.0
  %1054 = vmatprep.subr.mxu0 0.0
  %1055 = vmatpush1.msra.mxu0 0.0
  %1056 = vmatprep.subr.mxu0 0.0
  %1057 = vmatpush1.msra.mxu0 0.0
  %1058 = vmatprep.subr.mxu0 0.0
  %1059 = vmatpush1.msra.mxu0 0.0
  %1060 = vmatprep.subr.mxu0 0.0
  %1061 = vmatpush1.msra.mxu0 0.0
  %1062 = vmatprep.subr.mxu0 0.0
  %1063 = vmatpush1.msra.mxu0 0.0
  %1064 = vmatprep.subr.mxu0 0.0
  %1065 = vmatpush1.msra.mxu0 0.0
  %1066 = vmatprep.subr.mxu0 0.0
  %1067 = vmatpush1.msra.mxu0 0.0
  %1068 = vmatprep.subr.mxu0 0.0
  %1069 = vmatpush1.msra.mxu0 0.0
  %1070 = vmatprep.mubr.f32.mxu0 0.0
  %1071 = vmatmul.mubr.f32.gmra.mrb[0].mxu0 %v996
  %v1072 = vpop.f32.mrb[0].mxu0
  %v1073 = vadd.f32 0.0, %v1072
  %v1074 = vpop.f32.mrb[0].mxu0
  %v1075 = vadd.f32 0.0, %v1074
  %1076 = vdwg.mxu0
  %1077 = vmatprep.subr.mxu0 %v579
  %1078 = vmatpush1.msra.mxu0 %v578
  %1079 = vmatprep.subr.mxu0 %v583
  %1080 = vmatpush1.msra.mxu0 %v582
  %1081 = vmatprep.subr.mxu0 %v587
  %1082 = vmatpush1.msra.mxu0 %v586
  %1083 = vmatprep.subr.mxu0 %v591
  %1084 = vmatpush1.msra.mxu0 %v590
  %1085 = vmatprep.subr.mxu0 %v595
  %1086 = vmatpush1.msra.mxu0 %v594
  %1087 = vmatprep.subr.mxu0 %v599
  %1088 = vmatpush1.msra.mxu0 %v598
  %1089 = vmatprep.subr.mxu0 %v603
  %1090 = vmatpush1.msra.mxu0 %v602
  %1091 = vmatprep.subr.mxu0 %v607
  %1092 = vmatpush1.msra.mxu0 %v606
  %1093 = vmatprep.subr.mxu0 %v611
  %1094 = vmatpush1.msra.mxu0 %v610
  %1095 = vmatprep.subr.mxu0 %v615
  %1096 = vmatpush1.msra.mxu0 %v614
  %1097 = vmatprep.subr.mxu0 %v619
  %1098 = vmatpush1.msra.mxu0 %v618
  %1099 = vmatprep.subr.mxu0 %v623
  %1100 = vmatpush1.msra.mxu0 %v622
  %1101 = vmatprep.subr.mxu0 %v627
  %1102 = vmatpush1.msra.mxu0 %v626
  %1103 = vmatprep.subr.mxu0 %v631
  %1104 = vmatpush1.msra.mxu0 %v630
  %1105 = vmatprep.subr.mxu0 %v635
  %1106 = vmatpush1.msra.mxu0 %v634
  %1107 = vmatprep.subr.mxu0 %v639
  %1108 = vmatpush1.msra.mxu0 %v638
  %1109 = vmatprep.subr.mxu0 0.0
  %1110 = vmatpush1.msra.mxu0 0.0
  %1111 = vmatprep.subr.mxu0 0.0
  %1112 = vmatpush1.msra.mxu0 0.0
  %1113 = vmatprep.subr.mxu0 0.0
  %1114 = vmatpush1.msra.mxu0 0.0
  %1115 = vmatprep.subr.mxu0 0.0
  %1116 = vmatpush1.msra.mxu0 0.0
  %1117 = vmatprep.subr.mxu0 0.0
  %1118 = vmatpush1.msra.mxu0 0.0
  %1119 = vmatprep.subr.mxu0 0.0
  %1120 = vmatpush1.msra.mxu0 0.0
  %1121 = vmatprep.subr.mxu0 0.0
  %1122 = vmatpush1.msra.mxu0 0.0
  %1123 = vmatprep.subr.mxu0 0.0
  %1124 = vmatpush1.msra.mxu0 0.0
  %1125 = vmatprep.subr.mxu0 0.0
  %1126 = vmatpush1.msra.mxu0 0.0
  %1127 = vmatprep.subr.mxu0 0.0
  %1128 = vmatpush1.msra.mxu0 0.0
  %1129 = vmatprep.subr.mxu0 0.0
  %1130 = vmatpush1.msra.mxu0 0.0
  %1131 = vmatprep.subr.mxu0 0.0
  %1132 = vmatpush1.msra.mxu0 0.0
  %1133 = vmatprep.subr.mxu0 0.0
  %1134 = vmatpush1.msra.mxu0 0.0
  %1135 = vmatprep.subr.mxu0 0.0
  %1136 = vmatpush1.msra.mxu0 0.0
  %1137 = vmatprep.subr.mxu0 0.0
  %1138 = vmatpush1.msra.mxu0 0.0
  %1139 = vmatprep.subr.mxu0 0.0
  %1140 = vmatpush1.msra.mxu0 0.0
  %1141 = vmatprep.mubr.f32.mxu0 0.0
  %1142 = vmatmul.mubr.f32.gmra.mrb[0].mxu0 %v996
  %v1143 = vpop.f32.mrb[0].mxu0
  %v1144 = vadd.f32 0.0, %v1143
  %v1145 = vpop.f32.mrb[0].mxu0
  %v1146 = vadd.f32 0.0, %v1145
  %1147 = vdwg.mxu0
  %v1148 = vadd.f32 %v1002, %v1073
  %v1149 = vadd.f32 %v1003, %v1075
  %v1150 = vadd.f32 %v1004, %v1144
  %v1151 = vadd.f32 %v1005, %v1146
  %v1152 = vxor.u32 %v1148, 2147483648
  %v1153 = vmul.f32 %v1152, 1.442695
  %v1154 = vpow.pop %v1153
  %v1155 = vadd.f32 %v1154, 1.0
  %v1156 = vrcp.pop %v1155
  %v1157 = vmul.f32 1.0, %v1156
  %v1158 = vxor.u32 %v1149, 2147483648
  %v1159 = vmul.f32 %v1158, 1.442695
  %v1160 = vpow.pop %v1159
  %v1161 = vadd.f32 %v1160, 1.0
  %v1162 = vrcp.pop %v1161
  %v1163 = vmul.f32 1.0, %v1162
  %v1164 = vtanh.pop %v1150
  %v1165 = vxor.u32 %v1151, 2147483648
  %v1166 = vmul.f32 %v1165, 1.442695
  %v1167 = vpow.pop %v1166
  %v1168 = vadd.f32 %v1167, 1.0
  %v1169 = vrcp.pop %v1168
  %v1170 = vmul.f32 1.0, %v1169
  %v1171 = vmul.f32 %v1163, %v994
  %v1172 = vmul.f32 %v1157, %v1164
  %v1173 = vadd.f32 %v1171, %v1172
  %v1174 = vtanh.pop %v1173
  %v1175 = vmul.f32 %v1170, %v1174
  %s1176 = scalar_lea.vmem %s4, 16
  %1177 = vst [vmem:[%s1176] sm:$0xff] %v1175
  %s1178 = smul.u32 3, 4
  %s1179 = smul.addr %s1178, 8
  %s1180 = scalar_lea.vmem [#allocation4], %s1179
  %v1181 = vld [vmem:[%s1180] sm:$0xff]
  %v1182 = vld [vmem:[%s1180 + $0x8] sm:$0xff]
  %v1183 = vld [vmem:[%s1180 + $0x10] sm:$0xff]
  %v1184 = vld [vmem:[%s1180 + $0x18] sm:$0xff]
  %1185 = vmatprep.subr.mxu0 %v577
  %1186 = vmatpush1.msra.mxu0 %v576
  %1187 = vmatprep.subr.mxu0 %v581
  %1188 = vmatpush1.msra.mxu0 %v580
  %1189 = vmatprep.subr.mxu0 %v585
  %1190 = vmatpush1.msra.mxu0 %v584
  %1191 = vmatprep.subr.mxu0 %v589
  %1192 = vmatpush1.msra.mxu0 %v588
  %1193 = vmatprep.subr.mxu0 %v593
  %1194 = vmatpush1.msra.mxu0 %v592
  %1195 = vmatprep.subr.mxu0 %v597
  %1196 = vmatpush1.msra.mxu0 %v596
  %1197 = vmatprep.subr.mxu0 %v601
  %1198 = vmatpush1.msra.mxu0 %v600
  %1199 = vmatprep.subr.mxu0 %v605
  %1200 = vmatpush1.msra.mxu0 %v604
  %1201 = vmatprep.subr.mxu0 %v609
  %1202 = vmatpush1.msra.mxu0 %v608
  %1203 = vmatprep.subr.mxu0 %v613
  %1204 = vmatpush1.msra.mxu0 %v612
  %1205 = vmatprep.subr.mxu0 %v617
  %1206 = vmatpush1.msra.mxu0 %v616
  %1207 = vmatprep.subr.mxu0 %v621
  %1208 = vmatpush1.msra.mxu0 %v620
  %1209 = vmatprep.subr.mxu0 %v625
  %1210 = vmatpush1.msra.mxu0 %v624
  %1211 = vmatprep.subr.mxu0 %v629
  %1212 = vmatpush1.msra.mxu0 %v628
  %1213 = vmatprep.subr.mxu0 %v633
  %1214 = vmatpush1.msra.mxu0 %v632
  %1215 = vmatprep.subr.mxu0 %v637
  %1216 = vmatpush1.msra.mxu0 %v636
  %1217 = vmatprep.subr.mxu0 0.0
  %1218 = vmatpush1.msra.mxu0 0.0
  %1219 = vmatprep.subr.mxu0 0.0
  %1220 = vmatpush1.msra.mxu0 0.0
  %1221 = vmatprep.subr.mxu0 0.0
  %1222 = vmatpush1.msra.mxu0 0.0
  %1223 = vmatprep.subr.mxu0 0.0
  %1224 = vmatpush1.msra.mxu0 0.0
  %1225 = vmatprep.subr.mxu0 0.0
  %1226 = vmatpush1.msra.mxu0 0.0
  %1227 = vmatprep.subr.mxu0 0.0
  %1228 = vmatpush1.msra.mxu0 0.0
  %1229 = vmatprep.subr.mxu0 0.0
  %1230 = vmatpush1.msra.mxu0 0.0
  %1231 = vmatprep.subr.mxu0 0.0
  %1232 = vmatpush1.msra.mxu0 0.0
  %1233 = vmatprep.subr.mxu0 0.0
  %1234 = vmatpush1.msra.mxu0 0.0
  %1235 = vmatprep.subr.mxu0 0.0
  %1236 = vmatpush1.msra.mxu0 0.0
  %1237 = vmatprep.subr.mxu0 0.0
  %1238 = vmatpush1.msra.mxu0 0.0
  %1239 = vmatprep.subr.mxu0 0.0
  %1240 = vmatpush1.msra.mxu0 0.0
  %1241 = vmatprep.subr.mxu0 0.0
  %1242 = vmatpush1.msra.mxu0 0.0
  %1243 = vmatprep.subr.mxu0 0.0
  %1244 = vmatpush1.msra.mxu0 0.0
  %1245 = vmatprep.subr.mxu0 0.0
  %1246 = vmatpush1.msra.mxu0 0.0
  %1247 = vmatprep.subr.mxu0 0.0
  %1248 = vmatpush1.msra.mxu0 0.0
  %1249 = vmatprep.mubr.f32.mxu0 0.0
  %1250 = vmatmul.mubr.f32.gmra.mrb[0].mxu0 %v1175
  %v1251 = vpop.f32.mrb[0].mxu0
  %v1252 = vadd.f32 0.0, %v1251
  %v1253 = vpop.f32.mrb[0].mxu0
  %v1254 = vadd.f32 0.0, %v1253
  %1255 = vdwg.mxu0
  %1256 = vmatprep.subr.mxu0 %v579
  %1257 = vmatpush1.msra.mxu0 %v578
  %1258 = vmatprep.subr.mxu0 %v583
  %1259 = vmatpush1.msra.mxu0 %v582
  %1260 = vmatprep.subr.mxu0 %v587
  %1261 = vmatpush1.msra.mxu0 %v586
  %1262 = vmatprep.subr.mxu0 %v591
  %1263 = vmatpush1.msra.mxu0 %v590
  %1264 = vmatprep.subr.mxu0 %v595
  %1265 = vmatpush1.msra.mxu0 %v594
  %1266 = vmatprep.subr.mxu0 %v599
  %1267 = vmatpush1.msra.mxu0 %v598
  %1268 = vmatprep.subr.mxu0 %v603
  %1269 = vmatpush1.msra.mxu0 %v602
  %1270 = vmatprep.subr.mxu0 %v607
  %1271 = vmatpush1.msra.mxu0 %v606
  %1272 = vmatprep.subr.mxu0 %v611
  %1273 = vmatpush1.msra.mxu0 %v610
  %1274 = vmatprep.subr.mxu0 %v615
  %1275 = vmatpush1.msra.mxu0 %v614
  %1276 = vmatprep.subr.mxu0 %v619
  %1277 = vmatpush1.msra.mxu0 %v618
  %1278 = vmatprep.subr.mxu0 %v623
  %1279 = vmatpush1.msra.mxu0 %v622
  %1280 = vmatprep.subr.mxu0 %v627
  %1281 = vmatpush1.msra.mxu0 %v626
  %1282 = vmatprep.subr.mxu0 %v631
  %1283 = vmatpush1.msra.mxu0 %v630
  %1284 = vmatprep.subr.mxu0 %v635
  %1285 = vmatpush1.msra.mxu0 %v634
  %1286 = vmatprep.subr.mxu0 %v639
  %1287 = vmatpush1.msra.mxu0 %v638
  %1288 = vmatprep.subr.mxu0 0.0
  %1289 = vmatpush1.msra.mxu0 0.0
  %1290 = vmatprep.subr.mxu0 0.0
  %1291 = vmatpush1.msra.mxu0 0.0
  %1292 = vmatprep.subr.mxu0 0.0
  %1293 = vmatpush1.msra.mxu0 0.0
  %1294 = vmatprep.subr.mxu0 0.0
  %1295 = vmatpush1.msra.mxu0 0.0
  %1296 = vmatprep.subr.mxu0 0.0
  %1297 = vmatpush1.msra.mxu0 0.0
  %1298 = vmatprep.subr.mxu0 0.0
  %1299 = vmatpush1.msra.mxu0 0.0
  %1300 = vmatprep.subr.mxu0 0.0
  %1301 = vmatpush1.msra.mxu0 0.0
  %1302 = vmatprep.subr.mxu0 0.0
  %1303 = vmatpush1.msra.mxu0 0.0
  %1304 = vmatprep.subr.mxu0 0.0
  %1305 = vmatpush1.msra.mxu0 0.0
  %1306 = vmatprep.subr.mxu0 0.0
  %1307 = vmatpush1.msra.mxu0 0.0
  %1308 = vmatprep.subr.mxu0 0.0
  %1309 = vmatpush1.msra.mxu0 0.0
  %1310 = vmatprep.subr.mxu0 0.0
  %1311 = vmatpush1.msra.mxu0 0.0
  %1312 = vmatprep.subr.mxu0 0.0
  %1313 = vmatpush1.msra.mxu0 0.0
  %1314 = vmatprep.subr.mxu0 0.0
  %1315 = vmatpush1.msra.mxu0 0.0
  %1316 = vmatprep.subr.mxu0 0.0
  %1317 = vmatpush1.msra.mxu0 0.0
  %1318 = vmatprep.subr.mxu0 0.0
  %1319 = vmatpush1.msra.mxu0 0.0
  %1320 = vmatprep.mubr.f32.mxu0 0.0
  %1321 = vmatmul.mubr.f32.gmra.mrb[0].mxu0 %v1175
  %v1322 = vpop.f32.mrb[0].mxu0
  %v1323 = vadd.f32 0.0, %v1322
  %v1324 = vpop.f32.mrb[0].mxu0
  %v1325 = vadd.f32 0.0, %v1324
  %1326 = vdwg.mxu0
  %v1327 = vadd.f32 %v1181, %v1252
  %v1328 = vadd.f32 %v1182, %v1254
  %v1329 = vadd.f32 %v1183, %v1323
  %v1330 = vadd.f32 %v1184, %v1325
  %v1331 = vxor.u32 %v1327, 2147483648
  %v1332 = vmul.f32 %v1331, 1.442695
  %v1333 = vpow.pop %v1332
  %v1334 = vadd.f32 %v1333, 1.0
  %v1335 = vrcp.pop %v1334
  %v1336 = vmul.f32 1.0, %v1335
  %v1337 = vxor.u32 %v1328, 2147483648
  %v1338 = vmul.f32 %v1337, 1.442695
  %v1339 = vpow.pop %v1338
  %v1340 = vadd.f32 %v1339, 1.0
  %v1341 = vrcp.pop %v1340
  %v1342 = vmul.f32 1.0, %v1341
  %v1343 = vtanh.pop %v1329
  %v1344 = vxor.u32 %v1330, 2147483648
  %v1345 = vmul.f32 %v1344, 1.442695
  %v1346 = vpow.pop %v1345
  %v1347 = vadd.f32 %v1346, 1.0
  %v1348 = vrcp.pop %v1347
  %v1349 = vmul.f32 1.0, %v1348
  %v1350 = vmul.f32 %v1342, %v1173
  %v1351 = vmul.f32 %v1336, %v1343
  %v1352 = vadd.f32 %v1350, %v1351
  %v1353 = vtanh.pop %v1352
  %v1354 = vmul.f32 %v1349, %v1353
  %s1355 = scalar_lea.vmem %s4, 24
  %1356 = vst [vmem:[%s1355] sm:$0xff] %v1354
  %s1357 = smul.u32 4, 4
  %s1358 = smul.addr %s1357, 8
  %s1359 = scalar_lea.vmem [#allocation4], %s1358
  %v1360 = vld [vmem:[%s1359] sm:$0xff]
  %v1361 = vld [vmem:[%s1359 + $0x8] sm:$0xff]
  %v1362 = vld [vmem:[%s1359 + $0x10] sm:$0xff]
  %v1363 = vld [vmem:[%s1359 + $0x18] sm:$0xff]
  %1364 = vmatprep.subr.mxu0 %v577
  %1365 = vmatpush1.msra.mxu0 %v576
  %1366 = vmatprep.subr.mxu0 %v581
  %1367 = vmatpush1.msra.mxu0 %v580
  %1368 = vmatprep.subr.mxu0 %v585
  %1369 = vmatpush1.msra.mxu0 %v584
  %1370 = vmatprep.subr.mxu0 %v589
  %1371 = vmatpush1.msra.mxu0 %v588
  %1372 = vmatprep.subr.mxu0 %v593
  %1373 = vmatpush1.msra.mxu0 %v592
  %1374 = vmatprep.subr.mxu0 %v597
  %1375 = vmatpush1.msra.mxu0 %v596
  %1376 = vmatprep.subr.mxu0 %v601
  %1377 = vmatpush1.msra.mxu0 %v600
  %1378 = vmatprep.subr.mxu0 %v605
  %1379 = vmatpush1.msra.mxu0 %v604
  %1380 = vmatprep.subr.mxu0 %v609
  %1381 = vmatpush1.msra.mxu0 %v608
  %1382 = vmatprep.subr.mxu0 %v613
  %1383 = vmatpush1.msra.mxu0 %v612
  %1384 = vmatprep.subr.mxu0 %v617
  %1385 = vmatpush1.msra.mxu0 %v616
  %1386 = vmatprep.subr.mxu0 %v621
  %1387 = vmatpush1.msra.mxu0 %v620
  %1388 = vmatprep.subr.mxu0 %v625
  %1389 = vmatpush1.msra.mxu0 %v624
  %1390 = vmatprep.subr.mxu0 %v629
  %1391 = vmatpush1.msra.mxu0 %v628
  %1392 = vmatprep.subr.mxu0 %v633
  %1393 = vmatpush1.msra.mxu0 %v632
  %1394 = vmatprep.subr.mxu0 %v637
  %1395 = vmatpush1.msra.mxu0 %v636
  %1396 = vmatprep.subr.mxu0 0.0
  %1397 = vmatpush1.msra.mxu0 0.0
  %1398 = vmatprep.subr.mxu0 0.0
  %1399 = vmatpush1.msra.mxu0 0.0
  %1400 = vmatprep.subr.mxu0 0.0
  %1401 = vmatpush1.msra.mxu0 0.0
  %1402 = vmatprep.subr.mxu0 0.0
  %1403 = vmatpush1.msra.mxu0 0.0
  %1404 = vmatprep.subr.mxu0 0.0
  %1405 = vmatpush1.msra.mxu0 0.0
  %1406 = vmatprep.subr.mxu0 0.0
  %1407 = vmatpush1.msra.mxu0 0.0
  %1408 = vmatprep.subr.mxu0 0.0
  %1409 = vmatpush1.msra.mxu0 0.0
  %1410 = vmatprep.subr.mxu0 0.0
  %1411 = vmatpush1.msra.mxu0 0.0
  %1412 = vmatprep.subr.mxu0 0.0
  %1413 = vmatpush1.msra.mxu0 0.0
  %1414 = vmatprep.subr.mxu0 0.0
  %1415 = vmatpush1.msra.mxu0 0.0
  %1416 = vmatprep.subr.mxu0 0.0
  %1417 = vmatpush1.msra.mxu0 0.0
  %1418 = vmatprep.subr.mxu0 0.0
  %1419 = vmatpush1.msra.mxu0 0.0
  %1420 = vmatprep.subr.mxu0 0.0
  %1421 = vmatpush1.msra.mxu0 0.0
  %1422 = vmatprep.subr.mxu0 0.0
  %1423 = vmatpush1.msra.mxu0 0.0
  %1424 = vmatprep.subr.mxu0 0.0
  %1425 = vmatpush1.msra.mxu0 0.0
  %1426 = vmatprep.subr.mxu0 0.0
  %1427 = vmatpush1.msra.mxu0 0.0
  %1428 = vmatprep.mubr.f32.mxu0 0.0
  %1429 = vmatmul.mubr.f32.gmra.mrb[0].mxu0 %v1354
  %v1430 = vpop.f32.mrb[0].mxu0
  %v1431 = vadd.f32 0.0, %v1430
  %v1432 = vpop.f32.mrb[0].mxu0
  %v1433 = vadd.f32 0.0, %v1432
  %1434 = vdwg.mxu0
  %1435 = vmatprep.subr.mxu0 %v579
  %1436 = vmatpush1.msra.mxu0 %v578
  %1437 = vmatprep.subr.mxu0 %v583
  %1438 = vmatpush1.msra.mxu0 %v582
  %1439 = vmatprep.subr.mxu0 %v587
  %1440 = vmatpush1.msra.mxu0 %v586
  %1441 = vmatprep.subr.mxu0 %v591
  %1442 = vmatpush1.msra.mxu0 %v590
  %1443 = vmatprep.subr.mxu0 %v595
  %1444 = vmatpush1.msra.mxu0 %v594
  %1445 = vmatprep.subr.mxu0 %v599
  %1446 = vmatpush1.msra.mxu0 %v598
  %1447 = vmatprep.subr.mxu0 %v603
  %1448 = vmatpush1.msra.mxu0 %v602
  %1449 = vmatprep.subr.mxu0 %v607
  %1450 = vmatpush1.msra.mxu0 %v606
  %1451 = vmatprep.subr.mxu0 %v611
  %1452 = vmatpush1.msra.mxu0 %v610
  %1453 = vmatprep.subr.mxu0 %v615
  %1454 = vmatpush1.msra.mxu0 %v614
  %1455 = vmatprep.subr.mxu0 %v619
  %1456 = vmatpush1.msra.mxu0 %v618
  %1457 = vmatprep.subr.mxu0 %v623
  %1458 = vmatpush1.msra.mxu0 %v622
  %1459 = vmatprep.subr.mxu0 %v627
  %1460 = vmatpush1.msra.mxu0 %v626
  %1461 = vmatprep.subr.mxu0 %v631
  %1462 = vmatpush1.msra.mxu0 %v630
  %1463 = vmatprep.subr.mxu0 %v635
  %1464 = vmatpush1.msra.mxu0 %v634
  %1465 = vmatprep.subr.mxu0 %v639
  %1466 = vmatpush1.msra.mxu0 %v638
  %1467 = vmatprep.subr.mxu0 0.0
  %1468 = vmatpush1.msra.mxu0 0.0
  %1469 = vmatprep.subr.mxu0 0.0
  %1470 = vmatpush1.msra.mxu0 0.0
  %1471 = vmatprep.subr.mxu0 0.0
  %1472 = vmatpush1.msra.mxu0 0.0
  %1473 = vmatprep.subr.mxu0 0.0
  %1474 = vmatpush1.msra.mxu0 0.0
  %1475 = vmatprep.subr.mxu0 0.0
  %1476 = vmatpush1.msra.mxu0 0.0
  %1477 = vmatprep.subr.mxu0 0.0
  %1478 = vmatpush1.msra.mxu0 0.0
  %1479 = vmatprep.subr.mxu0 0.0
  %1480 = vmatpush1.msra.mxu0 0.0
  %1481 = vmatprep.subr.mxu0 0.0
  %1482 = vmatpush1.msra.mxu0 0.0
  %1483 = vmatprep.subr.mxu0 0.0
  %1484 = vmatpush1.msra.mxu0 0.0
  %1485 = vmatprep.subr.mxu0 0.0
  %1486 = vmatpush1.msra.mxu0 0.0
  %1487 = vmatprep.subr.mxu0 0.0
  %1488 = vmatpush1.msra.mxu0 0.0
  %1489 = vmatprep.subr.mxu0 0.0
  %1490 = vmatpush1.msra.mxu0 0.0
  %1491 = vmatprep.subr.mxu0 0.0
  %1492 = vmatpush1.msra.mxu0 0.0
  %1493 = vmatprep.subr.mxu0 0.0
  %1494 = vmatpush1.msra.mxu0 0.0
  %1495 = vmatprep.subr.mxu0 0.0
  %1496 = vmatpush1.msra.mxu0 0.0
  %1497 = vmatprep.subr.mxu0 0.0
  %1498 = vmatpush1.msra.mxu0 0.0
  %1499 = vmatprep.mubr.f32.mxu0 0.0
  %1500 = vmatmul.mubr.f32.gmra.mrb[0].mxu0 %v1354
  %v1501 = vpop.f32.mrb[0].mxu0
  %v1502 = vadd.f32 0.0, %v1501
  %v1503 = vpop.f32.mrb[0].mxu0
  %v1504 = vadd.f32 0.0, %v1503
  %1505 = vdwg.mxu0
  %v1506 = vadd.f32 %v1360, %v1431
  %v1507 = vadd.f32 %v1361, %v1433
  %v1508 = vadd.f32 %v1362, %v1502
  %v1509 = vadd.f32 %v1363, %v1504
  %v1510 = vxor.u32 %v1506, 2147483648
  %v1511 = vmul.f32 %v1510, 1.442695
  %v1512 = vpow.pop %v1511
  %v1513 = vadd.f32 %v1512, 1.0
  %v1514 = vrcp.pop %v1513
  %v1515 = vmul.f32 1.0, %v1514
  %v1516 = vxor.u32 %v1507, 2147483648
  %v1517 = vmul.f32 %v1516, 1.442695
  %v1518 = vpow.pop %v1517
  %v1519 = vadd.f32 %v1518, 1.0
  %v1520 = vrcp.pop %v1519
  %v1521 = vmul.f32 1.0, %v1520
  %v1522 = vtanh.pop %v1508
  %v1523 = vxor.u32 %v1509, 2147483648
  %v1524 = vmul.f32 %v1523, 1.442695
  %v1525 = vpow.pop %v1524
  %v1526 = vadd.f32 %v1525, 1.0
  %v1527 = vrcp.pop %v1526
  %v1528 = vmul.f32 1.0, %v1527
  %v1529 = vmul.f32 %v1521, %v1352
  %v1530 = vmul.f32 %v1515, %v1522
  %v1531 = vadd.f32 %v1529, %v1530
  %v1532 = vtanh.pop %v1531
  %v1533 = vmul.f32 %v1528, %v1532
  %s1534 = scalar_lea.vmem %s4, 32
  %1535 = vst [vmem:[%s1534] sm:$0xff] %v1533
  %s1536 = smul.u32 5, 4
  %s1537 = smul.addr %s1536, 8
  %s1538 = scalar_lea.vmem [#allocation4], %s1537
  %v1539 = vld [vmem:[%s1538] sm:$0xff]
  %v1540 = vld [vmem:[%s1538 + $0x8] sm:$0xff]
  %v1541 = vld [vmem:[%s1538 + $0x10] sm:$0xff]
  %v1542 = vld [vmem:[%s1538 + $0x18] sm:$0xff]
  %1543 = vmatprep.subr.mxu0 %v577
  %1544 = vmatpush1.msra.mxu0 %v576
  %1545 = vmatprep.subr.mxu0 %v581
  %1546 = vmatpush1.msra.mxu0 %v580
  %1547 = vmatprep.subr.mxu0 %v585
  %1548 = vmatpush1.msra.mxu0 %v584
  %1549 = vmatprep.subr.mxu0 %v589
  %1550 = vmatpush1.msra.mxu0 %v588
  %1551 = vmatprep.subr.mxu0 %v593
  %1552 = vmatpush1.msra.mxu0 %v592
  %1553 = vmatprep.subr.mxu0 %v597
  %1554 = vmatpush1.msra.mxu0 %v596
  %1555 = vmatprep.subr.mxu0 %v601
  %1556 = vmatpush1.msra.mxu0 %v600
  %1557 = vmatprep.subr.mxu0 %v605
  %1558 = vmatpush1.msra.mxu0 %v604
  %1559 = vmatprep.subr.mxu0 %v609
  %1560 = vmatpush1.msra.mxu0 %v608
  %1561 = vmatprep.subr.mxu0 %v613
  %1562 = vmatpush1.msra.mxu0 %v612
  %1563 = vmatprep.subr.mxu0 %v617
  %1564 = vmatpush1.msra.mxu0 %v616
  %1565 = vmatprep.subr.mxu0 %v621
  %1566 = vmatpush1.msra.mxu0 %v620
  %1567 = vmatprep.subr.mxu0 %v625
  %1568 = vmatpush1.msra.mxu0 %v624
  %1569 = vmatprep.subr.mxu0 %v629
  %1570 = vmatpush1.msra.mxu0 %v628
  %1571 = vmatprep.subr.mxu0 %v633
  %1572 = vmatpush1.msra.mxu0 %v632
  %1573 = vmatprep.subr.mxu0 %v637
  %1574 = vmatpush1.msra.mxu0 %v636
  %1575 = vmatprep.subr.mxu0 0.0
  %1576 = vmatpush1.msra.mxu0 0.0
  %1577 = vmatprep.subr.mxu0 0.0
  %1578 = vmatpush1.msra.mxu0 0.0
  %1579 = vmatprep.subr.mxu0 0.0
  %1580 = vmatpush1.msra.mxu0 0.0
  %1581 = vmatprep.subr.mxu0 0.0
  %1582 = vmatpush1.msra.mxu0 0.0
  %1583 = vmatprep.subr.mxu0 0.0
  %1584 = vmatpush1.msra.mxu0 0.0
  %1585 = vmatprep.subr.mxu0 0.0
  %1586 = vmatpush1.msra.mxu0 0.0
  %1587 = vmatprep.subr.mxu0 0.0
  %1588 = vmatpush1.msra.mxu0 0.0
  %1589 = vmatprep.subr.mxu0 0.0
  %1590 = vmatpush1.msra.mxu0 0.0
  %1591 = vmatprep.subr.mxu0 0.0
  %1592 = vmatpush1.msra.mxu0 0.0
  %1593 = vmatprep.subr.mxu0 0.0
  %1594 = vmatpush1.msra.mxu0 0.0
  %1595 = vmatprep.subr.mxu0 0.0
  %1596 = vmatpush1.msra.mxu0 0.0
  %1597 = vmatprep.subr.mxu0 0.0
  %1598 = vmatpush1.msra.mxu0 0.0
  %1599 = vmatprep.subr.mxu0 0.0
  %1600 = vmatpush1.msra.mxu0 0.0
  %1601 = vmatprep.subr.mxu0 0.0
  %1602 = vmatpush1.msra.mxu0 0.0
  %1603 = vmatprep.subr.mxu0 0.0
  %1604 = vmatpush1.msra.mxu0 0.0
  %1605 = vmatprep.subr.mxu0 0.0
  %1606 = vmatpush1.msra.mxu0 0.0
  %1607 = vmatprep.mubr.f32.mxu0 0.0
  %1608 = vmatmul.mubr.f32.gmra.mrb[0].mxu0 %v1533
  %v1609 = vpop.f32.mrb[0].mxu0
  %v1610 = vadd.f32 0.0, %v1609
  %v1611 = vpop.f32.mrb[0].mxu0
  %v1612 = vadd.f32 0.0, %v1611
  %1613 = vdwg.mxu0
  %1614 = vmatprep.subr.mxu0 %v579
  %1615 = vmatpush1.msra.mxu0 %v578
  %1616 = vmatprep.subr.mxu0 %v583
  %1617 = vmatpush1.msra.mxu0 %v582
  %1618 = vmatprep.subr.mxu0 %v587
  %1619 = vmatpush1.msra.mxu0 %v586
  %1620 = vmatprep.subr.mxu0 %v591
  %1621 = vmatpush1.msra.mxu0 %v590
  %1622 = vmatprep.subr.mxu0 %v595
  %1623 = vmatpush1.msra.mxu0 %v594
  %1624 = vmatprep.subr.mxu0 %v599
  %1625 = vmatpush1.msra.mxu0 %v598
  %1626 = vmatprep.subr.mxu0 %v603
  %1627 = vmatpush1.msra.mxu0 %v602
  %1628 = vmatprep.subr.mxu0 %v607
  %1629 = vmatpush1.msra.mxu0 %v606
  %1630 = vmatprep.subr.mxu0 %v611
  %1631 = vmatpush1.msra.mxu0 %v610
  %1632 = vmatprep.subr.mxu0 %v615
  %1633 = vmatpush1.msra.mxu0 %v614
  %1634 = vmatprep.subr.mxu0 %v619
  %1635 = vmatpush1.msra.mxu0 %v618
  %1636 = vmatprep.subr.mxu0 %v623
  %1637 = vmatpush1.msra.mxu0 %v622
  %1638 = vmatprep.subr.mxu0 %v627
  %1639 = vmatpush1.msra.mxu0 %v626
  %1640 = vmatprep.subr.mxu0 %v631
  %1641 = vmatpush1.msra.mxu0 %v630
  %1642 = vmatprep.subr.mxu0 %v635
  %1643 = vmatpush1.msra.mxu0 %v634
  %1644 = vmatprep.subr.mxu0 %v639
  %1645 = vmatpush1.msra.mxu0 %v638
  %1646 = vmatprep.subr.mxu0 0.0
  %1647 = vmatpush1.msra.mxu0 0.0
  %1648 = vmatprep.subr.mxu0 0.0
  %1649 = vmatpush1.msra.mxu0 0.0
  %1650 = vmatprep.subr.mxu0 0.0
  %1651 = vmatpush1.msra.mxu0 0.0
  %1652 = vmatprep.subr.mxu0 0.0
  %1653 = vmatpush1.msra.mxu0 0.0
  %1654 = vmatprep.subr.mxu0 0.0
  %1655 = vmatpush1.msra.mxu0 0.0
  %1656 = vmatprep.subr.mxu0 0.0
  %1657 = vmatpush1.msra.mxu0 0.0
  %1658 = vmatprep.subr.mxu0 0.0
  %1659 = vmatpush1.msra.mxu0 0.0
  %1660 = vmatprep.subr.mxu0 0.0
  %1661 = vmatpush1.msra.mxu0 0.0
  %1662 = vmatprep.subr.mxu0 0.0
  %1663 = vmatpush1.msra.mxu0 0.0
  %1664 = vmatprep.subr.mxu0 0.0
  %1665 = vmatpush1.msra.mxu0 0.0
  %1666 = vmatprep.subr.mxu0 0.0
  %1667 = vmatpush1.msra.mxu0 0.0
  %1668 = vmatprep.subr.mxu0 0.0
  %1669 = vmatpush1.msra.mxu0 0.0
  %1670 = vmatprep.subr.mxu0 0.0
  %1671 = vmatpush1.msra.mxu0 0.0
  %1672 = vmatprep.subr.mxu0 0.0
  %1673 = vmatpush1.msra.mxu0 0.0
  %1674 = vmatprep.subr.mxu0 0.0
  %1675 = vmatpush1.msra.mxu0 0.0
  %1676 = vmatprep.subr.mxu0 0.0
  %1677 = vmatpush1.msra.mxu0 0.0
  %1678 = vmatprep.mubr.f32.mxu0 0.0
  %1679 = vmatmul.mubr.f32.gmra.mrb[0].mxu0 %v1533
  %v1680 = vpop.f32.mrb[0].mxu0
  %v1681 = vadd.f32 0.0, %v1680
  %v1682 = vpop.f32.mrb[0].mxu0
  %v1683 = vadd.f32 0.0, %v1682
  %1684 = vdwg.mxu0
  %v1685 = vadd.f32 %v1539, %v1610
  %v1686 = vadd.f32 %v1540, %v1612
  %v1687 = vadd.f32 %v1541, %v1681
  %v1688 = vadd.f32 %v1542, %v1683
  %v1689 = vxor.u32 %v1685, 2147483648
  %v1690 = vmul.f32 %v1689, 1.442695
  %v1691 = vpow.pop %v1690
  %v1692 = vadd.f32 %v1691, 1.0
  %v1693 = vrcp.pop %v1692
  %v1694 = vmul.f32 1.0, %v1693
  %v1695 = vxor.u32 %v1686, 2147483648
  %v1696 = vmul.f32 %v1695, 1.442695
  %v1697 = vpow.pop %v1696
  %v1698 = vadd.f32 %v1697, 1.0
  %v1699 = vrcp.pop %v1698
  %v1700 = vmul.f32 1.0, %v1699
  %v1701 = vtanh.pop %v1687
  %v1702 = vxor.u32 %v1688, 2147483648
  %v1703 = vmul.f32 %v1702, 1.442695
  %v1704 = vpow.pop %v1703
  %v1705 = vadd.f32 %v1704, 1.0
  %v1706 = vrcp.pop %v1705
  %v1707 = vmul.f32 1.0, %v1706
  %v1708 = vmul.f32 %v1700, %v1531
  %v1709 = vmul.f32 %v1694, %v1701
  %v1710 = vadd.f32 %v1708, %v1709
  %v1711 = vtanh.pop %v1710
  %v1712 = vmul.f32 %v1707, %v1711
  %s1713 = scalar_lea.vmem %s4, 40
  %1714 = vst [vmem:[%s1713] sm:$0xff] %v1712
  %s1715 = smul.u32 6, 4
  %s1716 = smul.addr %s1715, 8
  %s1717 = scalar_lea.vmem [#allocation4], %s1716
  %v1718 = vld [vmem:[%s1717] sm:$0xff]
  %v1719 = vld [vmem:[%s1717 + $0x8] sm:$0xff]
  %v1720 = vld [vmem:[%s1717 + $0x10] sm:$0xff]
  %v1721 = vld [vmem:[%s1717 + $0x18] sm:$0xff]
  %1722 = vmatprep.subr.mxu0 %v577
  %1723 = vmatpush1.msra.mxu0 %v576
  %1724 = vmatprep.subr.mxu0 %v581
  %1725 = vmatpush1.msra.mxu0 %v580
  %1726 = vmatprep.subr.mxu0 %v585
  %1727 = vmatpush1.msra.mxu0 %v584
  %1728 = vmatprep.subr.mxu0 %v589
  %1729 = vmatpush1.msra.mxu0 %v588
  %1730 = vmatprep.subr.mxu0 %v593
  %1731 = vmatpush1.msra.mxu0 %v592
  %1732 = vmatprep.subr.mxu0 %v597
  %1733 = vmatpush1.msra.mxu0 %v596
  %1734 = vmatprep.subr.mxu0 %v601
  %1735 = vmatpush1.msra.mxu0 %v600
  %1736 = vmatprep.subr.mxu0 %v605
  %1737 = vmatpush1.msra.mxu0 %v604
  %1738 = vmatprep.subr.mxu0 %v609
  %1739 = vmatpush1.msra.mxu0 %v608
  %1740 = vmatprep.subr.mxu0 %v613
  %1741 = vmatpush1.msra.mxu0 %v612
  %1742 = vmatprep.subr.mxu0 %v617
  %1743 = vmatpush1.msra.mxu0 %v616
  %1744 = vmatprep.subr.mxu0 %v621
  %1745 = vmatpush1.msra.mxu0 %v620
  %1746 = vmatprep.subr.mxu0 %v625
  %1747 = vmatpush1.msra.mxu0 %v624
  %1748 = vmatprep.subr.mxu0 %v629
  %1749 = vmatpush1.msra.mxu0 %v628
  %1750 = vmatprep.subr.mxu0 %v633
  %1751 = vmatpush1.msra.mxu0 %v632
  %1752 = vmatprep.subr.mxu0 %v637
  %1753 = vmatpush1.msra.mxu0 %v636
  %1754 = vmatprep.subr.mxu0 0.0
  %1755 = vmatpush1.msra.mxu0 0.0
  %1756 = vmatprep.subr.mxu0 0.0
  %1757 = vmatpush1.msra.mxu0 0.0
  %1758 = vmatprep.subr.mxu0 0.0
  %1759 = vmatpush1.msra.mxu0 0.0
  %1760 = vmatprep.subr.mxu0 0.0
  %1761 = vmatpush1.msra.mxu0 0.0
  %1762 = vmatprep.subr.mxu0 0.0
  %1763 = vmatpush1.msra.mxu0 0.0
  %1764 = vmatprep.subr.mxu0 0.0
  %1765 = vmatpush1.msra.mxu0 0.0
  %1766 = vmatprep.subr.mxu0 0.0
  %1767 = vmatpush1.msra.mxu0 0.0
  %1768 = vmatprep.subr.mxu0 0.0
  %1769 = vmatpush1.msra.mxu0 0.0
  %1770 = vmatprep.subr.mxu0 0.0
  %1771 = vmatpush1.msra.mxu0 0.0
  %1772 = vmatprep.subr.mxu0 0.0
  %1773 = vmatpush1.msra.mxu0 0.0
  %1774 = vmatprep.subr.mxu0 0.0
  %1775 = vmatpush1.msra.mxu0 0.0
  %1776 = vmatprep.subr.mxu0 0.0
  %1777 = vmatpush1.msra.mxu0 0.0
  %1778 = vmatprep.subr.mxu0 0.0
  %1779 = vmatpush1.msra.mxu0 0.0
  %1780 = vmatprep.subr.mxu0 0.0
  %1781 = vmatpush1.msra.mxu0 0.0
  %1782 = vmatprep.subr.mxu0 0.0
  %1783 = vmatpush1.msra.mxu0 0.0
  %1784 = vmatprep.subr.mxu0 0.0
  %1785 = vmatpush1.msra.mxu0 0.0
  %1786 = vmatprep.mubr.f32.mxu0 0.0
  %1787 = vmatmul.mubr.f32.gmra.mrb[0].mxu0 %v1712
  %v1788 = vpop.f32.mrb[0].mxu0
  %v1789 = vadd.f32 0.0, %v1788
  %v1790 = vpop.f32.mrb[0].mxu0
  %v1791 = vadd.f32 0.0, %v1790
  %1792 = vdwg.mxu0
  %1793 = vmatprep.subr.mxu0 %v579
  %1794 = vmatpush1.msra.mxu0 %v578
  %1795 = vmatprep.subr.mxu0 %v583
  %1796 = vmatpush1.msra.mxu0 %v582
  %1797 = vmatprep.subr.mxu0 %v587
  %1798 = vmatpush1.msra.mxu0 %v586
  %1799 = vmatprep.subr.mxu0 %v591
  %1800 = vmatpush1.msra.mxu0 %v590
  %1801 = vmatprep.subr.mxu0 %v595
  %1802 = vmatpush1.msra.mxu0 %v594
  %1803 = vmatprep.subr.mxu0 %v599
  %1804 = vmatpush1.msra.mxu0 %v598
  %1805 = vmatprep.subr.mxu0 %v603
  %1806 = vmatpush1.msra.mxu0 %v602
  %1807 = vmatprep.subr.mxu0 %v607
  %1808 = vmatpush1.msra.mxu0 %v606
  %1809 = vmatprep.subr.mxu0 %v611
  %1810 = vmatpush1.msra.mxu0 %v610
  %1811 = vmatprep.subr.mxu0 %v615
  %1812 = vmatpush1.msra.mxu0 %v614
  %1813 = vmatprep.subr.mxu0 %v619
  %1814 = vmatpush1.msra.mxu0 %v618
  %1815 = vmatprep.subr.mxu0 %v623
  %1816 = vmatpush1.msra.mxu0 %v622
  %1817 = vmatprep.subr.mxu0 %v627
  %1818 = vmatpush1.msra.mxu0 %v626
  %1819 = vmatprep.subr.mxu0 %v631
  %1820 = vmatpush1.msra.mxu0 %v630
  %1821 = vmatprep.subr.mxu0 %v635
  %1822 = vmatpush1.msra.mxu0 %v634
  %1823 = vmatprep.subr.mxu0 %v639
  %1824 = vmatpush1.msra.mxu0 %v638
  %1825 = vmatprep.subr.mxu0 0.0
  %1826 = vmatpush1.msra.mxu0 0.0
  %1827 = vmatprep.subr.mxu0 0.0
  %1828 = vmatpush1.msra.mxu0 0.0
  %1829 = vmatprep.subr.mxu0 0.0
  %1830 = vmatpush1.msra.mxu0 0.0
  %1831 = vmatprep.subr.mxu0 0.0
  %1832 = vmatpush1.msra.mxu0 0.0
  %1833 = vmatprep.subr.mxu0 0.0
  %1834 = vmatpush1.msra.mxu0 0.0
  %1835 = vmatprep.subr.mxu0 0.0
  %1836 = vmatpush1.msra.mxu0 0.0
  %1837 = vmatprep.subr.mxu0 0.0
  %1838 = vmatpush1.msra.mxu0 0.0
  %1839 = vmatprep.subr.mxu0 0.0
  %1840 = vmatpush1.msra.mxu0 0.0
  %1841 = vmatprep.subr.mxu0 0.0
  %1842 = vmatpush1.msra.mxu0 0.0
  %1843 = vmatprep.subr.mxu0 0.0
  %1844 = vmatpush1.msra.mxu0 0.0
  %1845 = vmatprep.subr.mxu0 0.0
  %1846 = vmatpush1.msra.mxu0 0.0
  %1847 = vmatprep.subr.mxu0 0.0
  %1848 = vmatpush1.msra.mxu0 0.0
  %1849 = vmatprep.subr.mxu0 0.0
  %1850 = vmatpush1.msra.mxu0 0.0
  %1851 = vmatprep.subr.mxu0 0.0
  %1852 = vmatpush1.msra.mxu0 0.0
  %1853 = vmatprep.subr.mxu0 0.0
  %1854 = vmatpush1.msra.mxu0 0.0
  %1855 = vmatprep.subr.mxu0 0.0
  %1856 = vmatpush1.msra.mxu0 0.0
  %1857 = vmatprep.mubr.f32.mxu0 0.0
  %1858 = vmatmul.mubr.f32.gmra.mrb[0].mxu0 %v1712
  %v1859 = vpop.f32.mrb[0].mxu0
  %v1860 = vadd.f32 0.0, %v1859
  %v1861 = vpop.f32.mrb[0].mxu0
  %v1862 = vadd.f32 0.0, %v1861
  %1863 = vdwg.mxu0
  %v1864 = vadd.f32 %v1718, %v1789
  %v1865 = vadd.f32 %v1719, %v1791
  %v1866 = vadd.f32 %v1720, %v1860
  %v1867 = vadd.f32 %v1721, %v1862
  %v1868 = vxor.u32 %v1864, 2147483648
  %v1869 = vmul.f32 %v1868, 1.442695
  %v1870 = vpow.pop %v1869
  %v1871 = vadd.f32 %v1870, 1.0
  %v1872 = vrcp.pop %v1871
  %v1873 = vmul.f32 1.0, %v1872
  %v1874 = vxor.u32 %v1865, 2147483648
  %v1875 = vmul.f32 %v1874, 1.442695
  %v1876 = vpow.pop %v1875
  %v1877 = vadd.f32 %v1876, 1.0
  %v1878 = vrcp.pop %v1877
  %v1879 = vmul.f32 1.0, %v1878
  %v1880 = vtanh.pop %v1866
  %v1881 = vxor.u32 %v1867, 2147483648
  %v1882 = vmul.f32 %v1881, 1.442695
  %v1883 = vpow.pop %v1882
  %v1884 = vadd.f32 %v1883, 1.0
  %v1885 = vrcp.pop %v1884
  %v1886 = vmul.f32 1.0, %v1885
  %v1887 = vmul.f32 %v1879, %v1710
  %v1888 = vmul.f32 %v1873, %v1880
  %v1889 = vadd.f32 %v1887, %v1888
  %v1890 = vtanh.pop %v1889
  %v1891 = vmul.f32 %v1886, %v1890
  %s1892 = scalar_lea.vmem %s4, 48
  %1893 = vst [vmem:[%s1892] sm:$0xff] %v1891
  %s1894 = smul.u32 7, 4
  %s1895 = smul.addr %s1894, 8
  %s1896 = scalar_lea.vmem [#allocation4], %s1895
  %v1897 = vld [vmem:[%s1896] sm:$0xff]
  %v1898 = vld [vmem:[%s1896 + $0x8] sm:$0xff]
  %v1899 = vld [vmem:[%s1896 + $0x10] sm:$0xff]
  %v1900 = vld [vmem:[%s1896 + $0x18] sm:$0xff]
  %1901 = vmatprep.subr.mxu0 %v577
  %1902 = vmatpush1.msra.mxu0 %v576
  %1903 = vmatprep.subr.mxu0 %v581
  %1904 = vmatpush1.msra.mxu0 %v580
  %1905 = vmatprep.subr.mxu0 %v585
  %1906 = vmatpush1.msra.mxu0 %v584
  %1907 = vmatprep.subr.mxu0 %v589
  %1908 = vmatpush1.msra.mxu0 %v588
  %1909 = vmatprep.subr.mxu0 %v593
  %1910 = vmatpush1.msra.mxu0 %v592
  %1911 = vmatprep.subr.mxu0 %v597
  %1912 = vmatpush1.msra.mxu0 %v596
  %1913 = vmatprep.subr.mxu0 %v601
  %1914 = vmatpush1.msra.mxu0 %v600
  %1915 = vmatprep.subr.mxu0 %v605
  %1916 = vmatpush1.msra.mxu0 %v604
  %1917 = vmatprep.subr.mxu0 %v609
  %1918 = vmatpush1.msra.mxu0 %v608
  %1919 = vmatprep.subr.mxu0 %v613
  %1920 = vmatpush1.msra.mxu0 %v612
  %1921 = vmatprep.subr.mxu0 %v617
  %1922 = vmatpush1.msra.mxu0 %v616
  %1923 = vmatprep.subr.mxu0 %v621
  %1924 = vmatpush1.msra.mxu0 %v620
  %1925 = vmatprep.subr.mxu0 %v625
  %1926 = vmatpush1.msra.mxu0 %v624
  %1927 = vmatprep.subr.mxu0 %v629
  %1928 = vmatpush1.msra.mxu0 %v628
  %1929 = vmatprep.subr.mxu0 %v633
  %1930 = vmatpush1.msra.mxu0 %v632
  %1931 = vmatprep.subr.mxu0 %v637
  %1932 = vmatpush1.msra.mxu0 %v636
  %1933 = vmatprep.subr.mxu0 0.0
  %1934 = vmatpush1.msra.mxu0 0.0
  %1935 = vmatprep.subr.mxu0 0.0
  %1936 = vmatpush1.msra.mxu0 0.0
  %1937 = vmatprep.subr.mxu0 0.0
  %1938 = vmatpush1.msra.mxu0 0.0
  %1939 = vmatprep.subr.mxu0 0.0
  %1940 = vmatpush1.msra.mxu0 0.0
  %1941 = vmatprep.subr.mxu0 0.0
  %1942 = vmatpush1.msra.mxu0 0.0
  %1943 = vmatprep.subr.mxu0 0.0
  %1944 = vmatpush1.msra.mxu0 0.0
  %1945 = vmatprep.subr.mxu0 0.0
  %1946 = vmatpush1.msra.mxu0 0.0
  %1947 = vmatprep.subr.mxu0 0.0
  %1948 = vmatpush1.msra.mxu0 0.0
  %1949 = vmatprep.subr.mxu0 0.0
  %1950 = vmatpush1.msra.mxu0 0.0
  %1951 = vmatprep.subr.mxu0 0.0
  %1952 = vmatpush1.msra.mxu0 0.0
  %1953 = vmatprep.subr.mxu0 0.0
  %1954 = vmatpush1.msra.mxu0 0.0
  %1955 = vmatprep.subr.mxu0 0.0
  %1956 = vmatpush1.msra.mxu0 0.0
  %1957 = vmatprep.subr.mxu0 0.0
  %1958 = vmatpush1.msra.mxu0 0.0
  %1959 = vmatprep.subr.mxu0 0.0
  %1960 = vmatpush1.msra.mxu0 0.0
  %1961 = vmatprep.subr.mxu0 0.0
  %1962 = vmatpush1.msra.mxu0 0.0
  %1963 = vmatprep.subr.mxu0 0.0
  %1964 = vmatpush1.msra.mxu0 0.0
  %1965 = vmatprep.mubr.f32.mxu0 0.0
  %1966 = vmatmul.mubr.f32.gmra.mrb[0].mxu0 %v1891
  %v1967 = vpop.f32.mrb[0].mxu0
  %v1968 = vadd.f32 0.0, %v1967
  %v1969 = vpop.f32.mrb[0].mxu0
  %v1970 = vadd.f32 0.0, %v1969
  %1971 = vdwg.mxu0
  %1972 = vmatprep.subr.mxu0 %v579
  %1973 = vmatpush1.msra.mxu0 %v578
  %1974 = vmatprep.subr.mxu0 %v583
  %1975 = vmatpush1.msra.mxu0 %v582
  %1976 = vmatprep.subr.mxu0 %v587
  %1977 = vmatpush1.msra.mxu0 %v586
  %1978 = vmatprep.subr.mxu0 %v591
  %1979 = vmatpush1.msra.mxu0 %v590
  %1980 = vmatprep.subr.mxu0 %v595
  %1981 = vmatpush1.msra.mxu0 %v594
  %1982 = vmatprep.subr.mxu0 %v599
  %1983 = vmatpush1.msra.mxu0 %v598
  %1984 = vmatprep.subr.mxu0 %v603
  %1985 = vmatpush1.msra.mxu0 %v602
  %1986 = vmatprep.subr.mxu0 %v607
  %1987 = vmatpush1.msra.mxu0 %v606
  %1988 = vmatprep.subr.mxu0 %v611
  %1989 = vmatpush1.msra.mxu0 %v610
  %1990 = vmatprep.subr.mxu0 %v615
  %1991 = vmatpush1.msra.mxu0 %v614
  %1992 = vmatprep.subr.mxu0 %v619
  %1993 = vmatpush1.msra.mxu0 %v618
  %1994 = vmatprep.subr.mxu0 %v623
  %1995 = vmatpush1.msra.mxu0 %v622
  %1996 = vmatprep.subr.mxu0 %v627
  %1997 = vmatpush1.msra.mxu0 %v626
  %1998 = vmatprep.subr.mxu0 %v631
  %1999 = vmatpush1.msra.mxu0 %v630
  %2000 = vmatprep.subr.mxu0 %v635
  %2001 = vmatpush1.msra.mxu0 %v634
  %2002 = vmatprep.subr.mxu0 %v639
  %2003 = vmatpush1.msra.mxu0 %v638
  %2004 = vmatprep.subr.mxu0 0.0
  %2005 = vmatpush1.msra.mxu0 0.0
  %2006 = vmatprep.subr.mxu0 0.0
  %2007 = vmatpush1.msra.mxu0 0.0
  %2008 = vmatprep.subr.mxu0 0.0
  %2009 = vmatpush1.msra.mxu0 0.0
  %2010 = vmatprep.subr.mxu0 0.0
  %2011 = vmatpush1.msra.mxu0 0.0
  %2012 = vmatprep.subr.mxu0 0.0
  %2013 = vmatpush1.msra.mxu0 0.0
  %2014 = vmatprep.subr.mxu0 0.0
  %2015 = vmatpush1.msra.mxu0 0.0
  %2016 = vmatprep.subr.mxu0 0.0
  %2017 = vmatpush1.msra.mxu0 0.0
  %2018 = vmatprep.subr.mxu0 0.0
  %2019 = vmatpush1.msra.mxu0 0.0
  %2020 = vmatprep.subr.mxu0 0.0
  %2021 = vmatpush1.msra.mxu0 0.0
  %2022 = vmatprep.subr.mxu0 0.0
  %2023 = vmatpush1.msra.mxu0 0.0
  %2024 = vmatprep.subr.mxu0 0.0
  %2025 = vmatpush1.msra.mxu0 0.0
  %2026 = vmatprep.subr.mxu0 0.0
  %2027 = vmatpush1.msra.mxu0 0.0
  %2028 = vmatprep.subr.mxu0 0.0
  %2029 = vmatpush1.msra.mxu0 0.0
  %2030 = vmatprep.subr.mxu0 0.0
  %2031 = vmatpush1.msra.mxu0 0.0
  %2032 = vmatprep.subr.mxu0 0.0
  %2033 = vmatpush1.msra.mxu0 0.0
  %2034 = vmatprep.subr.mxu0 0.0
  %2035 = vmatpush1.msra.mxu0 0.0
  %2036 = vmatprep.mubr.f32.mxu0 0.0
  %2037 = vmatmul.mubr.f32.gmra.mrb[0].mxu0 %v1891
  %v2038 = vpop.f32.mrb[0].mxu0
  %v2039 = vadd.f32 0.0, %v2038
  %v2040 = vpop.f32.mrb[0].mxu0
  %v2041 = vadd.f32 0.0, %v2040
  %2042 = vdwg.mxu0
  %v2043 = vadd.f32 %v1897, %v1968
  %v2044 = vadd.f32 %v1898, %v1970
  %v2045 = vadd.f32 %v1899, %v2039
  %v2046 = vadd.f32 %v1900, %v2041
  %v2047 = vxor.u32 %v2043, 2147483648
  %v2048 = vmul.f32 %v2047, 1.442695
  %v2049 = vpow.pop %v2048
  %v2050 = vadd.f32 %v2049, 1.0
  %v2051 = vrcp.pop %v2050
  %v2052 = vmul.f32 1.0, %v2051
  %v2053 = vxor.u32 %v2044, 2147483648
  %v2054 = vmul.f32 %v2053, 1.442695
  %v2055 = vpow.pop %v2054
  %v2056 = vadd.f32 %v2055, 1.0
  %v2057 = vrcp.pop %v2056
  %v2058 = vmul.f32 1.0, %v2057
  %v2059 = vtanh.pop %v2045
  %v2060 = vxor.u32 %v2046, 2147483648
  %v2061 = vmul.f32 %v2060, 1.442695
  %v2062 = vpow.pop %v2061
  %v2063 = vadd.f32 %v2062, 1.0
  %v2064 = vrcp.pop %v2063
  %v2065 = vmul.f32 1.0, %v2064
  %v2066 = vmul.f32 %v2058, %v1889
  %v2067 = vmul.f32 %v2052, %v2059
  %v2068 = vadd.f32 %v2066, %v2067
  %v2069 = vtanh.pop %v2068
  %v2070 = vmul.f32 %v2065, %v2069
  %s2071 = scalar_lea.vmem %s4, 56
  %2072 = vst [vmem:[%s2071] sm:$0xff] %v2070
  %2073 = vst [vmem:[%s5] sm:$0xff] %v2070
  %2074 = vst [vmem:[%s6] sm:$0xff] %v2068
  // Predicated region
  $region82: #{seq2seq_encoder_forward.2} parent=0 // pred_check
    _
  $region83: #{seq2seq_encoder_forward.2} parent=0 // pred_check_branch
    %2076 = sbr.rel (0) target = $region85
  $region84: #{seq2seq_encoder_forward.2} parent=0 // pred_region
    _
  $region85: #{seq2seq_encoder_forward.2} parent=0 // pred_fallthru
    _
  // Predicated region
  $region86: #{seq2seq_encoder_forward.2} parent=0 // pred_check
    _
  $region87: #{seq2seq_encoder_forward.2} parent=0 // pred_check_branch
    %2078 = sbr.rel (0) target = $region89
  $region88: #{seq2seq_encoder_forward.2} parent=0 // pred_region
    _
  $region89: #{seq2seq_encoder_forward.2} parent=0 // pred_fallthru
    _
  // Predicated region
  $region90: #{seq2seq_encoder_forward.2} parent=0 // pred_check
    _
  $region91: #{seq2seq_encoder_forward.2} parent=0 // pred_check_branch
    %2080 = sbr.rel (0) target = $region93
  $region92: #{seq2seq_encoder_forward.2} parent=0 // pred_region
    _
  $region93: #{seq2seq_encoder_forward.2} parent=0 // pred_fallthru
    _
  // Predicated region
  $region94: #{seq2seq_encoder_forward.2} parent=0 // pred_check
    _
  $region95: #{seq2seq_encoder_forward.2} parent=0 // pred_check_branch
    %2082 = sbr.rel (0) target = $region97
  $region96: #{seq2seq_encoder_forward.2} parent=0 // pred_region
    _
  $region97: #{seq2seq_encoder_forward.2} parent=0 // pred_fallthru
    _
  // Predicated region
  $region98: #{seq2seq_encoder_forward.2} parent=0 // pred_check
    _
  $region99: #{seq2seq_encoder_forward.2} parent=0 // pred_check_branch
    %2084 = sbr.rel (0) target = $region101
  $region100: #{seq2seq_encoder_forward.2} parent=0 // pred_region
    _
  $region101: #{seq2seq_encoder_forward.2} parent=0 // pred_fallthru
    _
  // Predicated region
  $region102: #{seq2seq_encoder_forward.2} parent=0 // pred_check
    _
  $region103: #{seq2seq_encoder_forward.2} parent=0 // pred_check_branch
    %2086 = sbr.rel (0) target = $region105
  $region104: #{seq2seq_encoder_forward.2} parent=0 // pred_region
    _
  $region105: #{seq2seq_encoder_forward.2} parent=0 // pred_fallthru
    _
  %2087 = vsyncmov [#allocation5]
  %s2088 = vpop.sfrf %2087
  %p2089 = scmp.eq.s32.totalorder %s2088, 0
  %p2090 = pneg %p2089
  %2092 = shalt.err (%p2090)
  %s2093 = scalar_lea.sflag [#allocation5], 1
  %2094 = vsyncmov %s2093
  %s2095 = vpop.sfrf %2094
  %p2096 = scmp.eq.s32.totalorder %s2095, 0
  %p2097 = pneg %p2096
  %2099 = shalt.err (%p2097)

// kernel: seq2seq_encoder_forward.3
$region0: #{seq2seq_encoder_forward.3}
  #allocation0 [shape = 'u32[]', space=smem, size = 0x4, offset = 0x4, fixed_abs, tag = 'smem constant byte address 0x4 - core index']
  #allocation1 [shape = 'u32[144,128]{1,0:T(1,128)}', space=vmem, size = 0x12000, scoped, tag = 'internal scratch']
  #allocation2 [shape = 'f32[128,512]{1,0:T(8,128)}', space=vmem, size = 0x40000, scoped, tag = 'scratch operand']
  #allocation3 [shape = 'f32[128,512]{1,0:T(8,128)}', space=vmem, size = 0x40000, scoped, tag = 'scratch operand']
  #allocation4 [shape = 'f32[64,512]{1,0:T(8,128)}', space=vmem, size = 0x20000, scoped, tag = 'scratch operand']
  #allocation5 [shape = 's32[2]{0}', space=sflag, size = 0x8, scoped, tag = 'scratch operand']
  #allocation6 [shape = 's32[]', space=sflag, size = 0x4, offset = 0, fixed_abs, tag = 'sflag constant byte address 0x0 - dummy sync flag']
  #allocation7 [shape = 's32[]', space=sflag, size = 0x4, offset = 0, fixed_abs, tag = 'sflag constant byte address 0x0 - dummy sync flag']
  %s0 = inlined_call_operand.vmem [shape: f32[64,128], index: 0, kind: input, shape index: {}]
  %s1 = inlined_call_operand.vmem [shape: f32[128,512], index: 1, kind: input, shape index: {}]
  %s2 = inlined_call_operand.vmem [shape: f32[128,512], index: 2, kind: input, shape index: {}]
  %s3 = inlined_call_operand.vmem [shape: f32[1,512], index: 3, kind: input, shape index: {}]
  %s4 = inlined_call_operand.vmem [shape: f32[64,128], index: 4, kind: output, shape index: {0}]
  %s5 = inlined_call_operand.vmem [shape: f32[8,128], index: 5, kind: output, shape index: {1}]
  %s6 = inlined_call_operand.vmem [shape: f32[8,128], index: 6, kind: output, shape index: {2}]
  %7 = xla_tuple %s4, %s5, %s6
  %s8 = sld [smem:[#allocation0]]
  $region106: #{seq2seq_encoder_forward.3} parent=0
    _
  %s10 = ssub.s32 1, %s8
  %s11 = scalar_select 0, %s10, %s8
  // Predicated region
  $region2: #{seq2seq_encoder_forward.3} parent=0 // pred_check
    _
  $region3: #{seq2seq_encoder_forward.3} parent=0 // pred_check_branch
    %13 = sbr.rel (0) target = $region5
  $region4: #{seq2seq_encoder_forward.3} parent=0 // pred_region
    _
  $region5: #{seq2seq_encoder_forward.3} parent=0 // pred_fallthru
    _
  // Predicated region
  $region6: #{seq2seq_encoder_forward.3} parent=0 // pred_check
    _
  $region7: #{seq2seq_encoder_forward.3} parent=0 // pred_check_branch
    %15 = sbr.rel (0) target = $region9
  $region8: #{seq2seq_encoder_forward.3} parent=0 // pred_region
    _
  $region9: #{seq2seq_encoder_forward.3} parent=0 // pred_fallthru
    _
  %p16 = scmp.eq.s32.totalorder 0, 0
  // Predicated region
  $region10: #{seq2seq_encoder_forward.3} parent=0 // pred_check
    %p17 = pneg %p16
  $region11: #{seq2seq_encoder_forward.3} parent=0 // pred_check_branch
    %19 = sbr.rel (%p17) target = $region13
  $region12: #{seq2seq_encoder_forward.3} parent=0 // pred_region
    %20 = vst [vmem:[%s5] sm:$0xff] 0.0
    %21 = vst [vmem:[%s6] sm:$0xff] 0.0
    %p23 = scmp.lt.u32.totalorder 512, 8
    %p24 = pneg %p23
    // Predicated region
    $region14: #{seq2seq_encoder_forward.3} parent=12 // pred_check
      _
    $region15: #{seq2seq_encoder_forward.3} parent=12 // pred_check_branch
      %26 = sbr.rel (%p23) target = $region17
    $region16: #{seq2seq_encoder_forward.3} parent=12 // pred_region
      %s41 = sand.u32 512, 7
      %p42 = scmp.eq.s32.totalorder %s41, 0
      // Predicated region
      $region29: #{seq2seq_encoder_forward.3} parent=16 // pred_check
        %p43 = pneg %p42
      $region30: #{seq2seq_encoder_forward.3} parent=16 // pred_check_branch
        %45 = sbr.rel (%p43) target = $region32
      $region31: #{seq2seq_encoder_forward.3} parent=16 // pred_region
        loop: start=0, step=1, limit=1
        $region33: #{seq2seq_encoder_forward.3} parent=31 // loop_pre_header
          _
        $region34: #{seq2seq_encoder_forward.3} parent=31 // loop_header
          %s47 = sphi 0, %s51
          %p48 = scmp.ge.s32.totalorder %s47, 1
          %s52 = sphi %s1, %s1
          %s53 = sphi [#allocation2], [#allocation2]
        $region35: #{seq2seq_encoder_forward.3} parent=31 // loop_header_branch
          %50 = sbr.rel (%p48) target = $region39
        $region36: #{seq2seq_encoder_forward.3} parent=31 // loop_body
          %v54 = vld [vmem:[%s52] sm:$0xff]
          %55 = vst [vmem:[%s53] sm:$0xff] %v54
          %v56 = vld [vmem:[%s52 + $0x8] sm:$0xff]
          %57 = vst [vmem:[%s53 + $0x8] sm:$0xff] %v56
          %v58 = vld [vmem:[%s52 + $0x10] sm:$0xff]
          %59 = vst [vmem:[%s53 + $0x10] sm:$0xff] %v58
          %v60 = vld [vmem:[%s52 + $0x18] sm:$0xff]
          %61 = vst [vmem:[%s53 + $0x18] sm:$0xff] %v60
          %v62 = vld [vmem:[%s52 + $0x20] sm:$0xff]
          %63 = vst [vmem:[%s53 + $0x20] sm:$0xff] %v62
          %v64 = vld [vmem:[%s52 + $0x28] sm:$0xff]
          %65 = vst [vmem:[%s53 + $0x28] sm:$0xff] %v64
          %v66 = vld [vmem:[%s52 + $0x30] sm:$0xff]
          %67 = vst [vmem:[%s53 + $0x30] sm:$0xff] %v66
          %v68 = vld [vmem:[%s52 + $0x38] sm:$0xff]
          %69 = vst [vmem:[%s53 + $0x38] sm:$0xff] %v68
          %v70 = vld [vmem:[%s52 + $0x40] sm:$0xff]
          %71 = vst [vmem:[%s53 + $0x40] sm:$0xff] %v70
          %v72 = vld [vmem:[%s52 + $0x48] sm:$0xff]
          %73 = vst [vmem:[%s53 + $0x48] sm:$0xff] %v72
          %v74 = vld [vmem:[%s52 + $0x50] sm:$0xff]
          %75 = vst [vmem:[%s53 + $0x50] sm:$0xff] %v74
          %v76 = vld [vmem:[%s52 + $0x58] sm:$0xff]
          %77 = vst [vmem:[%s53 + $0x58] sm:$0xff] %v76
          %v78 = vld [vmem:[%s52 + $0x60] sm:$0xff]
          %79 = vst [vmem:[%s53 + $0x60] sm:$0xff] %v78
          %v80 = vld [vmem:[%s52 + $0x68] sm:$0xff]
          %81 = vst [vmem:[%s53 + $0x68] sm:$0xff] %v80
          %v82 = vld [vmem:[%s52 + $0x70] sm:$0xff]
          %83 = vst [vmem:[%s53 + $0x70] sm:$0xff] %v82
          %v84 = vld [vmem:[%s52 + $0x78] sm:$0xff]
          %85 = vst [vmem:[%s53 + $0x78] sm:$0xff] %v84
          %v86 = vld [vmem:[%s52 + $0x80] sm:$0xff]
          %87 = vst [vmem:[%s53 + $0x80] sm:$0xff] %v86
          %v88 = vld [vmem:[%s52 + $0x88] sm:$0xff]
          %89 = vst [vmem:[%s53 + $0x88] sm:$0xff] %v88
          %v90 = vld [vmem:[%s52 + $0x90] sm:$0xff]
          %91 = vst [vmem:[%s53 + $0x90] sm:$0xff] %v90
          %v92 = vld [vmem:[%s52 + $0x98] sm:$0xff]
          %93 = vst [vmem:[%s53 + $0x98] sm:$0xff] %v92
          %v94 = vld [vmem:[%s52 + $0xa0] sm:$0xff]
          %95 = vst [vmem:[%s53 + $0xa0] sm:$0xff] %v94
          %v96 = vld [vmem:[%s52 + $0xa8] sm:$0xff]
          %97 = vst [vmem:[%s53 + $0xa8] sm:$0xff] %v96
          %v98 = vld [vmem:[%s52 + $0xb0] sm:$0xff]
          %99 = vst [vmem:[%s53 + $0xb0] sm:$0xff] %v98
          %v100 = vld [vmem:[%s52 + $0xb8] sm:$0xff]
          %101 = vst [vmem:[%s53 + $0xb8] sm:$0xff] %v100
          %v102 = vld [vmem:[%s52 + $0xc0] sm:$0xff]
          %103 = vst [vmem:[%s53 + $0xc0] sm:$0xff] %v102
          %v104 = vld [vmem:[%s52 + $0xc8] sm:$0xff]
          %105 = vst [vmem:[%s53 + $0xc8] sm:$0xff] %v104
          %v106 = vld [vmem:[%s52 + $0xd0] sm:$0xff]
          %107 = vst [vmem:[%s53 + $0xd0] sm:$0xff] %v106
          %v108 = vld [vmem:[%s52 + $0xd8] sm:$0xff]
          %109 = vst [vmem:[%s53 + $0xd8] sm:$0xff] %v108
          %v110 = vld [vmem:[%s52 + $0xe0] sm:$0xff]
          %111 = vst [vmem:[%s53 + $0xe0] sm:$0xff] %v110
          %v112 = vld [vmem:[%s52 + $0xe8] sm:$0xff]
          %113 = vst [vmem:[%s53 + $0xe8] sm:$0xff] %v112
          %v114 = vld [vmem:[%s52 + $0xf0] sm:$0xff]
          %115 = vst [vmem:[%s53 + $0xf0] sm:$0xff] %v114
          %v116 = vld [vmem:[%s52 + $0xf8] sm:$0xff]
          %117 = vst [vmem:[%s53 + $0xf8] sm:$0xff] %v116
          %v118 = vld [vmem:[%s52 + $0x100] sm:$0xff]
          %119 = vst [vmem:[%s53 + $0x100] sm:$0xff] %v118
          %v120 = vld [vmem:[%s52 + $0x108] sm:$0xff]
          %121 = vst [vmem:[%s53 + $0x108] sm:$0xff] %v120
          %v122 = vld [vmem:[%s52 + $0x110] sm:$0xff]
          %123 = vst [vmem:[%s53 + $0x110] sm:$0xff] %v122
          %v124 = vld [vmem:[%s52 + $0x118] sm:$0xff]
          %125 = vst [vmem:[%s53 + $0x118] sm:$0xff] %v124
          %v126 = vld [vmem:[%s52 + $0x120] sm:$0xff]
          %127 = vst [vmem:[%s53 + $0x120] sm:$0xff] %v126
          %v128 = vld [vmem:[%s52 + $0x128] sm:$0xff]
          %129 = vst [vmem:[%s53 + $0x128] sm:$0xff] %v128
          %v130 = vld [vmem:[%s52 + $0x130] sm:$0xff]
          %131 = vst [vmem:[%s53 + $0x130] sm:$0xff] %v130
          %v132 = vld [vmem:[%s52 + $0x138] sm:$0xff]
          %133 = vst [vmem:[%s53 + $0x138] sm:$0xff] %v132
          %v134 = vld [vmem:[%s52 + $0x140] sm:$0xff]
          %135 = vst [vmem:[%s53 + $0x140] sm:$0xff] %v134
          %v136 = vld [vmem:[%s52 + $0x148] sm:$0xff]
          %137 = vst [vmem:[%s53 + $0x148] sm:$0xff] %v136
          %v138 = vld [vmem:[%s52 + $0x150] sm:$0xff]
          %139 = vst [vmem:[%s53 + $0x150] sm:$0xff] %v138
          %v140 = vld [vmem:[%s52 + $0x158] sm:$0xff]
          %141 = vst [vmem:[%s53 + $0x158] sm:$0xff] %v140
          %v142 = vld [vmem:[%s52 + $0x160] sm:$0xff]
          %143 = vst [vmem:[%s53 + $0x160] sm:$0xff] %v142
          %v144 = vld [vmem:[%s52 + $0x168] sm:$0xff]
          %145 = vst [vmem:[%s53 + $0x168] sm:$0xff] %v144
          %v146 = vld [vmem:[%s52 + $0x170] sm:$0xff]
          %147 = vst [vmem:[%s53 + $0x170] sm:$0xff] %v146
          %v148 = vld [vmem:[%s52 + $0x178] sm:$0xff]
          %149 = vst [vmem:[%s53 + $0x178] sm:$0xff] %v148
          %v150 = vld [vmem:[%s52 + $0x180] sm:$0xff]
          %151 = vst [vmem:[%s53 + $0x180] sm:$0xff] %v150
          %v152 = vld [vmem:[%s52 + $0x188] sm:$0xff]
          %153 = vst [vmem:[%s53 + $0x188] sm:$0xff] %v152
          %v154 = vld [vmem:[%s52 + $0x190] sm:$0xff]
          %155 = vst [vmem:[%s53 + $0x190] sm:$0xff] %v154
          %v156 = vld [vmem:[%s52 + $0x198] sm:$0xff]
          %157 = vst [vmem:[%s53 + $0x198] sm:$0xff] %v156
          %v158 = vld [vmem:[%s52 + $0x1a0] sm:$0xff]
          %159 = vst [vmem:[%s53 + $0x1a0] sm:$0xff] %v158
          %v160 = vld [vmem:[%s52 + $0x1a8] sm:$0xff]
          %161 = vst [vmem:[%s53 + $0x1a8] sm:$0xff] %v160
          %v162 = vld [vmem:[%s52 + $0x1b0] sm:$0xff]
          %163 = vst [vmem:[%s53 + $0x1b0] sm:$0xff] %v162
          %v164 = vld [vmem:[%s52 + $0x1b8] sm:$0xff]
          %165 = vst [vmem:[%s53 + $0x1b8] sm:$0xff] %v164
          %v166 = vld [vmem:[%s52 + $0x1c0] sm:$0xff]
          %167 = vst [vmem:[%s53 + $0x1c0] sm:$0xff] %v166
          %v168 = vld [vmem:[%s52 + $0x1c8] sm:$0xff]
          %169 = vst [vmem:[%s53 + $0x1c8] sm:$0xff] %v168
          %v170 = vld [vmem:[%s52 + $0x1d0] sm:$0xff]
          %171 = vst [vmem:[%s53 + $0x1d0] sm:$0xff] %v170
          %v172 = vld [vmem:[%s52 + $0x1d8] sm:$0xff]
          %173 = vst [vmem:[%s53 + $0x1d8] sm:$0xff] %v172
          %v174 = vld [vmem:[%s52 + $0x1e0] sm:$0xff]
          %175 = vst [vmem:[%s53 + $0x1e0] sm:$0xff] %v174
          %v176 = vld [vmem:[%s52 + $0x1e8] sm:$0xff]
          %177 = vst [vmem:[%s53 + $0x1e8] sm:$0xff] %v176
          %v178 = vld [vmem:[%s52 + $0x1f0] sm:$0xff]
          %179 = vst [vmem:[%s53 + $0x1f0] sm:$0xff] %v178
          %v180 = vld [vmem:[%s52 + $0x1f8] sm:$0xff]
          %181 = vst [vmem:[%s53 + $0x1f8] sm:$0xff] %v180
        $region37: #{seq2seq_encoder_forward.3} parent=31 // loop_footer
          %s51 = sadd.s32 1, %s47
        $region38: #{seq2seq_encoder_forward.3} parent=31 // loop_footer_branch
          %46 = sbr.rel target = $region34
        $region39: #{seq2seq_encoder_forward.3} parent=31 // loop_exit
          _
      $region32: #{seq2seq_encoder_forward.3} parent=16 // pred_fallthru
        _
      %p182 = pneg %p42
      // Predicated region
      $region40: #{seq2seq_encoder_forward.3} parent=16 // pred_check
        _
      $region41: #{seq2seq_encoder_forward.3} parent=16 // pred_check_branch
        %184 = sbr.rel (%p42) target = $region43
      $region42: #{seq2seq_encoder_forward.3} parent=16 // pred_region
        %s185 = sand.u32 512, 7
      $region43: #{seq2seq_encoder_forward.3} parent=16 // pred_fallthru
        _
    $region17: #{seq2seq_encoder_forward.3} parent=12 // pred_fallthru
      _
    // Predicated region
    $region18: #{seq2seq_encoder_forward.3} parent=12 // pred_check
      %p27 = pneg %p23
    $region19: #{seq2seq_encoder_forward.3} parent=12 // pred_check_branch
      %29 = sbr.rel (%p27) target = $region21
    $region20: #{seq2seq_encoder_forward.3} parent=12 // pred_region
      %s30 = sshllo.u32 0, 512
      loop: start=0, step=1, limit=1
      $region22: #{seq2seq_encoder_forward.3} parent=20 // loop_pre_header
        _
      $region23: #{seq2seq_encoder_forward.3} parent=20 // loop_header
        %s32 = sphi 0, %s36
        %p33 = scmp.ge.s32.totalorder %s32, 1
        %s37 = sphi %s1, %s1
        %s38 = sphi [#allocation2], [#allocation2]
      $region24: #{seq2seq_encoder_forward.3} parent=20 // loop_header_branch
        %35 = sbr.rel (%p33) target = $region28
      $region25: #{seq2seq_encoder_forward.3} parent=20 // loop_body
        %v39 = vld [vmem:[%s37] sm:%s30]
        %40 = vst [vmem:[%s38] sm:%s30] %v39
      $region26: #{seq2seq_encoder_forward.3} parent=20 // loop_footer
        %s36 = sadd.s32 1, %s32
      $region27: #{seq2seq_encoder_forward.3} parent=20 // loop_footer_branch
        %31 = sbr.rel target = $region23
      $region28: #{seq2seq_encoder_forward.3} parent=20 // loop_exit
        _
    $region21: #{seq2seq_encoder_forward.3} parent=12 // pred_fallthru
      _
    // Predicated region
    $region44: #{seq2seq_encoder_forward.3} parent=12 // pred_check
      _
    $region45: #{seq2seq_encoder_forward.3} parent=12 // pred_check_branch
      %188 = sbr.rel (0) target = $region47
    $region46: #{seq2seq_encoder_forward.3} parent=12 // pred_region
      %189 = vsyncadd [#allocation5], 8192
    $region47: #{seq2seq_encoder_forward.3} parent=12 // pred_fallthru
      _
    %s190 = scalar_lea.sflag [#allocation5], 1
    %p192 = scmp.lt.u32.totalorder 512, 8
    %p193 = pneg %p192
    // Predicated region
    $region48: #{seq2seq_encoder_forward.3} parent=12 // pred_check
      _
    $region49: #{seq2seq_encoder_forward.3} parent=12 // pred_check_branch
      %195 = sbr.rel (%p192) target = $region51
    $region50: #{seq2seq_encoder_forward.3} parent=12 // pred_region
      %s210 = sand.u32 512, 7
      %p211 = scmp.eq.s32.totalorder %s210, 0
      // Predicated region
      $region63: #{seq2seq_encoder_forward.3} parent=50 // pred_check
        %p212 = pneg %p211
      $region64: #{seq2seq_encoder_forward.3} parent=50 // pred_check_branch
        %214 = sbr.rel (%p212) target = $region66
      $region65: #{seq2seq_encoder_forward.3} parent=50 // pred_region
        loop: start=0, step=1, limit=1
        $region67: #{seq2seq_encoder_forward.3} parent=65 // loop_pre_header
          _
        $region68: #{seq2seq_encoder_forward.3} parent=65 // loop_header
          %s216 = sphi 0, %s220
          %p217 = scmp.ge.s32.totalorder %s216, 1
          %s221 = sphi %s2, %s2
          %s222 = sphi [#allocation3], [#allocation3]
        $region69: #{seq2seq_encoder_forward.3} parent=65 // loop_header_branch
          %219 = sbr.rel (%p217) target = $region73
        $region70: #{seq2seq_encoder_forward.3} parent=65 // loop_body
          %v223 = vld [vmem:[%s221] sm:$0xff]
          %224 = vst [vmem:[%s222] sm:$0xff] %v223
          %v225 = vld [vmem:[%s221 + $0x8] sm:$0xff]
          %226 = vst [vmem:[%s222 + $0x8] sm:$0xff] %v225
          %v227 = vld [vmem:[%s221 + $0x10] sm:$0xff]
          %228 = vst [vmem:[%s222 + $0x10] sm:$0xff] %v227
          %v229 = vld [vmem:[%s221 + $0x18] sm:$0xff]
          %230 = vst [vmem:[%s222 + $0x18] sm:$0xff] %v229
          %v231 = vld [vmem:[%s221 + $0x20] sm:$0xff]
          %232 = vst [vmem:[%s222 + $0x20] sm:$0xff] %v231
          %v233 = vld [vmem:[%s221 + $0x28] sm:$0xff]
          %234 = vst [vmem:[%s222 + $0x28] sm:$0xff] %v233
          %v235 = vld [vmem:[%s221 + $0x30] sm:$0xff]
          %236 = vst [vmem:[%s222 + $0x30] sm:$0xff] %v235
          %v237 = vld [vmem:[%s221 + $0x38] sm:$0xff]
          %238 = vst [vmem:[%s222 + $0x38] sm:$0xff] %v237
          %v239 = vld [vmem:[%s221 + $0x40] sm:$0xff]
          %240 = vst [vmem:[%s222 + $0x40] sm:$0xff] %v239
          %v241 = vld [vmem:[%s221 + $0x48] sm:$0xff]
          %242 = vst [vmem:[%s222 + $0x48] sm:$0xff] %v241
          %v243 = vld [vmem:[%s221 + $0x50] sm:$0xff]
          %244 = vst [vmem:[%s222 + $0x50] sm:$0xff] %v243
          %v245 = vld [vmem:[%s221 + $0x58] sm:$0xff]
          %246 = vst [vmem:[%s222 + $0x58] sm:$0xff] %v245
          %v247 = vld [vmem:[%s221 + $0x60] sm:$0xff]
          %248 = vst [vmem:[%s222 + $0x60] sm:$0xff] %v247
          %v249 = vld [vmem:[%s221 + $0x68] sm:$0xff]
          %250 = vst [vmem:[%s222 + $0x68] sm:$0xff] %v249
          %v251 = vld [vmem:[%s221 + $0x70] sm:$0xff]
          %252 = vst [vmem:[%s222 + $0x70] sm:$0xff] %v251
          %v253 = vld [vmem:[%s221 + $0x78] sm:$0xff]
          %254 = vst [vmem:[%s222 + $0x78] sm:$0xff] %v253
          %v255 = vld [vmem:[%s221 + $0x80] sm:$0xff]
          %256 = vst [vmem:[%s222 + $0x80] sm:$0xff] %v255
          %v257 = vld [vmem:[%s221 + $0x88] sm:$0xff]
          %258 = vst [vmem:[%s222 + $0x88] sm:$0xff] %v257
          %v259 = vld [vmem:[%s221 + $0x90] sm:$0xff]
          %260 = vst [vmem:[%s222 + $0x90] sm:$0xff] %v259
          %v261 = vld [vmem:[%s221 + $0x98] sm:$0xff]
          %262 = vst [vmem:[%s222 + $0x98] sm:$0xff] %v261
          %v263 = vld [vmem:[%s221 + $0xa0] sm:$0xff]
          %264 = vst [vmem:[%s222 + $0xa0] sm:$0xff] %v263
          %v265 = vld [vmem:[%s221 + $0xa8] sm:$0xff]
          %266 = vst [vmem:[%s222 + $0xa8] sm:$0xff] %v265
          %v267 = vld [vmem:[%s221 + $0xb0] sm:$0xff]
          %268 = vst [vmem:[%s222 + $0xb0] sm:$0xff] %v267
          %v269 = vld [vmem:[%s221 + $0xb8] sm:$0xff]
          %270 = vst [vmem:[%s222 + $0xb8] sm:$0xff] %v269
          %v271 = vld [vmem:[%s221 + $0xc0] sm:$0xff]
          %272 = vst [vmem:[%s222 + $0xc0] sm:$0xff] %v271
          %v273 = vld [vmem:[%s221 + $0xc8] sm:$0xff]
          %274 = vst [vmem:[%s222 + $0xc8] sm:$0xff] %v273
          %v275 = vld [vmem:[%s221 + $0xd0] sm:$0xff]
          %276 = vst [vmem:[%s222 + $0xd0] sm:$0xff] %v275
          %v277 = vld [vmem:[%s221 + $0xd8] sm:$0xff]
          %278 = vst [vmem:[%s222 + $0xd8] sm:$0xff] %v277
          %v279 = vld [vmem:[%s221 + $0xe0] sm:$0xff]
          %280 = vst [vmem:[%s222 + $0xe0] sm:$0xff] %v279
          %v281 = vld [vmem:[%s221 + $0xe8] sm:$0xff]
          %282 = vst [vmem:[%s222 + $0xe8] sm:$0xff] %v281
          %v283 = vld [vmem:[%s221 + $0xf0] sm:$0xff]
          %284 = vst [vmem:[%s222 + $0xf0] sm:$0xff] %v283
          %v285 = vld [vmem:[%s221 + $0xf8] sm:$0xff]
          %286 = vst [vmem:[%s222 + $0xf8] sm:$0xff] %v285
          %v287 = vld [vmem:[%s221 + $0x100] sm:$0xff]
          %288 = vst [vmem:[%s222 + $0x100] sm:$0xff] %v287
          %v289 = vld [vmem:[%s221 + $0x108] sm:$0xff]
          %290 = vst [vmem:[%s222 + $0x108] sm:$0xff] %v289
          %v291 = vld [vmem:[%s221 + $0x110] sm:$0xff]
          %292 = vst [vmem:[%s222 + $0x110] sm:$0xff] %v291
          %v293 = vld [vmem:[%s221 + $0x118] sm:$0xff]
          %294 = vst [vmem:[%s222 + $0x118] sm:$0xff] %v293
          %v295 = vld [vmem:[%s221 + $0x120] sm:$0xff]
          %296 = vst [vmem:[%s222 + $0x120] sm:$0xff] %v295
          %v297 = vld [vmem:[%s221 + $0x128] sm:$0xff]
          %298 = vst [vmem:[%s222 + $0x128] sm:$0xff] %v297
          %v299 = vld [vmem:[%s221 + $0x130] sm:$0xff]
          %300 = vst [vmem:[%s222 + $0x130] sm:$0xff] %v299
          %v301 = vld [vmem:[%s221 + $0x138] sm:$0xff]
          %302 = vst [vmem:[%s222 + $0x138] sm:$0xff] %v301
          %v303 = vld [vmem:[%s221 + $0x140] sm:$0xff]
          %304 = vst [vmem:[%s222 + $0x140] sm:$0xff] %v303
          %v305 = vld [vmem:[%s221 + $0x148] sm:$0xff]
          %306 = vst [vmem:[%s222 + $0x148] sm:$0xff] %v305
          %v307 = vld [vmem:[%s221 + $0x150] sm:$0xff]
          %308 = vst [vmem:[%s222 + $0x150] sm:$0xff] %v307
          %v309 = vld [vmem:[%s221 + $0x158] sm:$0xff]
          %310 = vst [vmem:[%s222 + $0x158] sm:$0xff] %v309
          %v311 = vld [vmem:[%s221 + $0x160] sm:$0xff]
          %312 = vst [vmem:[%s222 + $0x160] sm:$0xff] %v311
          %v313 = vld [vmem:[%s221 + $0x168] sm:$0xff]
          %314 = vst [vmem:[%s222 + $0x168] sm:$0xff] %v313
          %v315 = vld [vmem:[%s221 + $0x170] sm:$0xff]
          %316 = vst [vmem:[%s222 + $0x170] sm:$0xff] %v315
          %v317 = vld [vmem:[%s221 + $0x178] sm:$0xff]
          %318 = vst [vmem:[%s222 + $0x178] sm:$0xff] %v317
          %v319 = vld [vmem:[%s221 + $0x180] sm:$0xff]
          %320 = vst [vmem:[%s222 + $0x180] sm:$0xff] %v319
          %v321 = vld [vmem:[%s221 + $0x188] sm:$0xff]
          %322 = vst [vmem:[%s222 + $0x188] sm:$0xff] %v321
          %v323 = vld [vmem:[%s221 + $0x190] sm:$0xff]
          %324 = vst [vmem:[%s222 + $0x190] sm:$0xff] %v323
          %v325 = vld [vmem:[%s221 + $0x198] sm:$0xff]
          %326 = vst [vmem:[%s222 + $0x198] sm:$0xff] %v325
          %v327 = vld [vmem:[%s221 + $0x1a0] sm:$0xff]
          %328 = vst [vmem:[%s222 + $0x1a0] sm:$0xff] %v327
          %v329 = vld [vmem:[%s221 + $0x1a8] sm:$0xff]
          %330 = vst [vmem:[%s222 + $0x1a8] sm:$0xff] %v329
          %v331 = vld [vmem:[%s221 + $0x1b0] sm:$0xff]
          %332 = vst [vmem:[%s222 + $0x1b0] sm:$0xff] %v331
          %v333 = vld [vmem:[%s221 + $0x1b8] sm:$0xff]
          %334 = vst [vmem:[%s222 + $0x1b8] sm:$0xff] %v333
          %v335 = vld [vmem:[%s221 + $0x1c0] sm:$0xff]
          %336 = vst [vmem:[%s222 + $0x1c0] sm:$0xff] %v335
          %v337 = vld [vmem:[%s221 + $0x1c8] sm:$0xff]
          %338 = vst [vmem:[%s222 + $0x1c8] sm:$0xff] %v337
          %v339 = vld [vmem:[%s221 + $0x1d0] sm:$0xff]
          %340 = vst [vmem:[%s222 + $0x1d0] sm:$0xff] %v339
          %v341 = vld [vmem:[%s221 + $0x1d8] sm:$0xff]
          %342 = vst [vmem:[%s222 + $0x1d8] sm:$0xff] %v341
          %v343 = vld [vmem:[%s221 + $0x1e0] sm:$0xff]
          %344 = vst [vmem:[%s222 + $0x1e0] sm:$0xff] %v343
          %v345 = vld [vmem:[%s221 + $0x1e8] sm:$0xff]
          %346 = vst [vmem:[%s222 + $0x1e8] sm:$0xff] %v345
          %v347 = vld [vmem:[%s221 + $0x1f0] sm:$0xff]
          %348 = vst [vmem:[%s222 + $0x1f0] sm:$0xff] %v347
          %v349 = vld [vmem:[%s221 + $0x1f8] sm:$0xff]
          %350 = vst [vmem:[%s222 + $0x1f8] sm:$0xff] %v349
        $region71: #{seq2seq_encoder_forward.3} parent=65 // loop_footer
          %s220 = sadd.s32 1, %s216
        $region72: #{seq2seq_encoder_forward.3} parent=65 // loop_footer_branch
          %215 = sbr.rel target = $region68
        $region73: #{seq2seq_encoder_forward.3} parent=65 // loop_exit
          _
      $region66: #{seq2seq_encoder_forward.3} parent=50 // pred_fallthru
        _
      %p351 = pneg %p211
      // Predicated region
      $region74: #{seq2seq_encoder_forward.3} parent=50 // pred_check
        _
      $region75: #{seq2seq_encoder_forward.3} parent=50 // pred_check_branch
        %353 = sbr.rel (%p211) target = $region77
      $region76: #{seq2seq_encoder_forward.3} parent=50 // pred_region
        %s354 = sand.u32 512, 7
      $region77: #{seq2seq_encoder_forward.3} parent=50 // pred_fallthru
        _
    $region51: #{seq2seq_encoder_forward.3} parent=12 // pred_fallthru
      _
    // Predicated region
    $region52: #{seq2seq_encoder_forward.3} parent=12 // pred_check
      %p196 = pneg %p192
    $region53: #{seq2seq_encoder_forward.3} parent=12 // pred_check_branch
      %198 = sbr.rel (%p196) target = $region55
    $region54: #{seq2seq_encoder_forward.3} parent=12 // pred_region
      %s199 = sshllo.u32 0, 512
      loop: start=0, step=1, limit=1
      $region56: #{seq2seq_encoder_forward.3} parent=54 // loop_pre_header
        _
      $region57: #{seq2seq_encoder_forward.3} parent=54 // loop_header
        %s201 = sphi 0, %s205
        %p202 = scmp.ge.s32.totalorder %s201, 1
        %s206 = sphi %s2, %s2
        %s207 = sphi [#allocation3], [#allocation3]
      $region58: #{seq2seq_encoder_forward.3} parent=54 // loop_header_branch
        %204 = sbr.rel (%p202) target = $region62
      $region59: #{seq2seq_encoder_forward.3} parent=54 // loop_body
        %v208 = vld [vmem:[%s206] sm:%s199]
        %209 = vst [vmem:[%s207] sm:%s199] %v208
      $region60: #{seq2seq_encoder_forward.3} parent=54 // loop_footer
        %s205 = sadd.s32 1, %s201
      $region61: #{seq2seq_encoder_forward.3} parent=54 // loop_footer_branch
        %200 = sbr.rel target = $region57
      $region62: #{seq2seq_encoder_forward.3} parent=54 // loop_exit
        _
    $region55: #{seq2seq_encoder_forward.3} parent=12 // pred_fallthru
      _
    // Predicated region
    $region78: #{seq2seq_encoder_forward.3} parent=12 // pred_check
      _
    $region79: #{seq2seq_encoder_forward.3} parent=12 // pred_check_branch
      %357 = sbr.rel (0) target = $region81
    $region80: #{seq2seq_encoder_forward.3} parent=12 // pred_region
      %358 = vsyncadd %s190, 8192
    $region81: #{seq2seq_encoder_forward.3} parent=12 // pred_fallthru
      _
    %s359 = smul.u32 8, 16
    %s360 = smul.u32 %s359, 4
    %s361 = sshll.u32 %s360, 4
    %362 = dma.done [#allocation5], %s361
    %s363 = sshll.u32 %s360, 4
    %364 = dma.done %s190, %s363
  $region13: #{seq2seq_encoder_forward.3} parent=0 // pred_fallthru
    _
  %v365 = vld [vmem:[%s0] sm:$0xff]
  %v366 = vld [vmem:[%s0 + $0x8] sm:$0xff]
  %v367 = vld [vmem:[%s0 + $0x10] sm:$0xff]
  %v368 = vld [vmem:[%s0 + $0x18] sm:$0xff]
  %v369 = vld [vmem:[%s0 + $0x20] sm:$0xff]
  %v370 = vld [vmem:[%s0 + $0x28] sm:$0xff]
  %v371 = vld [vmem:[%s0 + $0x30] sm:$0xff]
  %v372 = vld [vmem:[%s0 + $0x38] sm:$0xff]
  %v373 = vld [vmem:[#allocation2] sm:$0xff]
  %v374 = vld [vmem:[#allocation2 + $0x8] sm:$0xff]
  %v375 = vld [vmem:[#allocation2 + $0x10] sm:$0xff]
  %v376 = vld [vmem:[#allocation2 + $0x18] sm:$0xff]
  %v377 = vld [vmem:[#allocation2 + $0x20] sm:$0xff]
  %v378 = vld [vmem:[#allocation2 + $0x28] sm:$0xff]
  %v379 = vld [vmem:[#allocation2 + $0x30] sm:$0xff]
  %v380 = vld [vmem:[#allocation2 + $0x38] sm:$0xff]
  %v381 = vld [vmem:[#allocation2 + $0x40] sm:$0xff]
  %v382 = vld [vmem:[#allocation2 + $0x48] sm:$0xff]
  %v383 = vld [vmem:[#allocation2 + $0x50] sm:$0xff]
  %v384 = vld [vmem:[#allocation2 + $0x58] sm:$0xff]
  %v385 = vld [vmem:[#allocation2 + $0x60] sm:$0xff]
  %v386 = vld [vmem:[#allocation2 + $0x68] sm:$0xff]
  %v387 = vld [vmem:[#allocation2 + $0x70] sm:$0xff]
  %v388 = vld [vmem:[#allocation2 + $0x78] sm:$0xff]
  %v389 = vld [vmem:[#allocation2 + $0x80] sm:$0xff]
  %v390 = vld [vmem:[#allocation2 + $0x88] sm:$0xff]
  %v391 = vld [vmem:[#allocation2 + $0x90] sm:$0xff]
  %v392 = vld [vmem:[#allocation2 + $0x98] sm:$0xff]
  %v393 = vld [vmem:[#allocation2 + $0xa0] sm:$0xff]
  %v394 = vld [vmem:[#allocation2 + $0xa8] sm:$0xff]
  %v395 = vld [vmem:[#allocation2 + $0xb0] sm:$0xff]
  %v396 = vld [vmem:[#allocation2 + $0xb8] sm:$0xff]
  %v397 = vld [vmem:[#allocation2 + $0xc0] sm:$0xff]
  %v398 = vld [vmem:[#allocation2 + $0xc8] sm:$0xff]
  %v399 = vld [vmem:[#allocation2 + $0xd0] sm:$0xff]
  %v400 = vld [vmem:[#allocation2 + $0xd8] sm:$0xff]
  %v401 = vld [vmem:[#allocation2 + $0xe0] sm:$0xff]
  %v402 = vld [vmem:[#allocation2 + $0xe8] sm:$0xff]
  %v403 = vld [vmem:[#allocation2 + $0xf0] sm:$0xff]
  %v404 = vld [vmem:[#allocation2 + $0xf8] sm:$0xff]
  %v405 = vld [vmem:[#allocation2 + $0x100] sm:$0xff]
  %v406 = vld [vmem:[#allocation2 + $0x108] sm:$0xff]
  %v407 = vld [vmem:[#allocation2 + $0x110] sm:$0xff]
  %v408 = vld [vmem:[#allocation2 + $0x118] sm:$0xff]
  %v409 = vld [vmem:[#allocation2 + $0x120] sm:$0xff]
  %v410 = vld [vmem:[#allocation2 + $0x128] sm:$0xff]
  %v411 = vld [vmem:[#allocation2 + $0x130] sm:$0xff]
  %v412 = vld [vmem:[#allocation2 + $0x138] sm:$0xff]
  %v413 = vld [vmem:[#allocation2 + $0x140] sm:$0xff]
  %v414 = vld [vmem:[#allocation2 + $0x148] sm:$0xff]
  %v415 = vld [vmem:[#allocation2 + $0x150] sm:$0xff]
  %v416 = vld [vmem:[#allocation2 + $0x158] sm:$0xff]
  %v417 = vld [vmem:[#allocation2 + $0x160] sm:$0xff]
  %v418 = vld [vmem:[#allocation2 + $0x168] sm:$0xff]
  %v419 = vld [vmem:[#allocation2 + $0x170] sm:$0xff]
  %v420 = vld [vmem:[#allocation2 + $0x178] sm:$0xff]
  %v421 = vld [vmem:[#allocation2 + $0x180] sm:$0xff]
  %v422 = vld [vmem:[#allocation2 + $0x188] sm:$0xff]
  %v423 = vld [vmem:[#allocation2 + $0x190] sm:$0xff]
  %v424 = vld [vmem:[#allocation2 + $0x198] sm:$0xff]
  %v425 = vld [vmem:[#allocation2 + $0x1a0] sm:$0xff]
  %v426 = vld [vmem:[#allocation2 + $0x1a8] sm:$0xff]
  %v427 = vld [vmem:[#allocation2 + $0x1b0] sm:$0xff]
  %v428 = vld [vmem:[#allocation2 + $0x1b8] sm:$0xff]
  %v429 = vld [vmem:[#allocation2 + $0x1c0] sm:$0xff]
  %v430 = vld [vmem:[#allocation2 + $0x1c8] sm:$0xff]
  %v431 = vld [vmem:[#allocation2 + $0x1d0] sm:$0xff]
  %v432 = vld [vmem:[#allocation2 + $0x1d8] sm:$0xff]
  %v433 = vld [vmem:[#allocation2 + $0x1e0] sm:$0xff]
  %v434 = vld [vmem:[#allocation2 + $0x1e8] sm:$0xff]
  %v435 = vld [vmem:[#allocation2 + $0x1f0] sm:$0xff]
  %v436 = vld [vmem:[#allocation2 + $0x1f8] sm:$0xff]
  %v437 = vld [vmem:[%s3] sm:$0xf]
  %v439 = vlaneseq
  %v440 = vshrl.u32 %v439, 7
  %v441 = vsub.s32 0, %v440
  %v442 = vrot.slane %v437, %v441
  %v443 = vlaneseq
  %v444 = vshrl.u32 %v443, 7
  %v445 = vsub.s32 1, %v444
  %v446 = vrot.slane %v437, %v445
  %v447 = vlaneseq
  %v448 = vshrl.u32 %v447, 7
  %v449 = vsub.s32 2, %v448
  %v450 = vrot.slane %v437, %v449
  %v451 = vlaneseq
  %v452 = vshrl.u32 %v451, 7
  %v453 = vsub.s32 3, %v452
  %v454 = vrot.slane %v437, %v453
  %459 = vmatprep.subr.mxu0 %v374
  %460 = vmatpush1.msra.mxu0 %v373
  %461 = vmatprep.subr.mxu0 %v378
  %462 = vmatpush1.msra.mxu0 %v377
  %463 = vmatprep.subr.mxu0 %v382
  %464 = vmatpush1.msra.mxu0 %v381
  %465 = vmatprep.subr.mxu0 %v386
  %466 = vmatpush1.msra.mxu0 %v385
  %467 = vmatprep.subr.mxu0 %v390
  %468 = vmatpush1.msra.mxu0 %v389
  %469 = vmatprep.subr.mxu0 %v394
  %470 = vmatpush1.msra.mxu0 %v393
  %471 = vmatprep.subr.mxu0 %v398
  %472 = vmatpush1.msra.mxu0 %v397
  %473 = vmatprep.subr.mxu0 %v402
  %474 = vmatpush1.msra.mxu0 %v401
  %475 = vmatprep.subr.mxu0 %v406
  %476 = vmatpush1.msra.mxu0 %v405
  %477 = vmatprep.subr.mxu0 %v410
  %478 = vmatpush1.msra.mxu0 %v409
  %479 = vmatprep.subr.mxu0 %v414
  %480 = vmatpush1.msra.mxu0 %v413
  %481 = vmatprep.subr.mxu0 %v418
  %482 = vmatpush1.msra.mxu0 %v417
  %483 = vmatprep.subr.mxu0 %v422
  %484 = vmatpush1.msra.mxu0 %v421
  %485 = vmatprep.subr.mxu0 %v426
  %486 = vmatpush1.msra.mxu0 %v425
  %487 = vmatprep.subr.mxu0 %v430
  %488 = vmatpush1.msra.mxu0 %v429
  %489 = vmatprep.subr.mxu0 %v434
  %490 = vmatpush1.msra.mxu0 %v433
  %491 = vmatprep.subr.mxu0 0.0
  %492 = vmatpush1.msra.mxu0 0.0
  %493 = vmatprep.subr.mxu0 0.0
  %494 = vmatpush1.msra.mxu0 0.0
  %495 = vmatprep.subr.mxu0 0.0
  %496 = vmatpush1.msra.mxu0 0.0
  %497 = vmatprep.subr.mxu0 0.0
  %498 = vmatpush1.msra.mxu0 0.0
  %499 = vmatprep.subr.mxu0 0.0
  %500 = vmatpush1.msra.mxu0 0.0
  %501 = vmatprep.subr.mxu0 0.0
  %502 = vmatpush1.msra.mxu0 0.0
  %503 = vmatprep.subr.mxu0 0.0
  %504 = vmatpush1.msra.mxu0 0.0
  %505 = vmatprep.subr.mxu0 0.0
  %506 = vmatpush1.msra.mxu0 0.0
  %507 = vmatprep.subr.mxu0 0.0
  %508 = vmatpush1.msra.mxu0 0.0
  %509 = vmatprep.subr.mxu0 0.0
  %510 = vmatpush1.msra.mxu0 0.0
  %511 = vmatprep.subr.mxu0 0.0
  %512 = vmatpush1.msra.mxu0 0.0
  %513 = vmatprep.subr.mxu0 0.0
  %514 = vmatpush1.msra.mxu0 0.0
  %515 = vmatprep.subr.mxu0 0.0
  %516 = vmatpush1.msra.mxu0 0.0
  %517 = vmatprep.subr.mxu0 0.0
  %518 = vmatpush1.msra.mxu0 0.0
  %519 = vmatprep.subr.mxu0 0.0
  %520 = vmatpush1.msra.mxu0 0.0
  %521 = vmatprep.subr.mxu0 0.0
  %522 = vmatpush1.msra.mxu0 0.0
  %523 = vmatprep.mubr.f32.mxu0 0.0
  %524 = vmatmul.mubr.f32.gmra.mrb[0].mxu0 %v365
  %v525 = vpop.f32.mrb[0].mxu0
  %v526 = vadd.f32 %v442, %v525
  %v527 = vpop.f32.mrb[0].mxu0
  %v528 = vadd.f32 %v446, %v527
  %529 = vmatprep.mubr.f32.mxu0 0.0
  %530 = vmatmul.mubr.f32.gmra.mrb[0].mxu0 %v366
  %v531 = vpop.f32.mrb[0].mxu0
  %v532 = vadd.f32 %v442, %v531
  %v533 = vpop.f32.mrb[0].mxu0
  %v534 = vadd.f32 %v446, %v533
  %535 = vmatprep.mubr.f32.mxu0 0.0
  %536 = vmatmul.mubr.f32.gmra.mrb[0].mxu0 %v367
  %v537 = vpop.f32.mrb[0].mxu0
  %v538 = vadd.f32 %v442, %v537
  %v539 = vpop.f32.mrb[0].mxu0
  %v540 = vadd.f32 %v446, %v539
  %541 = vmatprep.mubr.f32.mxu0 0.0
  %542 = vmatmul.mubr.f32.gmra.mrb[0].mxu0 %v368
  %v543 = vpop.f32.mrb[0].mxu0
  %v544 = vadd.f32 %v442, %v543
  %v545 = vpop.f32.mrb[0].mxu0
  %v546 = vadd.f32 %v446, %v545
  %547 = vmatprep.mubr.f32.mxu0 0.0
  %548 = vmatmul.mubr.f32.gmra.mrb[0].mxu0 %v369
  %v549 = vpop.f32.mrb[0].mxu0
  %v550 = vadd.f32 %v442, %v549
  %v551 = vpop.f32.mrb[0].mxu0
  %v552 = vadd.f32 %v446, %v551
  %553 = vmatprep.mubr.f32.mxu0 0.0
  %554 = vmatmul.mubr.f32.gmra.mrb[0].mxu0 %v370
  %v555 = vpop.f32.mrb[0].mxu0
  %v556 = vadd.f32 %v442, %v555
  %v557 = vpop.f32.mrb[0].mxu0
  %v558 = vadd.f32 %v446, %v557
  %559 = vmatprep.mubr.f32.mxu0 0.0
  %560 = vmatmul.mubr.f32.gmra.mrb[0].mxu0 %v371
  %v561 = vpop.f32.mrb[0].mxu0
  %v562 = vadd.f32 %v442, %v561
  %v563 = vpop.f32.mrb[0].mxu0
  %v564 = vadd.f32 %v446, %v563
  %565 = vmatprep.mubr.f32.mxu0 0.0
  %566 = vmatmul.mubr.f32.gmra.mrb[0].mxu0 %v372
  %v567 = vpop.f32.mrb[0].mxu0
  %v568 = vadd.f32 %v442, %v567
  %v569 = vpop.f32.mrb[0].mxu0
  %v570 = vadd.f32 %v446, %v569
  %571 = vdwg.mxu0
  %572 = vmatprep.subr.mxu0 %v376
  %573 = vmatpush1.msra.mxu0 %v375
  %574 = vmatprep.subr.mxu0 %v380
  %575 = vmatpush1.msra.mxu0 %v379
  %576 = vmatprep.subr.mxu0 %v384
  %577 = vmatpush1.msra.mxu0 %v383
  %578 = vmatprep.subr.mxu0 %v388
  %579 = vmatpush1.msra.mxu0 %v387
  %580 = vmatprep.subr.mxu0 %v392
  %581 = vmatpush1.msra.mxu0 %v391
  %582 = vmatprep.subr.mxu0 %v396
  %583 = vmatpush1.msra.mxu0 %v395
  %584 = vmatprep.subr.mxu0 %v400
  %585 = vmatpush1.msra.mxu0 %v399
  %586 = vmatprep.subr.mxu0 %v404
  %587 = vmatpush1.msra.mxu0 %v403
  %588 = vmatprep.subr.mxu0 %v408
  %589 = vmatpush1.msra.mxu0 %v407
  %590 = vmatprep.subr.mxu0 %v412
  %591 = vmatpush1.msra.mxu0 %v411
  %592 = vmatprep.subr.mxu0 %v416
  %593 = vmatpush1.msra.mxu0 %v415
  %594 = vmatprep.subr.mxu0 %v420
  %595 = vmatpush1.msra.mxu0 %v419
  %596 = vmatprep.subr.mxu0 %v424
  %597 = vmatpush1.msra.mxu0 %v423
  %598 = vmatprep.subr.mxu0 %v428
  %599 = vmatpush1.msra.mxu0 %v427
  %600 = vmatprep.subr.mxu0 %v432
  %601 = vmatpush1.msra.mxu0 %v431
  %602 = vmatprep.subr.mxu0 %v436
  %603 = vmatpush1.msra.mxu0 %v435
  %604 = vmatprep.subr.mxu0 0.0
  %605 = vmatpush1.msra.mxu0 0.0
  %606 = vmatprep.subr.mxu0 0.0
  %607 = vmatpush1.msra.mxu0 0.0
  %608 = vmatprep.subr.mxu0 0.0
  %609 = vmatpush1.msra.mxu0 0.0
  %610 = vmatprep.subr.mxu0 0.0
  %611 = vmatpush1.msra.mxu0 0.0
  %612 = vmatprep.subr.mxu0 0.0
  %613 = vmatpush1.msra.mxu0 0.0
  %614 = vmatprep.subr.mxu0 0.0
  %615 = vmatpush1.msra.mxu0 0.0
  %616 = vmatprep.subr.mxu0 0.0
  %617 = vmatpush1.msra.mxu0 0.0
  %618 = vmatprep.subr.mxu0 0.0
  %619 = vmatpush1.msra.mxu0 0.0
  %620 = vmatprep.subr.mxu0 0.0
  %621 = vmatpush1.msra.mxu0 0.0
  %622 = vmatprep.subr.mxu0 0.0
  %623 = vmatpush1.msra.mxu0 0.0
  %624 = vmatprep.subr.mxu0 0.0
  %625 = vmatpush1.msra.mxu0 0.0
  %626 = vmatprep.subr.mxu0 0.0
  %627 = vmatpush1.msra.mxu0 0.0
  %628 = vmatprep.subr.mxu0 0.0
  %629 = vmatpush1.msra.mxu0 0.0
  %630 = vmatprep.subr.mxu0 0.0
  %631 = vmatpush1.msra.mxu0 0.0
  %632 = vmatprep.subr.mxu0 0.0
  %633 = vmatpush1.msra.mxu0 0.0
  %634 = vmatprep.subr.mxu0 0.0
  %635 = vmatpush1.msra.mxu0 0.0
  %636 = vmatprep.mubr.f32.mxu0 0.0
  %637 = vmatmul.mubr.f32.gmra.mrb[0].mxu0 %v365
  %v638 = vpop.f32.mrb[0].mxu0
  %v639 = vadd.f32 %v450, %v638
  %v640 = vpop.f32.mrb[0].mxu0
  %v641 = vadd.f32 %v454, %v640
  %642 = vmatprep.mubr.f32.mxu0 0.0
  %643 = vmatmul.mubr.f32.gmra.mrb[0].mxu0 %v366
  %v644 = vpop.f32.mrb[0].mxu0
  %v645 = vadd.f32 %v450, %v644
  %v646 = vpop.f32.mrb[0].mxu0
  %v647 = vadd.f32 %v454, %v646
  %648 = vmatprep.mubr.f32.mxu0 0.0
  %649 = vmatmul.mubr.f32.gmra.mrb[0].mxu0 %v367
  %v650 = vpop.f32.mrb[0].mxu0
  %v651 = vadd.f32 %v450, %v650
  %v652 = vpop.f32.mrb[0].mxu0
  %v653 = vadd.f32 %v454, %v652
  %654 = vmatprep.mubr.f32.mxu0 0.0
  %655 = vmatmul.mubr.f32.gmra.mrb[0].mxu0 %v368
  %v656 = vpop.f32.mrb[0].mxu0
  %v657 = vadd.f32 %v450, %v656
  %v658 = vpop.f32.mrb[0].mxu0
  %v659 = vadd.f32 %v454, %v658
  %660 = vmatprep.mubr.f32.mxu0 0.0
  %661 = vmatmul.mubr.f32.gmra.mrb[0].mxu0 %v369
  %v662 = vpop.f32.mrb[0].mxu0
  %v663 = vadd.f32 %v450, %v662
  %v664 = vpop.f32.mrb[0].mxu0
  %v665 = vadd.f32 %v454, %v664
  %666 = vmatprep.mubr.f32.mxu0 0.0
  %667 = vmatmul.mubr.f32.gmra.mrb[0].mxu0 %v370
  %v668 = vpop.f32.mrb[0].mxu0
  %v669 = vadd.f32 %v450, %v668
  %v670 = vpop.f32.mrb[0].mxu0
  %v671 = vadd.f32 %v454, %v670
  %672 = vmatprep.mubr.f32.mxu0 0.0
  %673 = vmatmul.mubr.f32.gmra.mrb[0].mxu0 %v371
  %v674 = vpop.f32.mrb[0].mxu0
  %v675 = vadd.f32 %v450, %v674
  %v676 = vpop.f32.mrb[0].mxu0
  %v677 = vadd.f32 %v454, %v676
  %678 = vmatprep.mubr.f32.mxu0 0.0
  %679 = vmatmul.mubr.f32.gmra.mrb[0].mxu0 %v372
  %v680 = vpop.f32.mrb[0].mxu0
  %v681 = vadd.f32 %v450, %v680
  %v682 = vpop.f32.mrb[0].mxu0
  %v683 = vadd.f32 %v454, %v682
  %684 = vdwg.mxu0
  %685 = vst [vmem:[#allocation4] sm:$0xff] %v526
  %686 = vst [vmem:[#allocation4 + $0x8] sm:$0xff] %v528
  %687 = vst [vmem:[#allocation4 + $0x10] sm:$0xff] %v639
  %688 = vst [vmem:[#allocation4 + $0x18] sm:$0xff] %v641
  %689 = vst [vmem:[#allocation4 + $0x20] sm:$0xff] %v532
  %690 = vst [vmem:[#allocation4 + $0x28] sm:$0xff] %v534
  %691 = vst [vmem:[#allocation4 + $0x30] sm:$0xff] %v645
  %692 = vst [vmem:[#allocation4 + $0x38] sm:$0xff] %v647
  %693 = vst [vmem:[#allocation4 + $0x40] sm:$0xff] %v538
  %694 = vst [vmem:[#allocation4 + $0x48] sm:$0xff] %v540
  %695 = vst [vmem:[#allocation4 + $0x50] sm:$0xff] %v651
  %696 = vst [vmem:[#allocation4 + $0x58] sm:$0xff] %v653
  %697 = vst [vmem:[#allocation4 + $0x60] sm:$0xff] %v544
  %698 = vst [vmem:[#allocation4 + $0x68] sm:$0xff] %v546
  %699 = vst [vmem:[#allocation4 + $0x70] sm:$0xff] %v657
  %700 = vst [vmem:[#allocation4 + $0x78] sm:$0xff] %v659
  %701 = vst [vmem:[#allocation4 + $0x80] sm:$0xff] %v550
  %702 = vst [vmem:[#allocation4 + $0x88] sm:$0xff] %v552
  %703 = vst [vmem:[#allocation4 + $0x90] sm:$0xff] %v663
  %704 = vst [vmem:[#allocation4 + $0x98] sm:$0xff] %v665
  %705 = vst [vmem:[#allocation4 + $0xa0] sm:$0xff] %v556
  %706 = vst [vmem:[#allocation4 + $0xa8] sm:$0xff] %v558
  %707 = vst [vmem:[#allocation4 + $0xb0] sm:$0xff] %v669
  %708 = vst [vmem:[#allocation4 + $0xb8] sm:$0xff] %v671
  %709 = vst [vmem:[#allocation4 + $0xc0] sm:$0xff] %v562
  %710 = vst [vmem:[#allocation4 + $0xc8] sm:$0xff] %v564
  %711 = vst [vmem:[#allocation4 + $0xd0] sm:$0xff] %v675
  %712 = vst [vmem:[#allocation4 + $0xd8] sm:$0xff] %v677
  %713 = vst [vmem:[#allocation4 + $0xe0] sm:$0xff] %v568
  %714 = vst [vmem:[#allocation4 + $0xe8] sm:$0xff] %v570
  %715 = vst [vmem:[#allocation4 + $0xf0] sm:$0xff] %v681
  %716 = vst [vmem:[#allocation4 + $0xf8] sm:$0xff] %v683
  %v717 = vld [vmem:[#allocation3] sm:$0xff]
  %v718 = vld [vmem:[#allocation3 + $0x8] sm:$0xff]
  %v719 = vld [vmem:[#allocation3 + $0x10] sm:$0xff]
  %v720 = vld [vmem:[#allocation3 + $0x18] sm:$0xff]
  %v721 = vld [vmem:[#allocation3 + $0x20] sm:$0xff]
  %v722 = vld [vmem:[#allocation3 + $0x28] sm:$0xff]
  %v723 = vld [vmem:[#allocation3 + $0x30] sm:$0xff]
  %v724 = vld [vmem:[#allocation3 + $0x38] sm:$0xff]
  %v725 = vld [vmem:[#allocation3 + $0x40] sm:$0xff]
  %v726 = vld [vmem:[#allocation3 + $0x48] sm:$0xff]
  %v727 = vld [vmem:[#allocation3 + $0x50] sm:$0xff]
  %v728 = vld [vmem:[#allocation3 + $0x58] sm:$0xff]
  %v729 = vld [vmem:[#allocation3 + $0x60] sm:$0xff]
  %v730 = vld [vmem:[#allocation3 + $0x68] sm:$0xff]
  %v731 = vld [vmem:[#allocation3 + $0x70] sm:$0xff]
  %v732 = vld [vmem:[#allocation3 + $0x78] sm:$0xff]
  %v733 = vld [vmem:[#allocation3 + $0x80] sm:$0xff]
  %v734 = vld [vmem:[#allocation3 + $0x88] sm:$0xff]
  %v735 = vld [vmem:[#allocation3 + $0x90] sm:$0xff]
  %v736 = vld [vmem:[#allocation3 + $0x98] sm:$0xff]
  %v737 = vld [vmem:[#allocation3 + $0xa0] sm:$0xff]
  %v738 = vld [vmem:[#allocation3 + $0xa8] sm:$0xff]
  %v739 = vld [vmem:[#allocation3 + $0xb0] sm:$0xff]
  %v740 = vld [vmem:[#allocation3 + $0xb8] sm:$0xff]
  %v741 = vld [vmem:[#allocation3 + $0xc0] sm:$0xff]
  %v742 = vld [vmem:[#allocation3 + $0xc8] sm:$0xff]
  %v743 = vld [vmem:[#allocation3 + $0xd0] sm:$0xff]
  %v744 = vld [vmem:[#allocation3 + $0xd8] sm:$0xff]
  %v745 = vld [vmem:[#allocation3 + $0xe0] sm:$0xff]
  %v746 = vld [vmem:[#allocation3 + $0xe8] sm:$0xff]
  %v747 = vld [vmem:[#allocation3 + $0xf0] sm:$0xff]
  %v748 = vld [vmem:[#allocation3 + $0xf8] sm:$0xff]
  %v749 = vld [vmem:[#allocation3 + $0x100] sm:$0xff]
  %v750 = vld [vmem:[#allocation3 + $0x108] sm:$0xff]
  %v751 = vld [vmem:[#allocation3 + $0x110] sm:$0xff]
  %v752 = vld [vmem:[#allocation3 + $0x118] sm:$0xff]
  %v753 = vld [vmem:[#allocation3 + $0x120] sm:$0xff]
  %v754 = vld [vmem:[#allocation3 + $0x128] sm:$0xff]
  %v755 = vld [vmem:[#allocation3 + $0x130] sm:$0xff]
  %v756 = vld [vmem:[#allocation3 + $0x138] sm:$0xff]
  %v757 = vld [vmem:[#allocation3 + $0x140] sm:$0xff]
  %v758 = vld [vmem:[#allocation3 + $0x148] sm:$0xff]
  %v759 = vld [vmem:[#allocation3 + $0x150] sm:$0xff]
  %v760 = vld [vmem:[#allocation3 + $0x158] sm:$0xff]
  %v761 = vld [vmem:[#allocation3 + $0x160] sm:$0xff]
  %v762 = vld [vmem:[#allocation3 + $0x168] sm:$0xff]
  %v763 = vld [vmem:[#allocation3 + $0x170] sm:$0xff]
  %v764 = vld [vmem:[#allocation3 + $0x178] sm:$0xff]
  %v765 = vld [vmem:[#allocation3 + $0x180] sm:$0xff]
  %v766 = vld [vmem:[#allocation3 + $0x188] sm:$0xff]
  %v767 = vld [vmem:[#allocation3 + $0x190] sm:$0xff]
  %v768 = vld [vmem:[#allocation3 + $0x198] sm:$0xff]
  %v769 = vld [vmem:[#allocation3 + $0x1a0] sm:$0xff]
  %v770 = vld [vmem:[#allocation3 + $0x1a8] sm:$0xff]
  %v771 = vld [vmem:[#allocation3 + $0x1b0] sm:$0xff]
  %v772 = vld [vmem:[#allocation3 + $0x1b8] sm:$0xff]
  %v773 = vld [vmem:[#allocation3 + $0x1c0] sm:$0xff]
  %v774 = vld [vmem:[#allocation3 + $0x1c8] sm:$0xff]
  %v775 = vld [vmem:[#allocation3 + $0x1d0] sm:$0xff]
  %v776 = vld [vmem:[#allocation3 + $0x1d8] sm:$0xff]
  %v777 = vld [vmem:[#allocation3 + $0x1e0] sm:$0xff]
  %v778 = vld [vmem:[#allocation3 + $0x1e8] sm:$0xff]
  %v779 = vld [vmem:[#allocation3 + $0x1f0] sm:$0xff]
  %v780 = vld [vmem:[#allocation3 + $0x1f8] sm:$0xff]
  %v781 = vld [vmem:[%s5] sm:$0xff]
  %v782 = vld [vmem:[%s6] sm:$0xff]
  %s783 = smul.u32 0, 4
  %s784 = smul.addr %s783, 8
  %s785 = scalar_lea.vmem [#allocation4], %s784
  %v786 = vld [vmem:[%s785] sm:$0xff]
  %v787 = vld [vmem:[%s785 + $0x8] sm:$0xff]
  %v788 = vld [vmem:[%s785 + $0x10] sm:$0xff]
  %v789 = vld [vmem:[%s785 + $0x18] sm:$0xff]
  %790 = vmatprep.subr.mxu0 %v718
  %791 = vmatpush1.msra.mxu0 %v717
  %792 = vmatprep.subr.mxu0 %v722
  %793 = vmatpush1.msra.mxu0 %v721
  %794 = vmatprep.subr.mxu0 %v726
  %795 = vmatpush1.msra.mxu0 %v725
  %796 = vmatprep.subr.mxu0 %v730
  %797 = vmatpush1.msra.mxu0 %v729
  %798 = vmatprep.subr.mxu0 %v734
  %799 = vmatpush1.msra.mxu0 %v733
  %800 = vmatprep.subr.mxu0 %v738
  %801 = vmatpush1.msra.mxu0 %v737
  %802 = vmatprep.subr.mxu0 %v742
  %803 = vmatpush1.msra.mxu0 %v741
  %804 = vmatprep.subr.mxu0 %v746
  %805 = vmatpush1.msra.mxu0 %v745
  %806 = vmatprep.subr.mxu0 %v750
  %807 = vmatpush1.msra.mxu0 %v749
  %808 = vmatprep.subr.mxu0 %v754
  %809 = vmatpush1.msra.mxu0 %v753
  %810 = vmatprep.subr.mxu0 %v758
  %811 = vmatpush1.msra.mxu0 %v757
  %812 = vmatprep.subr.mxu0 %v762
  %813 = vmatpush1.msra.mxu0 %v761
  %814 = vmatprep.subr.mxu0 %v766
  %815 = vmatpush1.msra.mxu0 %v765
  %816 = vmatprep.subr.mxu0 %v770
  %817 = vmatpush1.msra.mxu0 %v769
  %818 = vmatprep.subr.mxu0 %v774
  %819 = vmatpush1.msra.mxu0 %v773
  %820 = vmatprep.subr.mxu0 %v778
  %821 = vmatpush1.msra.mxu0 %v777
  %822 = vmatprep.subr.mxu0 0.0
  %823 = vmatpush1.msra.mxu0 0.0
  %824 = vmatprep.subr.mxu0 0.0
  %825 = vmatpush1.msra.mxu0 0.0
  %826 = vmatprep.subr.mxu0 0.0
  %827 = vmatpush1.msra.mxu0 0.0
  %828 = vmatprep.subr.mxu0 0.0
  %829 = vmatpush1.msra.mxu0 0.0
  %830 = vmatprep.subr.mxu0 0.0
  %831 = vmatpush1.msra.mxu0 0.0
  %832 = vmatprep.subr.mxu0 0.0
  %833 = vmatpush1.msra.mxu0 0.0
  %834 = vmatprep.subr.mxu0 0.0
  %835 = vmatpush1.msra.mxu0 0.0
  %836 = vmatprep.subr.mxu0 0.0
  %837 = vmatpush1.msra.mxu0 0.0
  %838 = vmatprep.subr.mxu0 0.0
  %839 = vmatpush1.msra.mxu0 0.0
  %840 = vmatprep.subr.mxu0 0.0
  %841 = vmatpush1.msra.mxu0 0.0
  %842 = vmatprep.subr.mxu0 0.0
  %843 = vmatpush1.msra.mxu0 0.0
  %844 = vmatprep.subr.mxu0 0.0
  %845 = vmatpush1.msra.mxu0 0.0
  %846 = vmatprep.subr.mxu0 0.0
  %847 = vmatpush1.msra.mxu0 0.0
  %848 = vmatprep.subr.mxu0 0.0
  %849 = vmatpush1.msra.mxu0 0.0
  %850 = vmatprep.subr.mxu0 0.0
  %851 = vmatpush1.msra.mxu0 0.0
  %852 = vmatprep.subr.mxu0 0.0
  %853 = vmatpush1.msra.mxu0 0.0
  %854 = vmatprep.mubr.f32.mxu0 0.0
  %855 = vmatmul.mubr.f32.gmra.mrb[0].mxu0 %v781
  %v856 = vpop.f32.mrb[0].mxu0
  %v857 = vadd.f32 0.0, %v856
  %v858 = vpop.f32.mrb[0].mxu0
  %v859 = vadd.f32 0.0, %v858
  %860 = vdwg.mxu0
  %861 = vmatprep.subr.mxu0 %v720
  %862 = vmatpush1.msra.mxu0 %v719
  %863 = vmatprep.subr.mxu0 %v724
  %864 = vmatpush1.msra.mxu0 %v723
  %865 = vmatprep.subr.mxu0 %v728
  %866 = vmatpush1.msra.mxu0 %v727
  %867 = vmatprep.subr.mxu0 %v732
  %868 = vmatpush1.msra.mxu0 %v731
  %869 = vmatprep.subr.mxu0 %v736
  %870 = vmatpush1.msra.mxu0 %v735
  %871 = vmatprep.subr.mxu0 %v740
  %872 = vmatpush1.msra.mxu0 %v739
  %873 = vmatprep.subr.mxu0 %v744
  %874 = vmatpush1.msra.mxu0 %v743
  %875 = vmatprep.subr.mxu0 %v748
  %876 = vmatpush1.msra.mxu0 %v747
  %877 = vmatprep.subr.mxu0 %v752
  %878 = vmatpush1.msra.mxu0 %v751
  %879 = vmatprep.subr.mxu0 %v756
  %880 = vmatpush1.msra.mxu0 %v755
  %881 = vmatprep.subr.mxu0 %v760
  %882 = vmatpush1.msra.mxu0 %v759
  %883 = vmatprep.subr.mxu0 %v764
  %884 = vmatpush1.msra.mxu0 %v763
  %885 = vmatprep.subr.mxu0 %v768
  %886 = vmatpush1.msra.mxu0 %v767
  %887 = vmatprep.subr.mxu0 %v772
  %888 = vmatpush1.msra.mxu0 %v771
  %889 = vmatprep.subr.mxu0 %v776
  %890 = vmatpush1.msra.mxu0 %v775
  %891 = vmatprep.subr.mxu0 %v780
  %892 = vmatpush1.msra.mxu0 %v779
  %893 = vmatprep.subr.mxu0 0.0
  %894 = vmatpush1.msra.mxu0 0.0
  %895 = vmatprep.subr.mxu0 0.0
  %896 = vmatpush1.msra.mxu0 0.0
  %897 = vmatprep.subr.mxu0 0.0
  %898 = vmatpush1.msra.mxu0 0.0
  %899 = vmatprep.subr.mxu0 0.0
  %900 = vmatpush1.msra.mxu0 0.0
  %901 = vmatprep.subr.mxu0 0.0
  %902 = vmatpush1.msra.mxu0 0.0
  %903 = vmatprep.subr.mxu0 0.0
  %904 = vmatpush1.msra.mxu0 0.0
  %905 = vmatprep.subr.mxu0 0.0
  %906 = vmatpush1.msra.mxu0 0.0
  %907 = vmatprep.subr.mxu0 0.0
  %908 = vmatpush1.msra.mxu0 0.0
  %909 = vmatprep.subr.mxu0 0.0
  %910 = vmatpush1.msra.mxu0 0.0
  %911 = vmatprep.subr.mxu0 0.0
  %912 = vmatpush1.msra.mxu0 0.0
  %913 = vmatprep.subr.mxu0 0.0
  %914 = vmatpush1.msra.mxu0 0.0
  %915 = vmatprep.subr.mxu0 0.0
  %916 = vmatpush1.msra.mxu0 0.0
  %917 = vmatprep.subr.mxu0 0.0
  %918 = vmatpush1.msra.mxu0 0.0
  %919 = vmatprep.subr.mxu0 0.0
  %920 = vmatpush1.msra.mxu0 0.0
  %921 = vmatprep.subr.mxu0 0.0
  %922 = vmatpush1.msra.mxu0 0.0
  %923 = vmatprep.subr.mxu0 0.0
  %924 = vmatpush1.msra.mxu0 0.0
  %925 = vmatprep.mubr.f32.mxu0 0.0
  %926 = vmatmul.mubr.f32.gmra.mrb[0].mxu0 %v781
  %v927 = vpop.f32.mrb[0].mxu0
  %v928 = vadd.f32 0.0, %v927
  %v929 = vpop.f32.mrb[0].mxu0
  %v930 = vadd.f32 0.0, %v929
  %931 = vdwg.mxu0
  %v932 = vadd.f32 %v786, %v857
  %v933 = vadd.f32 %v787, %v859
  %v934 = vadd.f32 %v788, %v928
  %v935 = vadd.f32 %v789, %v930
  %v936 = vxor.u32 %v932, 2147483648
  %v937 = vmul.f32 %v936, 1.442695
  %v938 = vpow.pop %v937
  %v939 = vadd.f32 %v938, 1.0
  %v940 = vrcp.pop %v939
  %v941 = vmul.f32 1.0, %v940
  %v942 = vxor.u32 %v933, 2147483648
  %v943 = vmul.f32 %v942, 1.442695
  %v944 = vpow.pop %v943
  %v945 = vadd.f32 %v944, 1.0
  %v946 = vrcp.pop %v945
  %v947 = vmul.f32 1.0, %v946
  %v948 = vtanh.pop %v934
  %v949 = vxor.u32 %v935, 2147483648
  %v950 = vmul.f32 %v949, 1.442695
  %v951 = vpow.pop %v950
  %v952 = vadd.f32 %v951, 1.0
  %v953 = vrcp.pop %v952
  %v954 = vmul.f32 1.0, %v953
  %v955 = vmul.f32 %v947, %v782
  %v956 = vmul.f32 %v941, %v948
  %v957 = vadd.f32 %v955, %v956
  %v958 = vtanh.pop %v957
  %v959 = vmul.f32 %v954, %v958
  %960 = vst [vmem:[%s4] sm:$0xff] %v959
  %s961 = smul.u32 1, 4
  %s962 = smul.addr %s961, 8
  %s963 = scalar_lea.vmem [#allocation4], %s962
  %v964 = vld [vmem:[%s963] sm:$0xff]
  %v965 = vld [vmem:[%s963 + $0x8] sm:$0xff]
  %v966 = vld [vmem:[%s963 + $0x10] sm:$0xff]
  %v967 = vld [vmem:[%s963 + $0x18] sm:$0xff]
  %968 = vmatprep.subr.mxu0 %v718
  %969 = vmatpush1.msra.mxu0 %v717
  %970 = vmatprep.subr.mxu0 %v722
  %971 = vmatpush1.msra.mxu0 %v721
  %972 = vmatprep.subr.mxu0 %v726
  %973 = vmatpush1.msra.mxu0 %v725
  %974 = vmatprep.subr.mxu0 %v730
  %975 = vmatpush1.msra.mxu0 %v729
  %976 = vmatprep.subr.mxu0 %v734
  %977 = vmatpush1.msra.mxu0 %v733
  %978 = vmatprep.subr.mxu0 %v738
  %979 = vmatpush1.msra.mxu0 %v737
  %980 = vmatprep.subr.mxu0 %v742
  %981 = vmatpush1.msra.mxu0 %v741
  %982 = vmatprep.subr.mxu0 %v746
  %983 = vmatpush1.msra.mxu0 %v745
  %984 = vmatprep.subr.mxu0 %v750
  %985 = vmatpush1.msra.mxu0 %v749
  %986 = vmatprep.subr.mxu0 %v754
  %987 = vmatpush1.msra.mxu0 %v753
  %988 = vmatprep.subr.mxu0 %v758
  %989 = vmatpush1.msra.mxu0 %v757
  %990 = vmatprep.subr.mxu0 %v762
  %991 = vmatpush1.msra.mxu0 %v761
  %992 = vmatprep.subr.mxu0 %v766
  %993 = vmatpush1.msra.mxu0 %v765
  %994 = vmatprep.subr.mxu0 %v770
  %995 = vmatpush1.msra.mxu0 %v769
  %996 = vmatprep.subr.mxu0 %v774
  %997 = vmatpush1.msra.mxu0 %v773
  %998 = vmatprep.subr.mxu0 %v778
  %999 = vmatpush1.msra.mxu0 %v777
  %1000 = vmatprep.subr.mxu0 0.0
  %1001 = vmatpush1.msra.mxu0 0.0
  %1002 = vmatprep.subr.mxu0 0.0
  %1003 = vmatpush1.msra.mxu0 0.0
  %1004 = vmatprep.subr.mxu0 0.0
  %1005 = vmatpush1.msra.mxu0 0.0
  %1006 = vmatprep.subr.mxu0 0.0
  %1007 = vmatpush1.msra.mxu0 0.0
  %1008 = vmatprep.subr.mxu0 0.0
  %1009 = vmatpush1.msra.mxu0 0.0
  %1010 = vmatprep.subr.mxu0 0.0
  %1011 = vmatpush1.msra.mxu0 0.0
  %1012 = vmatprep.subr.mxu0 0.0
  %1013 = vmatpush1.msra.mxu0 0.0
  %1014 = vmatprep.subr.mxu0 0.0
  %1015 = vmatpush1.msra.mxu0 0.0
  %1016 = vmatprep.subr.mxu0 0.0
  %1017 = vmatpush1.msra.mxu0 0.0
  %1018 = vmatprep.subr.mxu0 0.0
  %1019 = vmatpush1.msra.mxu0 0.0
  %1020 = vmatprep.subr.mxu0 0.0
  %1021 = vmatpush1.msra.mxu0 0.0
  %1022 = vmatprep.subr.mxu0 0.0
  %1023 = vmatpush1.msra.mxu0 0.0
  %1024 = vmatprep.subr.mxu0 0.0
  %1025 = vmatpush1.msra.mxu0 0.0
  %1026 = vmatprep.subr.mxu0 0.0
  %1027 = vmatpush1.msra.mxu0 0.0
  %1028 = vmatprep.subr.mxu0 0.0
  %1029 = vmatpush1.msra.mxu0 0.0
  %1030 = vmatprep.subr.mxu0 0.0
  %1031 = vmatpush1.msra.mxu0 0.0
  %1032 = vmatprep.mubr.f32.mxu0 0.0
  %1033 = vmatmul.mubr.f32.gmra.mrb[0].mxu0 %v959
  %v1034 = vpop.f32.mrb[0].mxu0
  %v1035 = vadd.f32 0.0, %v1034
  %v1036 = vpop.f32.mrb[0].mxu0
  %v1037 = vadd.f32 0.0, %v1036
  %1038 = vdwg.mxu0
  %1039 = vmatprep.subr.mxu0 %v720
  %1040 = vmatpush1.msra.mxu0 %v719
  %1041 = vmatprep.subr.mxu0 %v724
  %1042 = vmatpush1.msra.mxu0 %v723
  %1043 = vmatprep.subr.mxu0 %v728
  %1044 = vmatpush1.msra.mxu0 %v727
  %1045 = vmatprep.subr.mxu0 %v732
  %1046 = vmatpush1.msra.mxu0 %v731
  %1047 = vmatprep.subr.mxu0 %v736
  %1048 = vmatpush1.msra.mxu0 %v735
  %1049 = vmatprep.subr.mxu0 %v740
  %1050 = vmatpush1.msra.mxu0 %v739
  %1051 = vmatprep.subr.mxu0 %v744
  %1052 = vmatpush1.msra.mxu0 %v743
  %1053 = vmatprep.subr.mxu0 %v748
  %1054 = vmatpush1.msra.mxu0 %v747
  %1055 = vmatprep.subr.mxu0 %v752
  %1056 = vmatpush1.msra.mxu0 %v751
  %1057 = vmatprep.subr.mxu0 %v756
  %1058 = vmatpush1.msra.mxu0 %v755
  %1059 = vmatprep.subr.mxu0 %v760
  %1060 = vmatpush1.msra.mxu0 %v759
  %1061 = vmatprep.subr.mxu0 %v764
  %1062 = vmatpush1.msra.mxu0 %v763
  %1063 = vmatprep.subr.mxu0 %v768
  %1064 = vmatpush1.msra.mxu0 %v767
  %1065 = vmatprep.subr.mxu0 %v772
  %1066 = vmatpush1.msra.mxu0 %v771
  %1067 = vmatprep.subr.mxu0 %v776
  %1068 = vmatpush1.msra.mxu0 %v775
  %1069 = vmatprep.subr.mxu0 %v780
  %1070 = vmatpush1.msra.mxu0 %v779
  %1071 = vmatprep.subr.mxu0 0.0
  %1072 = vmatpush1.msra.mxu0 0.0
  %1073 = vmatprep.subr.mxu0 0.0
  %1074 = vmatpush1.msra.mxu0 0.0
  %1075 = vmatprep.subr.mxu0 0.0
  %1076 = vmatpush1.msra.mxu0 0.0
  %1077 = vmatprep.subr.mxu0 0.0
  %1078 = vmatpush1.msra.mxu0 0.0
  %1079 = vmatprep.subr.mxu0 0.0
  %1080 = vmatpush1.msra.mxu0 0.0
  %1081 = vmatprep.subr.mxu0 0.0
  %1082 = vmatpush1.msra.mxu0 0.0
  %1083 = vmatprep.subr.mxu0 0.0
  %1084 = vmatpush1.msra.mxu0 0.0
  %1085 = vmatprep.subr.mxu0 0.0
  %1086 = vmatpush1.msra.mxu0 0.0
  %1087 = vmatprep.subr.mxu0 0.0
  %1088 = vmatpush1.msra.mxu0 0.0
  %1089 = vmatprep.subr.mxu0 0.0
  %1090 = vmatpush1.msra.mxu0 0.0
  %1091 = vmatprep.subr.mxu0 0.0
  %1092 = vmatpush1.msra.mxu0 0.0
  %1093 = vmatprep.subr.mxu0 0.0
  %1094 = vmatpush1.msra.mxu0 0.0
  %1095 = vmatprep.subr.mxu0 0.0
  %1096 = vmatpush1.msra.mxu0 0.0
  %1097 = vmatprep.subr.mxu0 0.0
  %1098 = vmatpush1.msra.mxu0 0.0
  %1099 = vmatprep.subr.mxu0 0.0
  %1100 = vmatpush1.msra.mxu0 0.0
  %1101 = vmatprep.subr.mxu0 0.0
  %1102 = vmatpush1.msra.mxu0 0.0
  %1103 = vmatprep.mubr.f32.mxu0 0.0
  %1104 = vmatmul.mubr.f32.gmra.mrb[0].mxu0 %v959
  %v1105 = vpop.f32.mrb[0].mxu0
  %v1106 = vadd.f32 0.0, %v1105
  %v1107 = vpop.f32.mrb[0].mxu0
  %v1108 = vadd.f32 0.0, %v1107
  %1109 = vdwg.mxu0
  %v1110 = vadd.f32 %v964, %v1035
  %v1111 = vadd.f32 %v965, %v1037
  %v1112 = vadd.f32 %v966, %v1106
  %v1113 = vadd.f32 %v967, %v1108
  %v1114 = vxor.u32 %v1110, 2147483648
  %v1115 = vmul.f32 %v1114, 1.442695
  %v1116 = vpow.pop %v1115
  %v1117 = vadd.f32 %v1116, 1.0
  %v1118 = vrcp.pop %v1117
  %v1119 = vmul.f32 1.0, %v1118
  %v1120 = vxor.u32 %v1111, 2147483648
  %v1121 = vmul.f32 %v1120, 1.442695
  %v1122 = vpow.pop %v1121
  %v1123 = vadd.f32 %v1122, 1.0
  %v1124 = vrcp.pop %v1123
  %v1125 = vmul.f32 1.0, %v1124
  %v1126 = vtanh.pop %v1112
  %v1127 = vxor.u32 %v1113, 2147483648
  %v1128 = vmul.f32 %v1127, 1.442695
  %v1129 = vpow.pop %v1128
  %v1130 = vadd.f32 %v1129, 1.0
  %v1131 = vrcp.pop %v1130
  %v1132 = vmul.f32 1.0, %v1131
  %v1133 = vmul.f32 %v1125, %v957
  %v1134 = vmul.f32 %v1119, %v1126
  %v1135 = vadd.f32 %v1133, %v1134
  %v1136 = vtanh.pop %v1135
  %v1137 = vmul.f32 %v1132, %v1136
  %s1138 = scalar_lea.vmem %s4, 8
  %1139 = vst [vmem:[%s1138] sm:$0xff] %v1137
  %s1140 = smul.u32 2, 4
  %s1141 = smul.addr %s1140, 8
  %s1142 = scalar_lea.vmem [#allocation4], %s1141
  %v1143 = vld [vmem:[%s1142] sm:$0xff]
  %v1144 = vld [vmem:[%s1142 + $0x8] sm:$0xff]
  %v1145 = vld [vmem:[%s1142 + $0x10] sm:$0xff]
  %v1146 = vld [vmem:[%s1142 + $0x18] sm:$0xff]
  %1147 = vmatprep.subr.mxu0 %v718
  %1148 = vmatpush1.msra.mxu0 %v717
  %1149 = vmatprep.subr.mxu0 %v722
  %1150 = vmatpush1.msra.mxu0 %v721
  %1151 = vmatprep.subr.mxu0 %v726
  %1152 = vmatpush1.msra.mxu0 %v725
  %1153 = vmatprep.subr.mxu0 %v730
  %1154 = vmatpush1.msra.mxu0 %v729
  %1155 = vmatprep.subr.mxu0 %v734
  %1156 = vmatpush1.msra.mxu0 %v733
  %1157 = vmatprep.subr.mxu0 %v738
  %1158 = vmatpush1.msra.mxu0 %v737
  %1159 = vmatprep.subr.mxu0 %v742
  %1160 = vmatpush1.msra.mxu0 %v741
  %1161 = vmatprep.subr.mxu0 %v746
  %1162 = vmatpush1.msra.mxu0 %v745
  %1163 = vmatprep.subr.mxu0 %v750
  %1164 = vmatpush1.msra.mxu0 %v749
  %1165 = vmatprep.subr.mxu0 %v754
  %1166 = vmatpush1.msra.mxu0 %v753
  %1167 = vmatprep.subr.mxu0 %v758
  %1168 = vmatpush1.msra.mxu0 %v757
  %1169 = vmatprep.subr.mxu0 %v762
  %1170 = vmatpush1.msra.mxu0 %v761
  %1171 = vmatprep.subr.mxu0 %v766
  %1172 = vmatpush1.msra.mxu0 %v765
  %1173 = vmatprep.subr.mxu0 %v770
  %1174 = vmatpush1.msra.mxu0 %v769
  %1175 = vmatprep.subr.mxu0 %v774
  %1176 = vmatpush1.msra.mxu0 %v773
  %1177 = vmatprep.subr.mxu0 %v778
  %1178 = vmatpush1.msra.mxu0 %v777
  %1179 = vmatprep.subr.mxu0 0.0
  %1180 = vmatpush1.msra.mxu0 0.0
  %1181 = vmatprep.subr.mxu0 0.0
  %1182 = vmatpush1.msra.mxu0 0.0
  %1183 = vmatprep.subr.mxu0 0.0
  %1184 = vmatpush1.msra.mxu0 0.0
  %1185 = vmatprep.subr.mxu0 0.0
  %1186 = vmatpush1.msra.mxu0 0.0
  %1187 = vmatprep.subr.mxu0 0.0
  %1188 = vmatpush1.msra.mxu0 0.0
  %1189 = vmatprep.subr.mxu0 0.0
  %1190 = vmatpush1.msra.mxu0 0.0
  %1191 = vmatprep.subr.mxu0 0.0
  %1192 = vmatpush1.msra.mxu0 0.0
  %1193 = vmatprep.subr.mxu0 0.0
  %1194 = vmatpush1.msra.mxu0 0.0
  %1195 = vmatprep.subr.mxu0 0.0
  %1196 = vmatpush1.msra.mxu0 0.0
  %1197 = vmatprep.subr.mxu0 0.0
  %1198 = vmatpush1.msra.mxu0 0.0
  %1199 = vmatprep.subr.mxu0 0.0
  %1200 = vmatpush1.msra.mxu0 0.0
  %1201 = vmatprep.subr.mxu0 0.0
  %1202 = vmatpush1.msra.mxu0 0.0
  %1203 = vmatprep.subr.mxu0 0.0
  %1204 = vmatpush1.msra.mxu0 0.0
  %1205 = vmatprep.subr.mxu0 0.0
  %1206 = vmatpush1.msra.mxu0 0.0
  %1207 = vmatprep.subr.mxu0 0.0
  %1208 = vmatpush1.msra.mxu0 0.0
  %1209 = vmatprep.subr.mxu0 0.0
  %1210 = vmatpush1.msra.mxu0 0.0
  %1211 = vmatprep.mubr.f32.mxu0 0.0
  %1212 = vmatmul.mubr.f32.gmra.mrb[0].mxu0 %v1137
  %v1213 = vpop.f32.mrb[0].mxu0
  %v1214 = vadd.f32 0.0, %v1213
  %v1215 = vpop.f32.mrb[0].mxu0
  %v1216 = vadd.f32 0.0, %v1215
  %1217 = vdwg.mxu0
  %1218 = vmatprep.subr.mxu0 %v720
  %1219 = vmatpush1.msra.mxu0 %v719
  %1220 = vmatprep.subr.mxu0 %v724
  %1221 = vmatpush1.msra.mxu0 %v723
  %1222 = vmatprep.subr.mxu0 %v728
  %1223 = vmatpush1.msra.mxu0 %v727
  %1224 = vmatprep.subr.mxu0 %v732
  %1225 = vmatpush1.msra.mxu0 %v731
  %1226 = vmatprep.subr.mxu0 %v736
  %1227 = vmatpush1.msra.mxu0 %v735
  %1228 = vmatprep.subr.mxu0 %v740
  %1229 = vmatpush1.msra.mxu0 %v739
  %1230 = vmatprep.subr.mxu0 %v744
  %1231 = vmatpush1.msra.mxu0 %v743
  %1232 = vmatprep.subr.mxu0 %v748
  %1233 = vmatpush1.msra.mxu0 %v747
  %1234 = vmatprep.subr.mxu0 %v752
  %1235 = vmatpush1.msra.mxu0 %v751
  %1236 = vmatprep.subr.mxu0 %v756
  %1237 = vmatpush1.msra.mxu0 %v755
  %1238 = vmatprep.subr.mxu0 %v760
  %1239 = vmatpush1.msra.mxu0 %v759
  %1240 = vmatprep.subr.mxu0 %v764
  %1241 = vmatpush1.msra.mxu0 %v763
  %1242 = vmatprep.subr.mxu0 %v768
  %1243 = vmatpush1.msra.mxu0 %v767
  %1244 = vmatprep.subr.mxu0 %v772
  %1245 = vmatpush1.msra.mxu0 %v771
  %1246 = vmatprep.subr.mxu0 %v776
  %1247 = vmatpush1.msra.mxu0 %v775
  %1248 = vmatprep.subr.mxu0 %v780
  %1249 = vmatpush1.msra.mxu0 %v779
  %1250 = vmatprep.subr.mxu0 0.0
  %1251 = vmatpush1.msra.mxu0 0.0
  %1252 = vmatprep.subr.mxu0 0.0
  %1253 = vmatpush1.msra.mxu0 0.0
  %1254 = vmatprep.subr.mxu0 0.0
  %1255 = vmatpush1.msra.mxu0 0.0
  %1256 = vmatprep.subr.mxu0 0.0
  %1257 = vmatpush1.msra.mxu0 0.0
  %1258 = vmatprep.subr.mxu0 0.0
  %1259 = vmatpush1.msra.mxu0 0.0
  %1260 = vmatprep.subr.mxu0 0.0
  %1261 = vmatpush1.msra.mxu0 0.0
  %1262 = vmatprep.subr.mxu0 0.0
  %1263 = vmatpush1.msra.mxu0 0.0
  %1264 = vmatprep.subr.mxu0 0.0
  %1265 = vmatpush1.msra.mxu0 0.0
  %1266 = vmatprep.subr.mxu0 0.0
  %1267 = vmatpush1.msra.mxu0 0.0
  %1268 = vmatprep.subr.mxu0 0.0
  %1269 = vmatpush1.msra.mxu0 0.0
  %1270 = vmatprep.subr.mxu0 0.0
  %1271 = vmatpush1.msra.mxu0 0.0
  %1272 = vmatprep.subr.mxu0 0.0
  %1273 = vmatpush1.msra.mxu0 0.0
  %1274 = vmatprep.subr.mxu0 0.0
  %1275 = vmatpush1.msra.mxu0 0.0
  %1276 = vmatprep.subr.mxu0 0.0
  %1277 = vmatpush1.msra.mxu0 0.0
  %1278 = vmatprep.subr.mxu0 0.0
  %1279 = vmatpush1.msra.mxu0 0.0
  %1280 = vmatprep.subr.mxu0 0.0
  %1281 = vmatpush1.msra.mxu0 0.0
  %1282 = vmatprep.mubr.f32.mxu0 0.0
  %1283 = vmatmul.mubr.f32.gmra.mrb[0].mxu0 %v1137
  %v1284 = vpop.f32.mrb[0].mxu0
  %v1285 = vadd.f32 0.0, %v1284
  %v1286 = vpop.f32.mrb[0].mxu0
  %v1287 = vadd.f32 0.0, %v1286
  %1288 = vdwg.mxu0
  %v1289 = vadd.f32 %v1143, %v1214
  %v1290 = vadd.f32 %v1144, %v1216
  %v1291 = vadd.f32 %v1145, %v1285
  %v1292 = vadd.f32 %v1146, %v1287
  %v1293 = vxor.u32 %v1289, 2147483648
  %v1294 = vmul.f32 %v1293, 1.442695
  %v1295 = vpow.pop %v1294
  %v1296 = vadd.f32 %v1295, 1.0
  %v1297 = vrcp.pop %v1296
  %v1298 = vmul.f32 1.0, %v1297
  %v1299 = vxor.u32 %v1290, 2147483648
  %v1300 = vmul.f32 %v1299, 1.442695
  %v1301 = vpow.pop %v1300
  %v1302 = vadd.f32 %v1301, 1.0
  %v1303 = vrcp.pop %v1302
  %v1304 = vmul.f32 1.0, %v1303
  %v1305 = vtanh.pop %v1291
  %v1306 = vxor.u32 %v1292, 2147483648
  %v1307 = vmul.f32 %v1306, 1.442695
  %v1308 = vpow.pop %v1307
  %v1309 = vadd.f32 %v1308, 1.0
  %v1310 = vrcp.pop %v1309
  %v1311 = vmul.f32 1.0, %v1310
  %v1312 = vmul.f32 %v1304, %v1135
  %v1313 = vmul.f32 %v1298, %v1305
  %v1314 = vadd.f32 %v1312, %v1313
  %v1315 = vtanh.pop %v1314
  %v1316 = vmul.f32 %v1311, %v1315
  %s1317 = scalar_lea.vmem %s4, 16
  %1318 = vst [vmem:[%s1317] sm:$0xff] %v1316
  %s1319 = smul.u32 3, 4
  %s1320 = smul.addr %s1319, 8
  %s1321 = scalar_lea.vmem [#allocation4], %s1320
  %v1322 = vld [vmem:[%s1321] sm:$0xff]
  %v1323 = vld [vmem:[%s1321 + $0x8] sm:$0xff]
  %v1324 = vld [vmem:[%s1321 + $0x10] sm:$0xff]
  %v1325 = vld [vmem:[%s1321 + $0x18] sm:$0xff]
  %1326 = vmatprep.subr.mxu0 %v718
  %1327 = vmatpush1.msra.mxu0 %v717
  %1328 = vmatprep.subr.mxu0 %v722
  %1329 = vmatpush1.msra.mxu0 %v721
  %1330 = vmatprep.subr.mxu0 %v726
  %1331 = vmatpush1.msra.mxu0 %v725
  %1332 = vmatprep.subr.mxu0 %v730
  %1333 = vmatpush1.msra.mxu0 %v729
  %1334 = vmatprep.subr.mxu0 %v734
  %1335 = vmatpush1.msra.mxu0 %v733
  %1336 = vmatprep.subr.mxu0 %v738
  %1337 = vmatpush1.msra.mxu0 %v737
  %1338 = vmatprep.subr.mxu0 %v742
  %1339 = vmatpush1.msra.mxu0 %v741
  %1340 = vmatprep.subr.mxu0 %v746
  %1341 = vmatpush1.msra.mxu0 %v745
  %1342 = vmatprep.subr.mxu0 %v750
  %1343 = vmatpush1.msra.mxu0 %v749
  %1344 = vmatprep.subr.mxu0 %v754
  %1345 = vmatpush1.msra.mxu0 %v753
  %1346 = vmatprep.subr.mxu0 %v758
  %1347 = vmatpush1.msra.mxu0 %v757
  %1348 = vmatprep.subr.mxu0 %v762
  %1349 = vmatpush1.msra.mxu0 %v761
  %1350 = vmatprep.subr.mxu0 %v766
  %1351 = vmatpush1.msra.mxu0 %v765
  %1352 = vmatprep.subr.mxu0 %v770
  %1353 = vmatpush1.msra.mxu0 %v769
  %1354 = vmatprep.subr.mxu0 %v774
  %1355 = vmatpush1.msra.mxu0 %v773
  %1356 = vmatprep.subr.mxu0 %v778
  %1357 = vmatpush1.msra.mxu0 %v777
  %1358 = vmatprep.subr.mxu0 0.0
  %1359 = vmatpush1.msra.mxu0 0.0
  %1360 = vmatprep.subr.mxu0 0.0
  %1361 = vmatpush1.msra.mxu0 0.0
  %1362 = vmatprep.subr.mxu0 0.0
  %1363 = vmatpush1.msra.mxu0 0.0
  %1364 = vmatprep.subr.mxu0 0.0
  %1365 = vmatpush1.msra.mxu0 0.0
  %1366 = vmatprep.subr.mxu0 0.0
  %1367 = vmatpush1.msra.mxu0 0.0
  %1368 = vmatprep.subr.mxu0 0.0
  %1369 = vmatpush1.msra.mxu0 0.0
  %1370 = vmatprep.subr.mxu0 0.0
  %1371 = vmatpush1.msra.mxu0 0.0
  %1372 = vmatprep.subr.mxu0 0.0
  %1373 = vmatpush1.msra.mxu0 0.0
  %1374 = vmatprep.subr.mxu0 0.0
  %1375 = vmatpush1.msra.mxu0 0.0
  %1376 = vmatprep.subr.mxu0 0.0
  %1377 = vmatpush1.msra.mxu0 0.0
  %1378 = vmatprep.subr.mxu0 0.0
  %1379 = vmatpush1.msra.mxu0 0.0
  %1380 = vmatprep.subr.mxu0 0.0
  %1381 = vmatpush1.msra.mxu0 0.0
  %1382 = vmatprep.subr.mxu0 0.0
  %1383 = vmatpush1.msra.mxu0 0.0
  %1384 = vmatprep.subr.mxu0 0.0
  %1385 = vmatpush1.msra.mxu0 0.0
  %1386 = vmatprep.subr.mxu0 0.0
  %1387 = vmatpush1.msra.mxu0 0.0
  %1388 = vmatprep.subr.mxu0 0.0
  %1389 = vmatpush1.msra.mxu0 0.0
  %1390 = vmatprep.mubr.f32.mxu0 0.0
  %1391 = vmatmul.mubr.f32.gmra.mrb[0].mxu0 %v1316
  %v1392 = vpop.f32.mrb[0].mxu0
  %v1393 = vadd.f32 0.0, %v1392
  %v1394 = vpop.f32.mrb[0].mxu0
  %v1395 = vadd.f32 0.0, %v1394
  %1396 = vdwg.mxu0
  %1397 = vmatprep.subr.mxu0 %v720
  %1398 = vmatpush1.msra.mxu0 %v719
  %1399 = vmatprep.subr.mxu0 %v724
  %1400 = vmatpush1.msra.mxu0 %v723
  %1401 = vmatprep.subr.mxu0 %v728
  %1402 = vmatpush1.msra.mxu0 %v727
  %1403 = vmatprep.subr.mxu0 %v732
  %1404 = vmatpush1.msra.mxu0 %v731
  %1405 = vmatprep.subr.mxu0 %v736
  %1406 = vmatpush1.msra.mxu0 %v735
  %1407 = vmatprep.subr.mxu0 %v740
  %1408 = vmatpush1.msra.mxu0 %v739
  %1409 = vmatprep.subr.mxu0 %v744
  %1410 = vmatpush1.msra.mxu0 %v743
  %1411 = vmatprep.subr.mxu0 %v748
  %1412 = vmatpush1.msra.mxu0 %v747
  %1413 = vmatprep.subr.mxu0 %v752
  %1414 = vmatpush1.msra.mxu0 %v751
  %1415 = vmatprep.subr.mxu0 %v756
  %1416 = vmatpush1.msra.mxu0 %v755
  %1417 = vmatprep.subr.mxu0 %v760
  %1418 = vmatpush1.msra.mxu0 %v759
  %1419 = vmatprep.subr.mxu0 %v764
  %1420 = vmatpush1.msra.mxu0 %v763
  %1421 = vmatprep.subr.mxu0 %v768
  %1422 = vmatpush1.msra.mxu0 %v767
  %1423 = vmatprep.subr.mxu0 %v772
  %1424 = vmatpush1.msra.mxu0 %v771
  %1425 = vmatprep.subr.mxu0 %v776
  %1426 = vmatpush1.msra.mxu0 %v775
  %1427 = vmatprep.subr.mxu0 %v780
  %1428 = vmatpush1.msra.mxu0 %v779
  %1429 = vmatprep.subr.mxu0 0.0
  %1430 = vmatpush1.msra.mxu0 0.0
  %1431 = vmatprep.subr.mxu0 0.0
  %1432 = vmatpush1.msra.mxu0 0.0
  %1433 = vmatprep.subr.mxu0 0.0
  %1434 = vmatpush1.msra.mxu0 0.0
  %1435 = vmatprep.subr.mxu0 0.0
  %1436 = vmatpush1.msra.mxu0 0.0
  %1437 = vmatprep.subr.mxu0 0.0
  %1438 = vmatpush1.msra.mxu0 0.0
  %1439 = vmatprep.subr.mxu0 0.0
  %1440 = vmatpush1.msra.mxu0 0.0
  %1441 = vmatprep.subr.mxu0 0.0
  %1442 = vmatpush1.msra.mxu0 0.0
  %1443 = vmatprep.subr.mxu0 0.0
  %1444 = vmatpush1.msra.mxu0 0.0
  %1445 = vmatprep.subr.mxu0 0.0
  %1446 = vmatpush1.msra.mxu0 0.0
  %1447 = vmatprep.subr.mxu0 0.0
  %1448 = vmatpush1.msra.mxu0 0.0
  %1449 = vmatprep.subr.mxu0 0.0
  %1450 = vmatpush1.msra.mxu0 0.0
  %1451 = vmatprep.subr.mxu0 0.0
  %1452 = vmatpush1.msra.mxu0 0.0
  %1453 = vmatprep.subr.mxu0 0.0
  %1454 = vmatpush1.msra.mxu0 0.0
  %1455 = vmatprep.subr.mxu0 0.0
  %1456 = vmatpush1.msra.mxu0 0.0
  %1457 = vmatprep.subr.mxu0 0.0
  %1458 = vmatpush1.msra.mxu0 0.0
  %1459 = vmatprep.subr.mxu0 0.0
  %1460 = vmatpush1.msra.mxu0 0.0
  %1461 = vmatprep.mubr.f32.mxu0 0.0
  %1462 = vmatmul.mubr.f32.gmra.mrb[0].mxu0 %v1316
  %v1463 = vpop.f32.mrb[0].mxu0
  %v1464 = vadd.f32 0.0, %v1463
  %v1465 = vpop.f32.mrb[0].mxu0
  %v1466 = vadd.f32 0.0, %v1465
  %1467 = vdwg.mxu0
  %v1468 = vadd.f32 %v1322, %v1393
  %v1469 = vadd.f32 %v1323, %v1395
  %v1470 = vadd.f32 %v1324, %v1464
  %v1471 = vadd.f32 %v1325, %v1466
  %v1472 = vxor.u32 %v1468, 2147483648
  %v1473 = vmul.f32 %v1472, 1.442695
  %v1474 = vpow.pop %v1473
  %v1475 = vadd.f32 %v1474, 1.0
  %v1476 = vrcp.pop %v1475
  %v1477 = vmul.f32 1.0, %v1476
  %v1478 = vxor.u32 %v1469, 2147483648
  %v1479 = vmul.f32 %v1478, 1.442695
  %v1480 = vpow.pop %v1479
  %v1481 = vadd.f32 %v1480, 1.0
  %v1482 = vrcp.pop %v1481
  %v1483 = vmul.f32 1.0, %v1482
  %v1484 = vtanh.pop %v1470
  %v1485 = vxor.u32 %v1471, 2147483648
  %v1486 = vmul.f32 %v1485, 1.442695
  %v1487 = vpow.pop %v1486
  %v1488 = vadd.f32 %v1487, 1.0
  %v1489 = vrcp.pop %v1488
  %v1490 = vmul.f32 1.0, %v1489
  %v1491 = vmul.f32 %v1483, %v1314
  %v1492 = vmul.f32 %v1477, %v1484
  %v1493 = vadd.f32 %v1491, %v1492
  %v1494 = vtanh.pop %v1493
  %v1495 = vmul.f32 %v1490, %v1494
  %s1496 = scalar_lea.vmem %s4, 24
  %1497 = vst [vmem:[%s1496] sm:$0xff] %v1495
  %s1498 = smul.u32 4, 4
  %s1499 = smul.addr %s1498, 8
  %s1500 = scalar_lea.vmem [#allocation4], %s1499
  %v1501 = vld [vmem:[%s1500] sm:$0xff]
  %v1502 = vld [vmem:[%s1500 + $0x8] sm:$0xff]
  %v1503 = vld [vmem:[%s1500 + $0x10] sm:$0xff]
  %v1504 = vld [vmem:[%s1500 + $0x18] sm:$0xff]
  %1505 = vmatprep.subr.mxu0 %v718
  %1506 = vmatpush1.msra.mxu0 %v717
  %1507 = vmatprep.subr.mxu0 %v722
  %1508 = vmatpush1.msra.mxu0 %v721
  %1509 = vmatprep.subr.mxu0 %v726
  %1510 = vmatpush1.msra.mxu0 %v725
  %1511 = vmatprep.subr.mxu0 %v730
  %1512 = vmatpush1.msra.mxu0 %v729
  %1513 = vmatprep.subr.mxu0 %v734
  %1514 = vmatpush1.msra.mxu0 %v733
  %1515 = vmatprep.subr.mxu0 %v738
  %1516 = vmatpush1.msra.mxu0 %v737
  %1517 = vmatprep.subr.mxu0 %v742
  %1518 = vmatpush1.msra.mxu0 %v741
  %1519 = vmatprep.subr.mxu0 %v746
  %1520 = vmatpush1.msra.mxu0 %v745
  %1521 = vmatprep.subr.mxu0 %v750
  %1522 = vmatpush1.msra.mxu0 %v749
  %1523 = vmatprep.subr.mxu0 %v754
  %1524 = vmatpush1.msra.mxu0 %v753
  %1525 = vmatprep.subr.mxu0 %v758
  %1526 = vmatpush1.msra.mxu0 %v757
  %1527 = vmatprep.subr.mxu0 %v762
  %1528 = vmatpush1.msra.mxu0 %v761
  %1529 = vmatprep.subr.mxu0 %v766
  %1530 = vmatpush1.msra.mxu0 %v765
  %1531 = vmatprep.subr.mxu0 %v770
  %1532 = vmatpush1.msra.mxu0 %v769
  %1533 = vmatprep.subr.mxu0 %v774
  %1534 = vmatpush1.msra.mxu0 %v773
  %1535 = vmatprep.subr.mxu0 %v778
  %1536 = vmatpush1.msra.mxu0 %v777
  %1537 = vmatprep.subr.mxu0 0.0
  %1538 = vmatpush1.msra.mxu0 0.0
  %1539 = vmatprep.subr.mxu0 0.0
  %1540 = vmatpush1.msra.mxu0 0.0
  %1541 = vmatprep.subr.mxu0 0.0
  %1542 = vmatpush1.msra.mxu0 0.0
  %1543 = vmatprep.subr.mxu0 0.0
  %1544 = vmatpush1.msra.mxu0 0.0
  %1545 = vmatprep.subr.mxu0 0.0
  %1546 = vmatpush1.msra.mxu0 0.0
  %1547 = vmatprep.subr.mxu0 0.0
  %1548 = vmatpush1.msra.mxu0 0.0
  %1549 = vmatprep.subr.mxu0 0.0
  %1550 = vmatpush1.msra.mxu0 0.0
  %1551 = vmatprep.subr.mxu0 0.0
  %1552 = vmatpush1.msra.mxu0 0.0
  %1553 = vmatprep.subr.mxu0 0.0
  %1554 = vmatpush1.msra.mxu0 0.0
  %1555 = vmatprep.subr.mxu0 0.0
  %1556 = vmatpush1.msra.mxu0 0.0
  %1557 = vmatprep.subr.mxu0 0.0
  %1558 = vmatpush1.msra.mxu0 0.0
  %1559 = vmatprep.subr.mxu0 0.0
  %1560 = vmatpush1.msra.mxu0 0.0
  %1561 = vmatprep.subr.mxu0 0.0
  %1562 = vmatpush1.msra.mxu0 0.0
  %1563 = vmatprep.subr.mxu0 0.0
  %1564 = vmatpush1.msra.mxu0 0.0
  %1565 = vmatprep.subr.mxu0 0.0
  %1566 = vmatpush1.msra.mxu0 0.0
  %1567 = vmatprep.subr.mxu0 0.0
  %1568 = vmatpush1.msra.mxu0 0.0
  %1569 = vmatprep.mubr.f32.mxu0 0.0
  %1570 = vmatmul.mubr.f32.gmra.mrb[0].mxu0 %v1495
  %v1571 = vpop.f32.mrb[0].mxu0
  %v1572 = vadd.f32 0.0, %v1571
  %v1573 = vpop.f32.mrb[0].mxu0
  %v1574 = vadd.f32 0.0, %v1573
  %1575 = vdwg.mxu0
  %1576 = vmatprep.subr.mxu0 %v720
  %1577 = vmatpush1.msra.mxu0 %v719
  %1578 = vmatprep.subr.mxu0 %v724
  %1579 = vmatpush1.msra.mxu0 %v723
  %1580 = vmatprep.subr.mxu0 %v728
  %1581 = vmatpush1.msra.mxu0 %v727
  %1582 = vmatprep.subr.mxu0 %v732
  %1583 = vmatpush1.msra.mxu0 %v731
  %1584 = vmatprep.subr.mxu0 %v736
  %1585 = vmatpush1.msra.mxu0 %v735
  %1586 = vmatprep.subr.mxu0 %v740
  %1587 = vmatpush1.msra.mxu0 %v739
  %1588 = vmatprep.subr.mxu0 %v744
  %1589 = vmatpush1.msra.mxu0 %v743
  %1590 = vmatprep.subr.mxu0 %v748
  %1591 = vmatpush1.msra.mxu0 %v747
  %1592 = vmatprep.subr.mxu0 %v752
  %1593 = vmatpush1.msra.mxu0 %v751
  %1594 = vmatprep.subr.mxu0 %v756
  %1595 = vmatpush1.msra.mxu0 %v755
  %1596 = vmatprep.subr.mxu0 %v760
  %1597 = vmatpush1.msra.mxu0 %v759
  %1598 = vmatprep.subr.mxu0 %v764
  %1599 = vmatpush1.msra.mxu0 %v763
  %1600 = vmatprep.subr.mxu0 %v768
  %1601 = vmatpush1.msra.mxu0 %v767
  %1602 = vmatprep.subr.mxu0 %v772
  %1603 = vmatpush1.msra.mxu0 %v771
  %1604 = vmatprep.subr.mxu0 %v776
  %1605 = vmatpush1.msra.mxu0 %v775
  %1606 = vmatprep.subr.mxu0 %v780
  %1607 = vmatpush1.msra.mxu0 %v779
  %1608 = vmatprep.subr.mxu0 0.0
  %1609 = vmatpush1.msra.mxu0 0.0
  %1610 = vmatprep.subr.mxu0 0.0
  %1611 = vmatpush1.msra.mxu0 0.0
  %1612 = vmatprep.subr.mxu0 0.0
  %1613 = vmatpush1.msra.mxu0 0.0
  %1614 = vmatprep.subr.mxu0 0.0
  %1615 = vmatpush1.msra.mxu0 0.0
  %1616 = vmatprep.subr.mxu0 0.0
  %1617 = vmatpush1.msra.mxu0 0.0
  %1618 = vmatprep.subr.mxu0 0.0
  %1619 = vmatpush1.msra.mxu0 0.0
  %1620 = vmatprep.subr.mxu0 0.0
  %1621 = vmatpush1.msra.mxu0 0.0
  %1622 = vmatprep.subr.mxu0 0.0
  %1623 = vmatpush1.msra.mxu0 0.0
  %1624 = vmatprep.subr.mxu0 0.0
  %1625 = vmatpush1.msra.mxu0 0.0
  %1626 = vmatprep.subr.mxu0 0.0
  %1627 = vmatpush1.msra.mxu0 0.0
  %1628 = vmatprep.subr.mxu0 0.0
  %1629 = vmatpush1.msra.mxu0 0.0
  %1630 = vmatprep.subr.mxu0 0.0
  %1631 = vmatpush1.msra.mxu0 0.0
  %1632 = vmatprep.subr.mxu0 0.0
  %1633 = vmatpush1.msra.mxu0 0.0
  %1634 = vmatprep.subr.mxu0 0.0
  %1635 = vmatpush1.msra.mxu0 0.0
  %1636 = vmatprep.subr.mxu0 0.0
  %1637 = vmatpush1.msra.mxu0 0.0
  %1638 = vmatprep.subr.mxu0 0.0
  %1639 = vmatpush1.msra.mxu0 0.0
  %1640 = vmatprep.mubr.f32.mxu0 0.0
  %1641 = vmatmul.mubr.f32.gmra.mrb[0].mxu0 %v1495
  %v1642 = vpop.f32.mrb[0].mxu0
  %v1643 = vadd.f32 0.0, %v1642
  %v1644 = vpop.f32.mrb[0].mxu0
  %v1645 = vadd.f32 0.0, %v1644
  %1646 = vdwg.mxu0
  %v1647 = vadd.f32 %v1501, %v1572
  %v1648 = vadd.f32 %v1502, %v1574
  %v1649 = vadd.f32 %v1503, %v1643
  %v1650 = vadd.f32 %v1504, %v1645
  %v1651 = vxor.u32 %v1647, 2147483648
  %v1652 = vmul.f32 %v1651, 1.442695
  %v1653 = vpow.pop %v1652
  %v1654 = vadd.f32 %v1653, 1.0
  %v1655 = vrcp.pop %v1654
  %v1656 = vmul.f32 1.0, %v1655
  %v1657 = vxor.u32 %v1648, 2147483648
  %v1658 = vmul.f32 %v1657, 1.442695
  %v1659 = vpow.pop %v1658
  %v1660 = vadd.f32 %v1659, 1.0
  %v1661 = vrcp.pop %v1660
  %v1662 = vmul.f32 1.0, %v1661
  %v1663 = vtanh.pop %v1649
  %v1664 = vxor.u32 %v1650, 2147483648
  %v1665 = vmul.f32 %v1664, 1.442695
  %v1666 = vpow.pop %v1665
  %v1667 = vadd.f32 %v1666, 1.0
  %v1668 = vrcp.pop %v1667
  %v1669 = vmul.f32 1.0, %v1668
  %v1670 = vmul.f32 %v1662, %v1493
  %v1671 = vmul.f32 %v1656, %v1663
  %v1672 = vadd.f32 %v1670, %v1671
  %v1673 = vtanh.pop %v1672
  %v1674 = vmul.f32 %v1669, %v1673
  %s1675 = scalar_lea.vmem %s4, 32
  %1676 = vst [vmem:[%s1675] sm:$0xff] %v1674
  %s1677 = smul.u32 5, 4
  %s1678 = smul.addr %s1677, 8
  %s1679 = scalar_lea.vmem [#allocation4], %s1678
  %v1680 = vld [vmem:[%s1679] sm:$0xff]
  %v1681 = vld [vmem:[%s1679 + $0x8] sm:$0xff]
  %v1682 = vld [vmem:[%s1679 + $0x10] sm:$0xff]
  %v1683 = vld [vmem:[%s1679 + $0x18] sm:$0xff]
  %1684 = vmatprep.subr.mxu0 %v718
  %1685 = vmatpush1.msra.mxu0 %v717
  %1686 = vmatprep.subr.mxu0 %v722
  %1687 = vmatpush1.msra.mxu0 %v721
  %1688 = vmatprep.subr.mxu0 %v726
  %1689 = vmatpush1.msra.mxu0 %v725
  %1690 = vmatprep.subr.mxu0 %v730
  %1691 = vmatpush1.msra.mxu0 %v729
  %1692 = vmatprep.subr.mxu0 %v734
  %1693 = vmatpush1.msra.mxu0 %v733
  %1694 = vmatprep.subr.mxu0 %v738
  %1695 = vmatpush1.msra.mxu0 %v737
  %1696 = vmatprep.subr.mxu0 %v742
  %1697 = vmatpush1.msra.mxu0 %v741
  %1698 = vmatprep.subr.mxu0 %v746
  %1699 = vmatpush1.msra.mxu0 %v745
  %1700 = vmatprep.subr.mxu0 %v750
  %1701 = vmatpush1.msra.mxu0 %v749
  %1702 = vmatprep.subr.mxu0 %v754
  %1703 = vmatpush1.msra.mxu0 %v753
  %1704 = vmatprep.subr.mxu0 %v758
  %1705 = vmatpush1.msra.mxu0 %v757
  %1706 = vmatprep.subr.mxu0 %v762
  %1707 = vmatpush1.msra.mxu0 %v761
  %1708 = vmatprep.subr.mxu0 %v766
  %1709 = vmatpush1.msra.mxu0 %v765
  %1710 = vmatprep.subr.mxu0 %v770
  %1711 = vmatpush1.msra.mxu0 %v769
  %1712 = vmatprep.subr.mxu0 %v774
  %1713 = vmatpush1.msra.mxu0 %v773
  %1714 = vmatprep.subr.mxu0 %v778
  %1715 = vmatpush1.msra.mxu0 %v777
  %1716 = vmatprep.subr.mxu0 0.0
  %1717 = vmatpush1.msra.mxu0 0.0
  %1718 = vmatprep.subr.mxu0 0.0
  %1719 = vmatpush1.msra.mxu0 0.0
  %1720 = vmatprep.subr.mxu0 0.0
  %1721 = vmatpush1.msra.mxu0 0.0
  %1722 = vmatprep.subr.mxu0 0.0
  %1723 = vmatpush1.msra.mxu0 0.0
  %1724 = vmatprep.subr.mxu0 0.0
  %1725 = vmatpush1.msra.mxu0 0.0
  %1726 = vmatprep.subr.mxu0 0.0
  %1727 = vmatpush1.msra.mxu0 0.0
  %1728 = vmatprep.subr.mxu0 0.0
  %1729 = vmatpush1.msra.mxu0 0.0
  %1730 = vmatprep.subr.mxu0 0.0
  %1731 = vmatpush1.msra.mxu0 0.0
  %1732 = vmatprep.subr.mxu0 0.0
  %1733 = vmatpush1.msra.mxu0 0.0
  %1734 = vmatprep.subr.mxu0 0.0
  %1735 = vmatpush1.msra.mxu0 0.0
  %1736 = vmatprep.subr.mxu0 0.0
  %1737 = vmatpush1.msra.mxu0 0.0
  %1738 = vmatprep.subr.mxu0 0.0
  %1739 = vmatpush1.msra.mxu0 0.0
  %1740 = vmatprep.subr.mxu0 0.0
  %1741 = vmatpush1.msra.mxu0 0.0
  %1742 = vmatprep.subr.mxu0 0.0
  %1743 = vmatpush1.msra.mxu0 0.0
  %1744 = vmatprep.subr.mxu0 0.0
  %1745 = vmatpush1.msra.mxu0 0.0
  %1746 = vmatprep.subr.mxu0 0.0
  %1747 = vmatpush1.msra.mxu0 0.0
  %1748 = vmatprep.mubr.f32.mxu0 0.0
  %1749 = vmatmul.mubr.f32.gmra.mrb[0].mxu0 %v1674
  %v1750 = vpop.f32.mrb[0].mxu0
  %v1751 = vadd.f32 0.0, %v1750
  %v1752 = vpop.f32.mrb[0].mxu0
  %v1753 = vadd.f32 0.0, %v1752
  %1754 = vdwg.mxu0
  %1755 = vmatprep.subr.mxu0 %v720
  %1756 = vmatpush1.msra.mxu0 %v719
  %1757 = vmatprep.subr.mxu0 %v724
  %1758 = vmatpush1.msra.mxu0 %v723
  %1759 = vmatprep.subr.mxu0 %v728
  %1760 = vmatpush1.msra.mxu0 %v727
  %1761 = vmatprep.subr.mxu0 %v732
  %1762 = vmatpush1.msra.mxu0 %v731
  %1763 = vmatprep.subr.mxu0 %v736
  %1764 = vmatpush1.msra.mxu0 %v735
  %1765 = vmatprep.subr.mxu0 %v740
  %1766 = vmatpush1.msra.mxu0 %v739
  %1767 = vmatprep.subr.mxu0 %v744
  %1768 = vmatpush1.msra.mxu0 %v743
  %1769 = vmatprep.subr.mxu0 %v748
  %1770 = vmatpush1.msra.mxu0 %v747
  %1771 = vmatprep.subr.mxu0 %v752
  %1772 = vmatpush1.msra.mxu0 %v751
  %1773 = vmatprep.subr.mxu0 %v756
  %1774 = vmatpush1.msra.mxu0 %v755
  %1775 = vmatprep.subr.mxu0 %v760
  %1776 = vmatpush1.msra.mxu0 %v759
  %1777 = vmatprep.subr.mxu0 %v764
  %1778 = vmatpush1.msra.mxu0 %v763
  %1779 = vmatprep.subr.mxu0 %v768
  %1780 = vmatpush1.msra.mxu0 %v767
  %1781 = vmatprep.subr.mxu0 %v772
  %1782 = vmatpush1.msra.mxu0 %v771
  %1783 = vmatprep.subr.mxu0 %v776
  %1784 = vmatpush1.msra.mxu0 %v775
  %1785 = vmatprep.subr.mxu0 %v780
  %1786 = vmatpush1.msra.mxu0 %v779
  %1787 = vmatprep.subr.mxu0 0.0
  %1788 = vmatpush1.msra.mxu0 0.0
  %1789 = vmatprep.subr.mxu0 0.0
  %1790 = vmatpush1.msra.mxu0 0.0
  %1791 = vmatprep.subr.mxu0 0.0
  %1792 = vmatpush1.msra.mxu0 0.0
  %1793 = vmatprep.subr.mxu0 0.0
  %1794 = vmatpush1.msra.mxu0 0.0
  %1795 = vmatprep.subr.mxu0 0.0
  %1796 = vmatpush1.msra.mxu0 0.0
  %1797 = vmatprep.subr.mxu0 0.0
  %1798 = vmatpush1.msra.mxu0 0.0
  %1799 = vmatprep.subr.mxu0 0.0
  %1800 = vmatpush1.msra.mxu0 0.0
  %1801 = vmatprep.subr.mxu0 0.0
  %1802 = vmatpush1.msra.mxu0 0.0
  %1803 = vmatprep.subr.mxu0 0.0
  %1804 = vmatpush1.msra.mxu0 0.0
  %1805 = vmatprep.subr.mxu0 0.0
  %1806 = vmatpush1.msra.mxu0 0.0
  %1807 = vmatprep.subr.mxu0 0.0
  %1808 = vmatpush1.msra.mxu0 0.0
  %1809 = vmatprep.subr.mxu0 0.0
  %1810 = vmatpush1.msra.mxu0 0.0
  %1811 = vmatprep.subr.mxu0 0.0
  %1812 = vmatpush1.msra.mxu0 0.0
  %1813 = vmatprep.subr.mxu0 0.0
  %1814 = vmatpush1.msra.mxu0 0.0
  %1815 = vmatprep.subr.mxu0 0.0
  %1816 = vmatpush1.msra.mxu0 0.0
  %1817 = vmatprep.subr.mxu0 0.0
  %1818 = vmatpush1.msra.mxu0 0.0
  %1819 = vmatprep.mubr.f32.mxu0 0.0
  %1820 = vmatmul.mubr.f32.gmra.mrb[0].mxu0 %v1674
  %v1821 = vpop.f32.mrb[0].mxu0
  %v1822 = vadd.f32 0.0, %v1821
  %v1823 = vpop.f32.mrb[0].mxu0
  %v1824 = vadd.f32 0.0, %v1823
  %1825 = vdwg.mxu0
  %v1826 = vadd.f32 %v1680, %v1751
  %v1827 = vadd.f32 %v1681, %v1753
  %v1828 = vadd.f32 %v1682, %v1822
  %v1829 = vadd.f32 %v1683, %v1824
  %v1830 = vxor.u32 %v1826, 2147483648
  %v1831 = vmul.f32 %v1830, 1.442695
  %v1832 = vpow.pop %v1831
  %v1833 = vadd.f32 %v1832, 1.0
  %v1834 = vrcp.pop %v1833
  %v1835 = vmul.f32 1.0, %v1834
  %v1836 = vxor.u32 %v1827, 2147483648
  %v1837 = vmul.f32 %v1836, 1.442695
  %v1838 = vpow.pop %v1837
  %v1839 = vadd.f32 %v1838, 1.0
  %v1840 = vrcp.pop %v1839
  %v1841 = vmul.f32 1.0, %v1840
  %v1842 = vtanh.pop %v1828
  %v1843 = vxor.u32 %v1829, 2147483648
  %v1844 = vmul.f32 %v1843, 1.442695
  %v1845 = vpow.pop %v1844
  %v1846 = vadd.f32 %v1845, 1.0
  %v1847 = vrcp.pop %v1846
  %v1848 = vmul.f32 1.0, %v1847
  %v1849 = vmul.f32 %v1841, %v1672
  %v1850 = vmul.f32 %v1835, %v1842
  %v1851 = vadd.f32 %v1849, %v1850
  %v1852 = vtanh.pop %v1851
  %v1853 = vmul.f32 %v1848, %v1852
  %s1854 = scalar_lea.vmem %s4, 40
  %1855 = vst [vmem:[%s1854] sm:$0xff] %v1853
  %s1856 = smul.u32 6, 4
  %s1857 = smul.addr %s1856, 8
  %s1858 = scalar_lea.vmem [#allocation4], %s1857
  %v1859 = vld [vmem:[%s1858] sm:$0xff]
  %v1860 = vld [vmem:[%s1858 + $0x8] sm:$0xff]
  %v1861 = vld [vmem:[%s1858 + $0x10] sm:$0xff]
  %v1862 = vld [vmem:[%s1858 + $0x18] sm:$0xff]
  %1863 = vmatprep.subr.mxu0 %v718
  %1864 = vmatpush1.msra.mxu0 %v717
  %1865 = vmatprep.subr.mxu0 %v722
  %1866 = vmatpush1.msra.mxu0 %v721
  %1867 = vmatprep.subr.mxu0 %v726
  %1868 = vmatpush1.msra.mxu0 %v725
  %1869 = vmatprep.subr.mxu0 %v730
  %1870 = vmatpush1.msra.mxu0 %v729
  %1871 = vmatprep.subr.mxu0 %v734
  %1872 = vmatpush1.msra.mxu0 %v733
  %1873 = vmatprep.subr.mxu0 %v738
  %1874 = vmatpush1.msra.mxu0 %v737
  %1875 = vmatprep.subr.mxu0 %v742
  %1876 = vmatpush1.msra.mxu0 %v741
  %1877 = vmatprep.subr.mxu0 %v746
  %1878 = vmatpush1.msra.mxu0 %v745
  %1879 = vmatprep.subr.mxu0 %v750
  %1880 = vmatpush1.msra.mxu0 %v749
  %1881 = vmatprep.subr.mxu0 %v754
  %1882 = vmatpush1.msra.mxu0 %v753
  %1883 = vmatprep.subr.mxu0 %v758
  %1884 = vmatpush1.msra.mxu0 %v757
  %1885 = vmatprep.subr.mxu0 %v762
  %1886 = vmatpush1.msra.mxu0 %v761
  %1887 = vmatprep.subr.mxu0 %v766
  %1888 = vmatpush1.msra.mxu0 %v765
  %1889 = vmatprep.subr.mxu0 %v770
  %1890 = vmatpush1.msra.mxu0 %v769
  %1891 = vmatprep.subr.mxu0 %v774
  %1892 = vmatpush1.msra.mxu0 %v773
  %1893 = vmatprep.subr.mxu0 %v778
  %1894 = vmatpush1.msra.mxu0 %v777
  %1895 = vmatprep.subr.mxu0 0.0
  %1896 = vmatpush1.msra.mxu0 0.0
  %1897 = vmatprep.subr.mxu0 0.0
  %1898 = vmatpush1.msra.mxu0 0.0
  %1899 = vmatprep.subr.mxu0 0.0
  %1900 = vmatpush1.msra.mxu0 0.0
  %1901 = vmatprep.subr.mxu0 0.0
  %1902 = vmatpush1.msra.mxu0 0.0
  %1903 = vmatprep.subr.mxu0 0.0
  %1904 = vmatpush1.msra.mxu0 0.0
  %1905 = vmatprep.subr.mxu0 0.0
  %1906 = vmatpush1.msra.mxu0 0.0
  %1907 = vmatprep.subr.mxu0 0.0
  %1908 = vmatpush1.msra.mxu0 0.0
  %1909 = vmatprep.subr.mxu0 0.0
  %1910 = vmatpush1.msra.mxu0 0.0
  %1911 = vmatprep.subr.mxu0 0.0
  %1912 = vmatpush1.msra.mxu0 0.0
  %1913 = vmatprep.subr.mxu0 0.0
  %1914 = vmatpush1.msra.mxu0 0.0
  %1915 = vmatprep.subr.mxu0 0.0
  %1916 = vmatpush1.msra.mxu0 0.0
  %1917 = vmatprep.subr.mxu0 0.0
  %1918 = vmatpush1.msra.mxu0 0.0
  %1919 = vmatprep.subr.mxu0 0.0
  %1920 = vmatpush1.msra.mxu0 0.0
  %1921 = vmatprep.subr.mxu0 0.0
  %1922 = vmatpush1.msra.mxu0 0.0
  %1923 = vmatprep.subr.mxu0 0.0
  %1924 = vmatpush1.msra.mxu0 0.0
  %1925 = vmatprep.subr.mxu0 0.0
  %1926 = vmatpush1.msra.mxu0 0.0
  %1927 = vmatprep.mubr.f32.mxu0 0.0
  %1928 = vmatmul.mubr.f32.gmra.mrb[0].mxu0 %v1853
  %v1929 = vpop.f32.mrb[0].mxu0
  %v1930 = vadd.f32 0.0, %v1929
  %v1931 = vpop.f32.mrb[0].mxu0
  %v1932 = vadd.f32 0.0, %v1931
  %1933 = vdwg.mxu0
  %1934 = vmatprep.subr.mxu0 %v720
  %1935 = vmatpush1.msra.mxu0 %v719
  %1936 = vmatprep.subr.mxu0 %v724
  %1937 = vmatpush1.msra.mxu0 %v723
  %1938 = vmatprep.subr.mxu0 %v728
  %1939 = vmatpush1.msra.mxu0 %v727
  %1940 = vmatprep.subr.mxu0 %v732
  %1941 = vmatpush1.msra.mxu0 %v731
  %1942 = vmatprep.subr.mxu0 %v736
  %1943 = vmatpush1.msra.mxu0 %v735
  %1944 = vmatprep.subr.mxu0 %v740
  %1945 = vmatpush1.msra.mxu0 %v739
  %1946 = vmatprep.subr.mxu0 %v744
  %1947 = vmatpush1.msra.mxu0 %v743
  %1948 = vmatprep.subr.mxu0 %v748
  %1949 = vmatpush1.msra.mxu0 %v747
  %1950 = vmatprep.subr.mxu0 %v752
  %1951 = vmatpush1.msra.mxu0 %v751
  %1952 = vmatprep.subr.mxu0 %v756
  %1953 = vmatpush1.msra.mxu0 %v755
  %1954 = vmatprep.subr.mxu0 %v760
  %1955 = vmatpush1.msra.mxu0 %v759
  %1956 = vmatprep.subr.mxu0 %v764
  %1957 = vmatpush1.msra.mxu0 %v763
  %1958 = vmatprep.subr.mxu0 %v768
  %1959 = vmatpush1.msra.mxu0 %v767
  %1960 = vmatprep.subr.mxu0 %v772
  %1961 = vmatpush1.msra.mxu0 %v771
  %1962 = vmatprep.subr.mxu0 %v776
  %1963 = vmatpush1.msra.mxu0 %v775
  %1964 = vmatprep.subr.mxu0 %v780
  %1965 = vmatpush1.msra.mxu0 %v779
  %1966 = vmatprep.subr.mxu0 0.0
  %1967 = vmatpush1.msra.mxu0 0.0
  %1968 = vmatprep.subr.mxu0 0.0
  %1969 = vmatpush1.msra.mxu0 0.0
  %1970 = vmatprep.subr.mxu0 0.0
  %1971 = vmatpush1.msra.mxu0 0.0
  %1972 = vmatprep.subr.mxu0 0.0
  %1973 = vmatpush1.msra.mxu0 0.0
  %1974 = vmatprep.subr.mxu0 0.0
  %1975 = vmatpush1.msra.mxu0 0.0
  %1976 = vmatprep.subr.mxu0 0.0
  %1977 = vmatpush1.msra.mxu0 0.0
  %1978 = vmatprep.subr.mxu0 0.0
  %1979 = vmatpush1.msra.mxu0 0.0
  %1980 = vmatprep.subr.mxu0 0.0
  %1981 = vmatpush1.msra.mxu0 0.0
  %1982 = vmatprep.subr.mxu0 0.0
  %1983 = vmatpush1.msra.mxu0 0.0
  %1984 = vmatprep.subr.mxu0 0.0
  %1985 = vmatpush1.msra.mxu0 0.0
  %1986 = vmatprep.subr.mxu0 0.0
  %1987 = vmatpush1.msra.mxu0 0.0
  %1988 = vmatprep.subr.mxu0 0.0
  %1989 = vmatpush1.msra.mxu0 0.0
  %1990 = vmatprep.subr.mxu0 0.0
  %1991 = vmatpush1.msra.mxu0 0.0
  %1992 = vmatprep.subr.mxu0 0.0
  %1993 = vmatpush1.msra.mxu0 0.0
  %1994 = vmatprep.subr.mxu0 0.0
  %1995 = vmatpush1.msra.mxu0 0.0
  %1996 = vmatprep.subr.mxu0 0.0
  %1997 = vmatpush1.msra.mxu0 0.0
  %1998 = vmatprep.mubr.f32.mxu0 0.0
  %1999 = vmatmul.mubr.f32.gmra.mrb[0].mxu0 %v1853
  %v2000 = vpop.f32.mrb[0].mxu0
  %v2001 = vadd.f32 0.0, %v2000
  %v2002 = vpop.f32.mrb[0].mxu0
  %v2003 = vadd.f32 0.0, %v2002
  %2004 = vdwg.mxu0
  %v2005 = vadd.f32 %v1859, %v1930
  %v2006 = vadd.f32 %v1860, %v1932
  %v2007 = vadd.f32 %v1861, %v2001
  %v2008 = vadd.f32 %v1862, %v2003
  %v2009 = vxor.u32 %v2005, 2147483648
  %v2010 = vmul.f32 %v2009, 1.442695
  %v2011 = vpow.pop %v2010
  %v2012 = vadd.f32 %v2011, 1.0
  %v2013 = vrcp.pop %v2012
  %v2014 = vmul.f32 1.0, %v2013
  %v2015 = vxor.u32 %v2006, 2147483648
  %v2016 = vmul.f32 %v2015, 1.442695
  %v2017 = vpow.pop %v2016
  %v2018 = vadd.f32 %v2017, 1.0
  %v2019 = vrcp.pop %v2018
  %v2020 = vmul.f32 1.0, %v2019
  %v2021 = vtanh.pop %v2007
  %v2022 = vxor.u32 %v2008, 2147483648
  %v2023 = vmul.f32 %v2022, 1.442695
  %v2024 = vpow.pop %v2023
  %v2025 = vadd.f32 %v2024, 1.0
  %v2026 = vrcp.pop %v2025
  %v2027 = vmul.f32 1.0, %v2026
  %v2028 = vmul.f32 %v2020, %v1851
  %v2029 = vmul.f32 %v2014, %v2021
  %v2030 = vadd.f32 %v2028, %v2029
  %v2031 = vtanh.pop %v2030
  %v2032 = vmul.f32 %v2027, %v2031
  %s2033 = scalar_lea.vmem %s4, 48
  %2034 = vst [vmem:[%s2033] sm:$0xff] %v2032
  %s2035 = smul.u32 7, 4
  %s2036 = smul.addr %s2035, 8
  %s2037 = scalar_lea.vmem [#allocation4], %s2036
  %v2038 = vld [vmem:[%s2037] sm:$0xff]
  %v2039 = vld [vmem:[%s2037 + $0x8] sm:$0xff]
  %v2040 = vld [vmem:[%s2037 + $0x10] sm:$0xff]
  %v2041 = vld [vmem:[%s2037 + $0x18] sm:$0xff]
  %2042 = vmatprep.subr.mxu0 %v718
  %2043 = vmatpush1.msra.mxu0 %v717
  %2044 = vmatprep.subr.mxu0 %v722
  %2045 = vmatpush1.msra.mxu0 %v721
  %2046 = vmatprep.subr.mxu0 %v726
  %2047 = vmatpush1.msra.mxu0 %v725
  %2048 = vmatprep.subr.mxu0 %v730
  %2049 = vmatpush1.msra.mxu0 %v729
  %2050 = vmatprep.subr.mxu0 %v734
  %2051 = vmatpush1.msra.mxu0 %v733
  %2052 = vmatprep.subr.mxu0 %v738
  %2053 = vmatpush1.msra.mxu0 %v737
  %2054 = vmatprep.subr.mxu0 %v742
  %2055 = vmatpush1.msra.mxu0 %v741
  %2056 = vmatprep.subr.mxu0 %v746
  %2057 = vmatpush1.msra.mxu0 %v745
  %2058 = vmatprep.subr.mxu0 %v750
  %2059 = vmatpush1.msra.mxu0 %v749
  %2060 = vmatprep.subr.mxu0 %v754
  %2061 = vmatpush1.msra.mxu0 %v753
  %2062 = vmatprep.subr.mxu0 %v758
  %2063 = vmatpush1.msra.mxu0 %v757
  %2064 = vmatprep.subr.mxu0 %v762
  %2065 = vmatpush1.msra.mxu0 %v761
  %2066 = vmatprep.subr.mxu0 %v766
  %2067 = vmatpush1.msra.mxu0 %v765
  %2068 = vmatprep.subr.mxu0 %v770
  %2069 = vmatpush1.msra.mxu0 %v769
  %2070 = vmatprep.subr.mxu0 %v774
  %2071 = vmatpush1.msra.mxu0 %v773
  %2072 = vmatprep.subr.mxu0 %v778
  %2073 = vmatpush1.msra.mxu0 %v777
  %2074 = vmatprep.subr.mxu0 0.0
  %2075 = vmatpush1.msra.mxu0 0.0
  %2076 = vmatprep.subr.mxu0 0.0
  %2077 = vmatpush1.msra.mxu0 0.0
  %2078 = vmatprep.subr.mxu0 0.0
  %2079 = vmatpush1.msra.mxu0 0.0
  %2080 = vmatprep.subr.mxu0 0.0
  %2081 = vmatpush1.msra.mxu0 0.0
  %2082 = vmatprep.subr.mxu0 0.0
  %2083 = vmatpush1.msra.mxu0 0.0
  %2084 = vmatprep.subr.mxu0 0.0
  %2085 = vmatpush1.msra.mxu0 0.0
  %2086 = vmatprep.subr.mxu0 0.0
  %2087 = vmatpush1.msra.mxu0 0.0
  %2088 = vmatprep.subr.mxu0 0.0
  %2089 = vmatpush1.msra.mxu0 0.0
  %2090 = vmatprep.subr.mxu0 0.0
  %2091 = vmatpush1.msra.mxu0 0.0
  %2092 = vmatprep.subr.mxu0 0.0
  %2093 = vmatpush1.msra.mxu0 0.0
  %2094 = vmatprep.subr.mxu0 0.0
  %2095 = vmatpush1.msra.mxu0 0.0
  %2096 = vmatprep.subr.mxu0 0.0
  %2097 = vmatpush1.msra.mxu0 0.0
  %2098 = vmatprep.subr.mxu0 0.0
  %2099 = vmatpush1.msra.mxu0 0.0
  %2100 = vmatprep.subr.mxu0 0.0
  %2101 = vmatpush1.msra.mxu0 0.0
  %2102 = vmatprep.subr.mxu0 0.0
  %2103 = vmatpush1.msra.mxu0 0.0
  %2104 = vmatprep.subr.mxu0 0.0
  %2105 = vmatpush1.msra.mxu0 0.0
  %2106 = vmatprep.mubr.f32.mxu0 0.0
  %2107 = vmatmul.mubr.f32.gmra.mrb[0].mxu0 %v2032
  %v2108 = vpop.f32.mrb[0].mxu0
  %v2109 = vadd.f32 0.0, %v2108
  %v2110 = vpop.f32.mrb[0].mxu0
  %v2111 = vadd.f32 0.0, %v2110
  %2112 = vdwg.mxu0
  %2113 = vmatprep.subr.mxu0 %v720
  %2114 = vmatpush1.msra.mxu0 %v719
  %2115 = vmatprep.subr.mxu0 %v724
  %2116 = vmatpush1.msra.mxu0 %v723
  %2117 = vmatprep.subr.mxu0 %v728
  %2118 = vmatpush1.msra.mxu0 %v727
  %2119 = vmatprep.subr.mxu0 %v732
  %2120 = vmatpush1.msra.mxu0 %v731
  %2121 = vmatprep.subr.mxu0 %v736
  %2122 = vmatpush1.msra.mxu0 %v735
  %2123 = vmatprep.subr.mxu0 %v740
  %2124 = vmatpush1.msra.mxu0 %v739
  %2125 = vmatprep.subr.mxu0 %v744
  %2126 = vmatpush1.msra.mxu0 %v743
  %2127 = vmatprep.subr.mxu0 %v748
  %2128 = vmatpush1.msra.mxu0 %v747
  %2129 = vmatprep.subr.mxu0 %v752
  %2130 = vmatpush1.msra.mxu0 %v751
  %2131 = vmatprep.subr.mxu0 %v756
  %2132 = vmatpush1.msra.mxu0 %v755
  %2133 = vmatprep.subr.mxu0 %v760
  %2134 = vmatpush1.msra.mxu0 %v759
  %2135 = vmatprep.subr.mxu0 %v764
  %2136 = vmatpush1.msra.mxu0 %v763
  %2137 = vmatprep.subr.mxu0 %v768
  %2138 = vmatpush1.msra.mxu0 %v767
  %2139 = vmatprep.subr.mxu0 %v772
  %2140 = vmatpush1.msra.mxu0 %v771
  %2141 = vmatprep.subr.mxu0 %v776
  %2142 = vmatpush1.msra.mxu0 %v775
  %2143 = vmatprep.subr.mxu0 %v780
  %2144 = vmatpush1.msra.mxu0 %v779
  %2145 = vmatprep.subr.mxu0 0.0
  %2146 = vmatpush1.msra.mxu0 0.0
  %2147 = vmatprep.subr.mxu0 0.0
  %2148 = vmatpush1.msra.mxu0 0.0
  %2149 = vmatprep.subr.mxu0 0.0
  %2150 = vmatpush1.msra.mxu0 0.0
  %2151 = vmatprep.subr.mxu0 0.0
  %2152 = vmatpush1.msra.mxu0 0.0
  %2153 = vmatprep.subr.mxu0 0.0
  %2154 = vmatpush1.msra.mxu0 0.0
  %2155 = vmatprep.subr.mxu0 0.0
  %2156 = vmatpush1.msra.mxu0 0.0
  %2157 = vmatprep.subr.mxu0 0.0
  %2158 = vmatpush1.msra.mxu0 0.0
  %2159 = vmatprep.subr.mxu0 0.0
  %2160 = vmatpush1.msra.mxu0 0.0
  %2161 = vmatprep.subr.mxu0 0.0
  %2162 = vmatpush1.msra.mxu0 0.0
  %2163 = vmatprep.subr.mxu0 0.0
  %2164 = vmatpush1.msra.mxu0 0.0
  %2165 = vmatprep.subr.mxu0 0.0
  %2166 = vmatpush1.msra.mxu0 0.0
  %2167 = vmatprep.subr.mxu0 0.0
  %2168 = vmatpush1.msra.mxu0 0.0
  %2169 = vmatprep.subr.mxu0 0.0
  %2170 = vmatpush1.msra.mxu0 0.0
  %2171 = vmatprep.subr.mxu0 0.0
  %2172 = vmatpush1.msra.mxu0 0.0
  %2173 = vmatprep.subr.mxu0 0.0
  %2174 = vmatpush1.msra.mxu0 0.0
  %2175 = vmatprep.subr.mxu0 0.0
  %2176 = vmatpush1.msra.mxu0 0.0
  %2177 = vmatprep.mubr.f32.mxu0 0.0
  %2178 = vmatmul.mubr.f32.gmra.mrb[0].mxu0 %v2032
  %v2179 = vpop.f32.mrb[0].mxu0
  %v2180 = vadd.f32 0.0, %v2179
  %v2181 = vpop.f32.mrb[0].mxu0
  %v2182 = vadd.f32 0.0, %v2181
  %2183 = vdwg.mxu0
  %v2184 = vadd.f32 %v2038, %v2109
  %v2185 = vadd.f32 %v2039, %v2111
  %v2186 = vadd.f32 %v2040, %v2180
  %v2187 = vadd.f32 %v2041, %v2182
  %v2188 = vxor.u32 %v2184, 2147483648
  %v2189 = vmul.f32 %v2188, 1.442695
  %v2190 = vpow.pop %v2189
  %v2191 = vadd.f32 %v2190, 1.0
  %v2192 = vrcp.pop %v2191
  %v2193 = vmul.f32 1.0, %v2192
  %v2194 = vxor.u32 %v2185, 2147483648
  %v2195 = vmul.f32 %v2194, 1.442695
  %v2196 = vpow.pop %v2195
  %v2197 = vadd.f32 %v2196, 1.0
  %v2198 = vrcp.pop %v2197
  %v2199 = vmul.f32 1.0, %v2198
  %v2200 = vtanh.pop %v2186
  %v2201 = vxor.u32 %v2187, 2147483648
  %v2202 = vmul.f32 %v2201, 1.442695
  %v2203 = vpow.pop %v2202
  %v2204 = vadd.f32 %v2203, 1.0
  %v2205 = vrcp.pop %v2204
  %v2206 = vmul.f32 1.0, %v2205
  %v2207 = vmul.f32 %v2199, %v2030
  %v2208 = vmul.f32 %v2193, %v2200
  %v2209 = vadd.f32 %v2207, %v2208
  %v2210 = vtanh.pop %v2209
  %v2211 = vmul.f32 %v2206, %v2210
  %s2212 = scalar_lea.vmem %s4, 56
  %2213 = vst [vmem:[%s2212] sm:$0xff] %v2211
  %2214 = vst [vmem:[%s5] sm:$0xff] %v2211
  %2215 = vst [vmem:[%s6] sm:$0xff] %v2209
  // Predicated region
  $region82: #{seq2seq_encoder_forward.3} parent=0 // pred_check
    _
  $region83: #{seq2seq_encoder_forward.3} parent=0 // pred_check_branch
    %2217 = sbr.rel (0) target = $region85
  $region84: #{seq2seq_encoder_forward.3} parent=0 // pred_region
    _
  $region85: #{seq2seq_encoder_forward.3} parent=0 // pred_fallthru
    _
  // Predicated region
  $region86: #{seq2seq_encoder_forward.3} parent=0 // pred_check
    _
  $region87: #{seq2seq_encoder_forward.3} parent=0 // pred_check_branch
    %2219 = sbr.rel (0) target = $region89
  $region88: #{seq2seq_encoder_forward.3} parent=0 // pred_region
    _
  $region89: #{seq2seq_encoder_forward.3} parent=0 // pred_fallthru
    _
  // Predicated region
  $region90: #{seq2seq_encoder_forward.3} parent=0 // pred_check
    _
  $region91: #{seq2seq_encoder_forward.3} parent=0 // pred_check_branch
    %2221 = sbr.rel (0) target = $region93
  $region92: #{seq2seq_encoder_forward.3} parent=0 // pred_region
    _
  $region93: #{seq2seq_encoder_forward.3} parent=0 // pred_fallthru
    _
  // Predicated region
  $region94: #{seq2seq_encoder_forward.3} parent=0 // pred_check
    _
  $region95: #{seq2seq_encoder_forward.3} parent=0 // pred_check_branch
    %2223 = sbr.rel (0) target = $region97
  $region96: #{seq2seq_encoder_forward.3} parent=0 // pred_region
    _
  $region97: #{seq2seq_encoder_forward.3} parent=0 // pred_fallthru
    _
  // Predicated region
  $region98: #{seq2seq_encoder_forward.3} parent=0 // pred_check
    _
  $region99: #{seq2seq_encoder_forward.3} parent=0 // pred_check_branch
    %2225 = sbr.rel (0) target = $region101
  $region100: #{seq2seq_encoder_forward.3} parent=0 // pred_region
    _
  $region101: #{seq2seq_encoder_forward.3} parent=0 // pred_fallthru
    _
  // Predicated region
  $region102: #{seq2seq_encoder_forward.3} parent=0 // pred_check
    _
  $region103: #{seq2seq_encoder_forward.3} parent=0 // pred_check_branch
    %2227 = sbr.rel (0) target = $region105
  $region104: #{seq2seq_encoder_forward.3} parent=0 // pred_region
    _
  $region105: #{seq2seq_encoder_forward.3} parent=0 // pred_fallthru
    _
  %2228 = vsyncmov [#allocation5]
  %s2229 = vpop.sfrf %2228
  %p2230 = scmp.eq.s32.totalorder %s2229, 0
  %p2231 = pneg %p2230
  %2233 = shalt.err (%p2231)
  %s2234 = scalar_lea.sflag [#allocation5], 1
  %2235 = vsyncmov %s2234
  %s2236 = vpop.sfrf %2235
  %p2237 = scmp.eq.s32.totalorder %s2236, 0
  %p2238 = pneg %p2237
  %2240 = shalt.err (%p2238)

</llo_original>
